<compile_context>
chip_gen: v6e
topology: v6e:2x2x1
jax: 0.10.0
libtpu: 0.0.40
codegen_flags: <defaults>
</compile_context>

<pallas_src>
import functools

import jax
import jax.numpy as jnp
from jax.experimental import pallas as pl
from jax.experimental.pallas import tpu as pltpu


# ----------------------------- helpers --------------------------------------

def _round_up(x, m):
    return ((x + m - 1) // m) * m


def _pad_axis(x, target, axis):
    pad = target - x.shape[axis]
    if pad == 0:
        return x
    widths = [(0, 0)] * x.ndim
    widths[axis] = (0, pad)
    return jnp.pad(x, widths)


def _pad_gate_cols(w, H, H_p):
    """Pad the last dim (4*H, laid out [i|f|g|o]) to 4*H_p, per gate block."""
    lead = w.shape[:-1]
    w4 = w.reshape(*lead, 4, H)
    w4 = _pad_axis(w4, H_p, axis=w4.ndim - 1)
    return w4.reshape(*lead, 4 * H_p)


def _pick_tile(n, candidates):
    for c in candidates:
        if n % c == 0:
            return c
    return n


def _sigmoid(x):
    # sigmoid(x) = 0.5 * (tanh(0.5 x) + 1): a single EUP transcendental.
    return 0.5 * jnp.tanh(0.5 * x) + 0.5


# ----------------------- Pallas kernel 1: recurrence -------------------------

def lstm_recurrence_kernel(gx_ref, whh_ref, hs_ref, h_scr, c_scr):
    """gx_ref:(Tc,Bp,4Hp)  whh_ref:(Hp,4Hp)  hs_ref:(Tc,Bp,Hp)
       h_scr/c_scr:(Bp,Hp) f32 scratch carried across grid steps."""
    T_c = gx_ref.shape[0]
    H_p = whh_ref.shape[0]

    @pl.when(pl.program_id(0) == 0)
    def _():
        h_scr[...] = jnp.zeros_like(h_scr)    # h0 = c0 = 0
        c_scr[...] = jnp.zeros_like(c_scr)

    def step(t, carry):
        h = h_scr[...]
        c = c_scr[...]
        # Serial path: only the H x 4H matmul + gate elementwise math.
        # whh_ref[...] is consumed inside the dot (no loop-long live value).
        gates = gx_ref[t].astype(jnp.float32) + jnp.dot(
            h.astype(whh_ref.dtype), whh_ref[...],
            preferred_element_type=jnp.float32)
        # PyTorch LSTM gate order: input, forget, cell(g), output.
        i = _sigmoid(gates[:, 0 * H_p:1 * H_p])
        f = _sigmoid(gates[:, 1 * H_p:2 * H_p])
        g = jnp.tanh(gates[:, 2 * H_p:3 * H_p])
        o = _sigmoid(gates[:, 3 * H_p:4 * H_p])
        c_new = f * c + i * g
        h_new = o * jnp.tanh(c_new)
        hs_ref[t] = h_new.astype(hs_ref.dtype)
        h_scr[...] = h_new
        c_scr[...] = c_new
        return carry

    # Fully unroll only the (short) per-chunk inner loop.
    jax.lax.fori_loop(0, T_c, step, 0, unroll=True)


# ---------------------- Pallas kernel 2: vocab projection --------------------

def matmul_bias_kernel(h_ref, w_ref, b_ref, out_ref):
    out_ref[...] = (
        jnp.dot(h_ref[...], w_ref[...], preferred_element_type=jnp.float32)
        + b_ref[...].astype(jnp.float32)).astype(out_ref.dtype)


# ------------------------------- forward ------------------------------------

def decoder_rnn_forward(features, captions, params, *,
                        compute_dtype=jnp.bfloat16):
    """Mirrors DecoderRNN.forward(features, captions) -> (B, T, vocab)."""
    emb_tbl = params["embedding"]                     # (V, E)
    wih, whh = params["w_ih"], params["w_hh"]         # (E, 4H), (H, 4H)
    b = params["b"]                                   # (1, 4H) = b_ih + b_hh
    wout, bout = params["w_out"], params["b_out"]     # (H, V), (1, V)

    H = whh.shape[0]
    V = wout.shape[1]

    # Glue: embedding lookup of captions[:, :-1], prepend image features.
    embeddings = emb_tbl[captions[:, :-1]]                            # (B,T-1,E)
    inputs = jnp.concatenate([features[:, None, :], embeddings], 1)   # (B,T,E)
    inputs = inputs.astype(jnp.float32)
    B, T, E = inputs.shape

    # Pad to vreg/tile-friendly shapes.  Zero padding is exact: padded hidden
    # columns have zero W/b columns so they stay identically 0 through the
    # LSTM; padded batch rows / timesteps are row-independent and are sliced
    # off at the end.
    bf16 = jnp.dtype(compute_dtype) == jnp.dtype(jnp.bfloat16)
    sub = 16 if bf16 else 8                            # sublane packing
    B_p = _round_up(B, sub)
    H_p = _round_up(H, 128)
    V_p = _round_up(V, 128)
    T_CHUNK = 8                                        # timesteps per grid step
    T_p = _round_up(T, T_CHUNK)

    wih_p = _pad_gate_cols(wih, H, H_p)                               # (E, 4Hp)
    b_p = _pad_gate_cols(b, H, H_p)                                   # (1, 4Hp)
    whh_p = _pad_axis(_pad_gate_cols(whh, H, H_p), H_p, axis=0)       # (Hp,4Hp)
    wout_p = _pad_axis(_pad_axis(wout, H_p, axis=0), V_p, axis=1)     # (Hp, Vp)
    bout_p = _pad_axis(bout, V_p, axis=1)                             # (1, Vp)

    # Hoisted input projection.  Transpose the *small* (B,T,E) activations
    # first so gate_x is produced directly in (T,B,4Hp) layout.
    x_t = jnp.transpose(inputs, (1, 0, 2))                            # (T,B,E)
    x_t = _pad_axis(_pad_axis(x_t, B_p, axis=1), T_p, axis=0)         # (Tp,Bp,E)
    gate_x = x_t.reshape(T_p * B_p, E) @ wih_p + b_p                  # (TpBp,4Hp)
    gate_x = gate_x.reshape(T_p, B_p, 4 * H_p).astype(compute_dtype)

    whh_c = whh_p.astype(compute_dtype)
    wout_c = wout_p.astype(compute_dtype)

    # Kernel 1: T-chunked, pipelined LSTM recurrence; h/c in VMEM scratch.
    hs = pl.pallas_call(
        lstm_recurrence_kernel,
        out_shape=jax.ShapeDtypeStruct((T_p, B_p, H_p), compute_dtype),
        grid_spec=pltpu.PrefetchScalarGridSpec(
            num_scalar_prefetch=0,
            grid=(T_p // T_CHUNK,),
            in_specs=[
                pl.BlockSpec((T_CHUNK, B_p, 4 * H_p),
                             lambda i: (i, 0, 0)),                    # gate_x
                pl.BlockSpec((H_p, 4 * H_p), lambda i: (0, 0)),       # W_hh (resident)
            ],
            out_specs=pl.BlockSpec((T_CHUNK, B_p, H_p), lambda i: (i, 0, 0)),
            scratch_shapes=[pltpu.VMEM((B_p, H_p), jnp.float32),      # h carry
                            pltpu.VMEM((B_p, H_p), jnp.float32)],     # c carry
        ),
        compiler_params=pltpu.CompilerParams(
            dimension_semantics=("arbitrary",)),                      # recurrent
    )(gate_x, whh_c)

    # Kernel 2: vocab projection as a W_out-stationary, fully parallel tiled
    # matmul.  M = T_p*B_p is a multiple of 64 by construction, so hs flattens
    # with no extra pad copy.
    M = T_p * B_p
    hs_flat = hs.reshape(M, H_p)                                      # no copy
    TM = _pick_tile(M, (256, 128, 64, 32, 16, 8))
    TN = _pick_tile(V_p, (512, 256, 128))

    logits = pl.pallas_call(
        matmul_bias_kernel,
        out_shape=jax.ShapeDtypeStruct((M, V_p), jnp.float32),
        grid_spec=pltpu.PrefetchScalarGridSpec(
            num_scalar_prefetch=0,
            # Vocab axis OUTER, M axis INNER: W_out / b_out block indices are
            # constant across the inner sweep -> no per-row-tile re-DMA.
            grid=(V_p // TN, M // TM),
            in_specs=[
                pl.BlockSpec((TM, H_p), lambda j, i: (i, 0)),          # h tiles
                pl.BlockSpec((H_p, TN), lambda j, i: (0, j)),          # W_out
                pl.BlockSpec((1, TN), lambda j, i: (0, j)),            # b_out
            ],
            out_specs=pl.BlockSpec((TM, TN), lambda j, i: (i, j)),
        ),
        compiler_params=pltpu.CompilerParams(
            dimension_semantics=("parallel", "parallel")),
    )(hs_flat, wout_c, bout_p)

    # Unpad and restore batch-first layout.
    logits = logits.reshape(T_p, B_p, V_p)[:T, :B, :V]                # (T,B,V)
    return jnp.transpose(logits, (1, 0, 2))                           # (B,T,V)


# ------------------------------ reference -----------------------------------

def decoder_rnn_reference(features, captions, params):
    """Pure-JAX reference (lax.scan LSTM) for correctness checking."""
    emb_tbl = params["embedding"]
    wih, whh, b = params["w_ih"], params["w_hh"], params["b"]
    wout, bout = params["w_out"], params["b_out"]
    H = whh.shape[0]

    embeddings = emb_tbl[captions[:, :-1]]
    inputs = jnp.concatenate([features[:, None, :], embeddings], axis=1)
    B = inputs.shape[0]

    def step(carry, x_t):
        h, c = carry
        gates = x_t @ wih + h @ whh + b[0]
        i = jax.nn.sigmoid(gates[:, 0 * H:1 * H])
        f = jax.nn.sigmoid(gates[:, 1 * H:2 * H])
        g = jnp.tanh(gates[:, 2 * H:3 * H])
        o = jax.nn.sigmoid(gates[:, 3 * H:4 * H])
        c = f * c + i * g
        h = o * jnp.tanh(c)
        return (h, c), h

    h0 = jnp.zeros((B, H), jnp.float32)
    c0 = jnp.zeros((B, H), jnp.float32)
    _, hs = jax.lax.scan(step, (h0, c0), jnp.transpose(inputs, (1, 0, 2)))
    hs = jnp.transpose(hs, (1, 0, 2))                                 # (B,T,H)
    return hs @ wout + bout[0]


def init_params(key, embed_size, hidden_size, vocab_size):
    k = jax.random.split(key, 6)
    s = 0.1
    return {
        "embedding": s * jax.random.normal(k[0], (vocab_size, embed_size),
                                           jnp.float32),
        "w_ih": s * jax.random.normal(k[1], (embed_size, 4 * hidden_size),
                                      jnp.float32),
        "w_hh": s * jax.random.normal(k[2], (hidden_size, 4 * hidden_size),
                                      jnp.float32),
        "b": s * jax.random.normal(k[3], (1, 4 * hidden_size), jnp.float32),
        "w_out": s * jax.random.normal(k[4], (hidden_size, vocab_size),
                                       jnp.float32),
        "b_out": s * jax.random.normal(k[5], (1, vocab_size), jnp.float32),
    }


if __name__ == "__main__":
    embed_size, hidden_size, vocab_size = 32, 32, 64
    batch, cap_len = 2, 8   # LSTM sequence length == cap_len (features + T-1 tokens)

    key = jax.random.PRNGKey(0)
    kp, kf, kc = jax.random.split(key, 3)
    params = init_params(kp, embed_size, hidden_size, vocab_size)
    features = jax.random.normal(kf, (batch, embed_size), jnp.float32)
    captions = jax.random.randint(kc, (batch, cap_len), 0, vocab_size,
                                  dtype=jnp.int32)

    ref = decoder_rnn_reference(features, captions, params)

    # f32 path: exact structural check against the f32 reference.
    fwd_f32 = jax.jit(functools.partial(decoder_rnn_forward,
                                        compute_dtype=jnp.float32))
    out_f32 = jax.block_until_ready(fwd_f32(features, captions, params))
    assert out_f32.shape == (batch, cap_len, vocab_size), out_f32.shape
    err_f32 = float(jnp.max(jnp.abs(out_f32 - ref)))
    assert err_f32 < 1e-4, err_f32

    # bf16 path (production default): bf16 matmul operands, f32 accumulation
    # and f32 gate math -> bf16-level tolerance vs the f32 reference.
    fwd_bf16 = jax.jit(functools.partial(decoder_rnn_forward,
                                         compute_dtype=jnp.bfloat16))
    out_bf16 = jax.block_until_ready(fwd_bf16(features, captions, params))
    assert out_bf16.shape == (batch, cap_len, vocab_size), out_bf16.shape
    err_bf16 = float(jnp.max(jnp.abs(out_bf16 - ref)))
    assert err_bf16 < 1e-1, err_bf16

    print("KERNEL_OK")
</pallas_src>

<mosaic_0001>
module attributes {stable_mosaic.version = 11 : i64} {
  func.func @lstm_recurrence_kernel(%arg0: i32, %arg1: memref<8x8x512xf32, #tpu.memory_space<vmem>>, %arg2: memref<128x512xf32, #tpu.memory_space<vmem>>, %arg3: memref<8x8x128xf32, #tpu.memory_space<vmem>>, %arg4: memref<8x128xf32, #tpu.memory_space<vmem>>, %arg5: memref<8x128xf32, #tpu.memory_space<vmem>>) attributes {dimension_semantics = [#tpu.dimension_semantics<arbitrary>], iteration_bounds = array<i64: 1>, scalar_prefetch = 0 : i64, scratch_operands = 2 : i64, tpu.core_type = #tpu.core_type<tc>, window_params = [{transform_indices = @transform_0, window_bounds = array<i64: 8, 8, 512>}, {pipeline_mode = #tpu.pipeline_mode<synchronous>, transform_indices = @transform_1, window_bounds = array<i64: 128, 512>}, {transform_indices = @transform_2, window_bounds = array<i64: 8, 8, 128>}]} {
    %c0_i32 = arith.constant 0 : i32
    %0 = arith.cmpi eq, %arg0, %c0_i32 : i32
    %1 = arith.extui %0 : i1 to i32
    %c0_i32_0 = arith.constant 0 : i32
    %2 = arith.cmpi ne, %1, %c0_i32_0 : i32
    scf.if %2 {
      %cst_192 = arith.constant 0.000000e+00 : f32
      %363 = vector.broadcast %cst_192 : f32 to vector<8x128xf32>
      %c0_193 = arith.constant 0 : index
      %c0_194 = arith.constant 0 : index
      %364 = vector.load %arg4[%c0_193, %c0_194] : memref<8x128xf32, #tpu.memory_space<vmem>>, vector<8x128xf32>
      tpu.vector_store %arg4[%c0_193, %c0_194], %363 {strides = array<i32>} : memref<8x128xf32, #tpu.memory_space<vmem>>, vector<8x128xf32>,
      %cst_195 = arith.constant 0.000000e+00 : f32
      %365 = vector.broadcast %cst_195 : f32 to vector<8x128xf32>
      %c0_196 = arith.constant 0 : index
      %c0_197 = arith.constant 0 : index
      %366 = vector.load %arg5[%c0_196, %c0_197] : memref<8x128xf32, #tpu.memory_space<vmem>>, vector<8x128xf32>
      tpu.vector_store %arg5[%c0_196, %c0_197], %365 {strides = array<i32>} : memref<8x128xf32, #tpu.memory_space<vmem>>, vector<8x128xf32>,
    } else {
    }
    %c0_i32_1 = arith.constant 0 : i32
    %c0 = arith.constant 0 : index
    %c0_2 = arith.constant 0 : index
    %3 = vector.load %arg4[%c0, %c0_2] : memref<8x128xf32, #tpu.memory_space<vmem>>, vector<8x128xf32>
    %c0_3 = arith.constant 0 : index
    %c0_4 = arith.constant 0 : index
    %4 = vector.load %arg5[%c0_3, %c0_4] : memref<8x128xf32, #tpu.memory_space<vmem>>, vector<8x128xf32>
    %5 = arith.index_cast %c0_i32_1 : i32 to index
    %c0_5 = arith.constant 0 : index
    %c0_6 = arith.constant 0 : index
    %6 = vector.load %arg1[%5, %c0_5, %c0_6] : memref<8x8x512xf32, #tpu.memory_space<vmem>>, vector<1x8x512xf32>
    %7 = vector.shape_cast %6 : vector<1x8x512xf32> to vector<8x512xf32>
    %c0_7 = arith.constant 0 : index
    %c0_8 = arith.constant 0 : index
    %8 = vector.load %arg2[%c0_7, %c0_8] : memref<128x512xf32, #tpu.memory_space<vmem>>, vector<128x512xf32>
    %cst = arith.constant dense<0.000000e+00> : vector<8x512xf32>
    %9 = tpu.matmul %3, %8, %cst {dimension_numbers = #tpu.dot_dimension_numbers<[1], [0], [0], [1], [0, 0, 1, 1], [], []>} : vector<8x128xf32>, vector<128x512xf32>, vector<8x512xf32> -> vector<8x512xf32>
    %10 = arith.addf %7, %9 : vector<8x512xf32>
    %11 = vector.extract_strided_slice %10 {offsets = [0, 0], sizes = [8, 128], strides = [1, 1]} : vector<8x512xf32> to vector<8x128xf32>
    %cst_9 = arith.constant 5.000000e-01 : f32
    %12 = vector.broadcast %cst_9 : f32 to vector<8x128xf32>
    %13 = arith.mulf %12, %11 : vector<8x128xf32>
    %14 = math.tanh %13 : vector<8x128xf32>
    %cst_10 = arith.constant 5.000000e-01 : f32
    %15 = vector.broadcast %cst_10 : f32 to vector<8x128xf32>
    %16 = arith.mulf %15, %14 : vector<8x128xf32>
    %cst_11 = arith.constant 5.000000e-01 : f32
    %17 = vector.broadcast %cst_11 : f32 to vector<8x128xf32>
    %18 = arith.addf %16, %17 : vector<8x128xf32>
    %19 = vector.extract_strided_slice %10 {offsets = [0, 128], sizes = [8, 128], strides = [1, 1]} : vector<8x512xf32> to vector<8x128xf32>
    %cst_12 = arith.constant 5.000000e-01 : f32
    %20 = vector.broadcast %cst_12 : f32 to vector<8x128xf32>
    %21 = arith.mulf %20, %19 : vector<8x128xf32>
    %22 = math.tanh %21 : vector<8x128xf32>
    %cst_13 = arith.constant 5.000000e-01 : f32
    %23 = vector.broadcast %cst_13 : f32 to vector<8x128xf32>
    %24 = arith.mulf %23, %22 : vector<8x128xf32>
    %cst_14 = arith.constant 5.000000e-01 : f32
    %25 = vector.broadcast %cst_14 : f32 to vector<8x128xf32>
    %26 = arith.addf %24, %25 : vector<8x128xf32>
    %27 = vector.extract_strided_slice %10 {offsets = [0, 256], sizes = [8, 128], strides = [1, 1]} : vector<8x512xf32> to vector<8x128xf32>
    %28 = math.tanh %27 : vector<8x128xf32>
    %29 = vector.extract_strided_slice %10 {offsets = [0, 384], sizes = [8, 128], strides = [1, 1]} : vector<8x512xf32> to vector<8x128xf32>
    %cst_15 = arith.constant 5.000000e-01 : f32
    %30 = vector.broadcast %cst_15 : f32 to vector<8x128xf32>
    %31 = arith.mulf %30, %29 : vector<8x128xf32>
    %32 = math.tanh %31 : vector<8x128xf32>
    %cst_16 = arith.constant 5.000000e-01 : f32
    %33 = vector.broadcast %cst_16 : f32 to vector<8x128xf32>
    %34 = arith.mulf %33, %32 : vector<8x128xf32>
    %cst_17 = arith.constant 5.000000e-01 : f32
    %35 = vector.broadcast %cst_17 : f32 to vector<8x128xf32>
    %36 = arith.addf %34, %35 : vector<8x128xf32>
    %37 = arith.mulf %26, %4 : vector<8x128xf32>
    %38 = arith.mulf %18, %28 : vector<8x128xf32>
    %39 = arith.addf %37, %38 : vector<8x128xf32>
    %40 = math.tanh %39 : vector<8x128xf32>
    %41 = arith.mulf %36, %40 : vector<8x128xf32>
    %42 = arith.index_cast %c0_i32_1 : i32 to index
    %c0_18 = arith.constant 0 : index
    %c0_19 = arith.constant 0 : index
    %43 = vector.load %arg3[%42, %c0_18, %c0_19] : memref<8x8x128xf32, #tpu.memory_space<vmem>>, vector<1x8x128xf32>
    %44 = vector.shape_cast %43 : vector<1x8x128xf32> to vector<8x128xf32>
    %45 = vector.shape_cast %41 : vector<8x128xf32> to vector<1x8x128xf32>
    tpu.vector_store %arg3[%42, %c0_18, %c0_19], %45 {strides = array<i32>} : memref<8x8x128xf32, #tpu.memory_space<vmem>>, vector<1x8x128xf32>,
    %c0_20 = arith.constant 0 : index
    %c0_21 = arith.constant 0 : index
    %46 = vector.load %arg4[%c0_20, %c0_21] : memref<8x128xf32, #tpu.memory_space<vmem>>, vector<8x128xf32>
    tpu.vector_store %arg4[%c0_20, %c0_21], %41 {strides = array<i32>} : memref<8x128xf32, #tpu.memory_space<vmem>>, vector<8x128xf32>,
    %c0_22 = arith.constant 0 : index
    %c0_23 = arith.constant 0 : index
    %47 = vector.load %arg5[%c0_22, %c0_23] : memref<8x128xf32, #tpu.memory_space<vmem>>, vector<8x128xf32>
    tpu.vector_store %arg5[%c0_22, %c0_23], %39 {strides = array<i32>} : memref<8x128xf32, #tpu.memory_space<vmem>>, vector<8x128xf32>,
    %c1_i32 = arith.constant 1 : i32
    %c0_24 = arith.constant 0 : index
    %c0_25 = arith.constant 0 : index
    %48 = vector.load %arg4[%c0_24, %c0_25] : memref<8x128xf32, #tpu.memory_space<vmem>>, vector<8x128xf32>
    %c0_26 = arith.constant 0 : index
    %c0_27 = arith.constant 0 : index
    %49 = vector.load %arg5[%c0_26, %c0_27] : memref<8x128xf32, #tpu.memory_space<vmem>>, vector<8x128xf32>
    %50 = arith.index_cast %c1_i32 : i32 to index
    %c0_28 = arith.constant 0 : index
    %c0_29 = arith.constant 0 : index
    %51 = vector.load %arg1[%50, %c0_28, %c0_29] : memref<8x8x512xf32, #tpu.memory_space<vmem>>, vector<1x8x512xf32>
    %52 = vector.shape_cast %51 : vector<1x8x512xf32> to vector<8x512xf32>
    %c0_30 = arith.constant 0 : index
    %c0_31 = arith.constant 0 : index
    %53 = vector.load %arg2[%c0_30, %c0_31] : memref<128x512xf32, #tpu.memory_space<vmem>>, vector<128x512xf32>
    %cst_32 = arith.constant dense<0.000000e+00> : vector<8x512xf32>
    %54 = tpu.matmul %48, %53, %cst_32 {dimension_numbers = #tpu.dot_dimension_numbers<[1], [0], [0], [1], [0, 0, 1, 1], [], []>} : vector<8x128xf32>, vector<128x512xf32>, vector<8x512xf32> -> vector<8x512xf32>
    %55 = arith.addf %52, %54 : vector<8x512xf32>
    %56 = vector.extract_strided_slice %55 {offsets = [0, 0], sizes = [8, 128], strides = [1, 1]} : vector<8x512xf32> to vector<8x128xf32>
    %cst_33 = arith.constant 5.000000e-01 : f32
    %57 = vector.broadcast %cst_33 : f32 to vector<8x128xf32>
    %58 = arith.mulf %57, %56 : vector<8x128xf32>
    %59 = math.tanh %58 : vector<8x128xf32>
    %cst_34 = arith.constant 5.000000e-01 : f32
    %60 = vector.broadcast %cst_34 : f32 to vector<8x128xf32>
    %61 = arith.mulf %60, %59 : vector<8x128xf32>
    %cst_35 = arith.constant 5.000000e-01 : f32
    %62 = vector.broadcast %cst_35 : f32 to vector<8x128xf32>
    %63 = arith.addf %61, %62 : vector<8x128xf32>
    %64 = vector.extract_strided_slice %55 {offsets = [0, 128], sizes = [8, 128], strides = [1, 1]} : vector<8x512xf32> to vector<8x128xf32>
    %cst_36 = arith.constant 5.000000e-01 : f32
    %65 = vector.broadcast %cst_36 : f32 to vector<8x128xf32>
    %66 = arith.mulf %65, %64 : vector<8x128xf32>
    %67 = math.tanh %66 : vector<8x128xf32>
    %cst_37 = arith.constant 5.000000e-01 : f32
    %68 = vector.broadcast %cst_37 : f32 to vector<8x128xf32>
    %69 = arith.mulf %68, %67 : vector<8x128xf32>
    %cst_38 = arith.constant 5.000000e-01 : f32
    %70 = vector.broadcast %cst_38 : f32 to vector<8x128xf32>
    %71 = arith.addf %69, %70 : vector<8x128xf32>
    %72 = vector.extract_strided_slice %55 {offsets = [0, 256], sizes = [8, 128], strides = [1, 1]} : vector<8x512xf32> to vector<8x128xf32>
    %73 = math.tanh %72 : vector<8x128xf32>
    %74 = vector.extract_strided_slice %55 {offsets = [0, 384], sizes = [8, 128], strides = [1, 1]} : vector<8x512xf32> to vector<8x128xf32>
    %cst_39 = arith.constant 5.000000e-01 : f32
    %75 = vector.broadcast %cst_39 : f32 to vector<8x128xf32>
    %76 = arith.mulf %75, %74 : vector<8x128xf32>
    %77 = math.tanh %76 : vector<8x128xf32>
    %cst_40 = arith.constant 5.000000e-01 : f32
    %78 = vector.broadcast %cst_40 : f32 to vector<8x128xf32>
    %79 = arith.mulf %78, %77 : vector<8x128xf32>
    %cst_41 = arith.constant 5.000000e-01 : f32
    %80 = vector.broadcast %cst_41 : f32 to vector<8x128xf32>
    %81 = arith.addf %79, %80 : vector<8x128xf32>
    %82 = arith.mulf %71, %49 : vector<8x128xf32>
    %83 = arith.mulf %63, %73 : vector<8x128xf32>
    %84 = arith.addf %82, %83 : vector<8x128xf32>
    %85 = math.tanh %84 : vector<8x128xf32>
    %86 = arith.mulf %81, %85 : vector<8x128xf32>
    %87 = arith.index_cast %c1_i32 : i32 to index
    %c0_42 = arith.constant 0 : index
    %c0_43 = arith.constant 0 : index
    %88 = vector.load %arg3[%87, %c0_42, %c0_43] : memref<8x8x128xf32, #tpu.memory_space<vmem>>, vector<1x8x128xf32>
    %89 = vector.shape_cast %88 : vector<1x8x128xf32> to vector<8x128xf32>
    %90 = vector.shape_cast %86 : vector<8x128xf32> to vector<1x8x128xf32>
    tpu.vector_store %arg3[%87, %c0_42, %c0_43], %90 {strides = array<i32>} : memref<8x8x128xf32, #tpu.memory_space<vmem>>, vector<1x8x128xf32>,
    %c0_44 = arith.constant 0 : index
    %c0_45 = arith.constant 0 : index
    %91 = vector.load %arg4[%c0_44, %c0_45] : memref<8x128xf32, #tpu.memory_space<vmem>>, vector<8x128xf32>
    tpu.vector_store %arg4[%c0_44, %c0_45], %86 {strides = array<i32>} : memref<8x128xf32, #tpu.memory_space<vmem>>, vector<8x128xf32>,
    %c0_46 = arith.constant 0 : index
    %c0_47 = arith.constant 0 : index
    %92 = vector.load %arg5[%c0_46, %c0_47] : memref<8x128xf32, #tpu.memory_space<vmem>>, vector<8x128xf32>
    tpu.vector_store %arg5[%c0_46, %c0_47], %84 {strides = array<i32>} : memref<8x128xf32, #tpu.memory_space<vmem>>, vector<8x128xf32>,
    %c2_i32 = arith.constant 2 : i32
    %c0_48 = arith.constant 0 : index
    %c0_49 = arith.constant 0 : index
    %93 = vector.load %arg4[%c0_48, %c0_49] : memref<8x128xf32, #tpu.memory_space<vmem>>, vector<8x128xf32>
    %c0_50 = arith.constant 0 : index
    %c0_51 = arith.constant 0 : index
    %94 = vector.load %arg5[%c0_50, %c0_51] : memref<8x128xf32, #tpu.memory_space<vmem>>, vector<8x128xf32>
    %95 = arith.index_cast %c2_i32 : i32 to index
    %c0_52 = arith.constant 0 : index
    %c0_53 = arith.constant 0 : index
    %96 = vector.load %arg1[%95, %c0_52, %c0_53] : memref<8x8x512xf32, #tpu.memory_space<vmem>>, vector<1x8x512xf32>
    %97 = vector.shape_cast %96 : vector<1x8x512xf32> to vector<8x512xf32>
    %c0_54 = arith.constant 0 : index
    %c0_55 = arith.constant 0 : index
    %98 = vector.load %arg2[%c0_54, %c0_55] : memref<128x512xf32, #tpu.memory_space<vmem>>, vector<128x512xf32>
    %cst_56 = arith.constant dense<0.000000e+00> : vector<8x512xf32>
    %99 = tpu.matmul %93, %98, %cst_56 {dimension_numbers = #tpu.dot_dimension_numbers<[1], [0], [0], [1], [0, 0, 1, 1], [], []>} : vector<8x128xf32>, vector<128x512xf32>, vector<8x512xf32> -> vector<8x512xf32>
    %100 = arith.addf %97, %99 : vector<8x512xf32>
    %101 = vector.extract_strided_slice %100 {offsets = [0, 0], sizes = [8, 128], strides = [1, 1]} : vector<8x512xf32> to vector<8x128xf32>
    %cst_57 = arith.constant 5.000000e-01 : f32
    %102 = vector.broadcast %cst_57 : f32 to vector<8x128xf32>
    %103 = arith.mulf %102, %101 : vector<8x128xf32>
    %104 = math.tanh %103 : vector<8x128xf32>
    %cst_58 = arith.constant 5.000000e-01 : f32
    %105 = vector.broadcast %cst_58 : f32 to vector<8x128xf32>
    %106 = arith.mulf %105, %104 : vector<8x128xf32>
    %cst_59 = arith.constant 5.000000e-01 : f32
    %107 = vector.broadcast %cst_59 : f32 to vector<8x128xf32>
    %108 = arith.addf %106, %107 : vector<8x128xf32>
    %109 = vector.extract_strided_slice %100 {offsets = [0, 128], sizes = [8, 128], strides = [1, 1]} : vector<8x512xf32> to vector<8x128xf32>
    %cst_60 = arith.constant 5.000000e-01 : f32
    %110 = vector.broadcast %cst_60 : f32 to vector<8x128xf32>
    %111 = arith.mulf %110, %109 : vector<8x128xf32>
    %112 = math.tanh %111 : vector<8x128xf32>
    %cst_61 = arith.constant 5.000000e-01 : f32
    %113 = vector.broadcast %cst_61 : f32 to vector<8x128xf32>
    %114 = arith.mulf %113, %112 : vector<8x128xf32>
    %cst_62 = arith.constant 5.000000e-01 : f32
    %115 = vector.broadcast %cst_62 : f32 to vector<8x128xf32>
    %116 = arith.addf %114, %115 : vector<8x128xf32>
    %117 = vector.extract_strided_slice %100 {offsets = [0, 256], sizes = [8, 128], strides = [1, 1]} : vector<8x512xf32> to vector<8x128xf32>
    %118 = math.tanh %117 : vector<8x128xf32>
    %119 = vector.extract_strided_slice %100 {offsets = [0, 384], sizes = [8, 128], strides = [1, 1]} : vector<8x512xf32> to vector<8x128xf32>
    %cst_63 = arith.constant 5.000000e-01 : f32
    %120 = vector.broadcast %cst_63 : f32 to vector<8x128xf32>
    %121 = arith.mulf %120, %119 : vector<8x128xf32>
    %122 = math.tanh %121 : vector<8x128xf32>
    %cst_64 = arith.constant 5.000000e-01 : f32
    %123 = vector.broadcast %cst_64 : f32 to vector<8x128xf32>
    %124 = arith.mulf %123, %122 : vector<8x128xf32>
    %cst_65 = arith.constant 5.000000e-01 : f32
    %125 = vector.broadcast %cst_65 : f32 to vector<8x128xf32>
    %126 = arith.addf %124, %125 : vector<8x128xf32>
    %127 = arith.mulf %116, %94 : vector<8x128xf32>
    %128 = arith.mulf %108, %118 : vector<8x128xf32>
    %129 = arith.addf %127, %128 : vector<8x128xf32>
    %130 = math.tanh %129 : vector<8x128xf32>
    %131 = arith.mulf %126, %130 : vector<8x128xf32>
    %132 = arith.index_cast %c2_i32 : i32 to index
    %c0_66 = arith.constant 0 : index
    %c0_67 = arith.constant 0 : index
    %133 = vector.load %arg3[%132, %c0_66, %c0_67] : memref<8x8x128xf32, #tpu.memory_space<vmem>>, vector<1x8x128xf32>
    %134 = vector.shape_cast %133 : vector<1x8x128xf32> to vector<8x128xf32>
    %135 = vector.shape_cast %131 : vector<8x128xf32> to vector<1x8x128xf32>
    tpu.vector_store %arg3[%132, %c0_66, %c0_67], %135 {strides = array<i32>} : memref<8x8x128xf32, #tpu.memory_space<vmem>>, vector<1x8x128xf32>,
    %c0_68 = arith.constant 0 : index
    %c0_69 = arith.constant 0 : index
    %136 = vector.load %arg4[%c0_68, %c0_69] : memref<8x128xf32, #tpu.memory_space<vmem>>, vector<8x128xf32>
    tpu.vector_store %arg4[%c0_68, %c0_69], %131 {strides = array<i32>} : memref<8x128xf32, #tpu.memory_space<vmem>>, vector<8x128xf32>,
    %c0_70 = arith.constant 0 : index
    %c0_71 = arith.constant 0 : index
    %137 = vector.load %arg5[%c0_70, %c0_71] : memref<8x128xf32, #tpu.memory_space<vmem>>, vector<8x128xf32>
    tpu.vector_store %arg5[%c0_70, %c0_71], %129 {strides = array<i32>} : memref<8x128xf32, #tpu.memory_space<vmem>>, vector<8x128xf32>,
    %c3_i32 = arith.constant 3 : i32
    %c0_72 = arith.constant 0 : index
    %c0_73 = arith.constant 0 : index
    %138 = vector.load %arg4[%c0_72, %c0_73] : memref<8x128xf32, #tpu.memory_space<vmem>>, vector<8x128xf32>
    %c0_74 = arith.constant 0 : index
    %c0_75 = arith.constant 0 : index
    %139 = vector.load %arg5[%c0_74, %c0_75] : memref<8x128xf32, #tpu.memory_space<vmem>>, vector<8x128xf32>
    %140 = arith.index_cast %c3_i32 : i32 to index
    %c0_76 = arith.constant 0 : index
    %c0_77 = arith.constant 0 : index
    %141 = vector.load %arg1[%140, %c0_76, %c0_77] : memref<8x8x512xf32, #tpu.memory_space<vmem>>, vector<1x8x512xf32>
    %142 = vector.shape_cast %141 : vector<1x8x512xf32> to vector<8x512xf32>
    %c0_78 = arith.constant 0 : index
    %c0_79 = arith.constant 0 : index
    %143 = vector.load %arg2[%c0_78, %c0_79] : memref<128x512xf32, #tpu.memory_space<vmem>>, vector<128x512xf32>
    %cst_80 = arith.constant dense<0.000000e+00> : vector<8x512xf32>
    %144 = tpu.matmul %138, %143, %cst_80 {dimension_numbers = #tpu.dot_dimension_numbers<[1], [0], [0], [1], [0, 0, 1, 1], [], []>} : vector<8x128xf32>, vector<128x512xf32>, vector<8x512xf32> -> vector<8x512xf32>
    %145 = arith.addf %142, %144 : vector<8x512xf32>
    %146 = vector.extract_strided_slice %145 {offsets = [0, 0], sizes = [8, 128], strides = [1, 1]} : vector<8x512xf32> to vector<8x128xf32>
    %cst_81 = arith.constant 5.000000e-01 : f32
    %147 = vector.broadcast %cst_81 : f32 to vector<8x128xf32>
    %148 = arith.mulf %147, %146 : vector<8x128xf32>
    %149 = math.tanh %148 : vector<8x128xf32>
    %cst_82 = arith.constant 5.000000e-01 : f32
    %150 = vector.broadcast %cst_82 : f32 to vector<8x128xf32>
    %151 = arith.mulf %150, %149 : vector<8x128xf32>
    %cst_83 = arith.constant 5.000000e-01 : f32
    %152 = vector.broadcast %cst_83 : f32 to vector<8x128xf32>
    %153 = arith.addf %151, %152 : vector<8x128xf32>
    %154 = vector.extract_strided_slice %145 {offsets = [0, 128], sizes = [8, 128], strides = [1, 1]} : vector<8x512xf32> to vector<8x128xf32>
    %cst_84 = arith.constant 5.000000e-01 : f32
    %155 = vector.broadcast %cst_84 : f32 to vector<8x128xf32>
    %156 = arith.mulf %155, %154 : vector<8x128xf32>
    %157 = math.tanh %156 : vector<8x128xf32>
    %cst_85 = arith.constant 5.000000e-01 : f32
    %158 = vector.broadcast %cst_85 : f32 to vector<8x128xf32>
    %159 = arith.mulf %158, %157 : vector<8x128xf32>
    %cst_86 = arith.constant 5.000000e-01 : f32
    %160 = vector.broadcast %cst_86 : f32 to vector<8x128xf32>
    %161 = arith.addf %159, %160 : vector<8x128xf32>
    %162 = vector.extract_strided_slice %145 {offsets = [0, 256], sizes = [8, 128], strides = [1, 1]} : vector<8x512xf32> to vector<8x128xf32>
    %163 = math.tanh %162 : vector<8x128xf32>
    %164 = vector.extract_strided_slice %145 {offsets = [0, 384], sizes = [8, 128], strides = [1, 1]} : vector<8x512xf32> to vector<8x128xf32>
    %cst_87 = arith.constant 5.000000e-01 : f32
    %165 = vector.broadcast %cst_87 : f32 to vector<8x128xf32>
    %166 = arith.mulf %165, %164 : vector<8x128xf32>
    %167 = math.tanh %166 : vector<8x128xf32>
    %cst_88 = arith.constant 5.000000e-01 : f32
    %168 = vector.broadcast %cst_88 : f32 to vector<8x128xf32>
    %169 = arith.mulf %168, %167 : vector<8x128xf32>
    %cst_89 = arith.constant 5.000000e-01 : f32
    %170 = vector.broadcast %cst_89 : f32 to vector<8x128xf32>
    %171 = arith.addf %169, %170 : vector<8x128xf32>
    %172 = arith.mulf %161, %139 : vector<8x128xf32>
    %173 = arith.mulf %153, %163 : vector<8x128xf32>
    %174 = arith.addf %172, %173 : vector<8x128xf32>
    %175 = math.tanh %174 : vector<8x128xf32>
    %176 = arith.mulf %171, %175 : vector<8x128xf32>
    %177 = arith.index_cast %c3_i32 : i32 to index
    %c0_90 = arith.constant 0 : index
    %c0_91 = arith.constant 0 : index
    %178 = vector.load %arg3[%177, %c0_90, %c0_91] : memref<8x8x128xf32, #tpu.memory_space<vmem>>, vector<1x8x128xf32>
    %179 = vector.shape_cast %178 : vector<1x8x128xf32> to vector<8x128xf32>
    %180 = vector.shape_cast %176 : vector<8x128xf32> to vector<1x8x128xf32>
    tpu.vector_store %arg3[%177, %c0_90, %c0_91], %180 {strides = array<i32>} : memref<8x8x128xf32, #tpu.memory_space<vmem>>, vector<1x8x128xf32>,
    %c0_92 = arith.constant 0 : index
    %c0_93 = arith.constant 0 : index
    %181 = vector.load %arg4[%c0_92, %c0_93] : memref<8x128xf32, #tpu.memory_space<vmem>>, vector<8x128xf32>
    tpu.vector_store %arg4[%c0_92, %c0_93], %176 {strides = array<i32>} : memref<8x128xf32, #tpu.memory_space<vmem>>, vector<8x128xf32>,
    %c0_94 = arith.constant 0 : index
    %c0_95 = arith.constant 0 : index
    %182 = vector.load %arg5[%c0_94, %c0_95] : memref<8x128xf32, #tpu.memory_space<vmem>>, vector<8x128xf32>
    tpu.vector_store %arg5[%c0_94, %c0_95], %174 {strides = array<i32>} : memref<8x128xf32, #tpu.memory_space<vmem>>, vector<8x128xf32>,
    %c4_i32 = arith.constant 4 : i32
    %c0_96 = arith.constant 0 : index
    %c0_97 = arith.constant 0 : index
    %183 = vector.load %arg4[%c0_96, %c0_97] : memref<8x128xf32, #tpu.memory_space<vmem>>, vector<8x128xf32>
    %c0_98 = arith.constant 0 : index
    %c0_99 = arith.constant 0 : index
    %184 = vector.load %arg5[%c0_98, %c0_99] : memref<8x128xf32, #tpu.memory_space<vmem>>, vector<8x128xf32>
    %185 = arith.index_cast %c4_i32 : i32 to index
    %c0_100 = arith.constant 0 : index
    %c0_101 = arith.constant 0 : index
    %186 = vector.load %arg1[%185, %c0_100, %c0_101] : memref<8x8x512xf32, #tpu.memory_space<vmem>>, vector<1x8x512xf32>
    %187 = vector.shape_cast %186 : vector<1x8x512xf32> to vector<8x512xf32>
    %c0_102 = arith.constant 0 : index
    %c0_103 = arith.constant 0 : index
    %188 = vector.load %arg2[%c0_102, %c0_103] : memref<128x512xf32, #tpu.memory_space<vmem>>, vector<128x512xf32>
    %cst_104 = arith.constant dense<0.000000e+00> : vector<8x512xf32>
    %189 = tpu.matmul %183, %188, %cst_104 {dimension_numbers = #tpu.dot_dimension_numbers<[1], [0], [0], [1], [0, 0, 1, 1], [], []>} : vector<8x128xf32>, vector<128x512xf32>, vector<8x512xf32> -> vector<8x512xf32>
    %190 = arith.addf %187, %189 : vector<8x512xf32>
    %191 = vector.extract_strided_slice %190 {offsets = [0, 0], sizes = [8, 128], strides = [1, 1]} : vector<8x512xf32> to vector<8x128xf32>
    %cst_105 = arith.constant 5.000000e-01 : f32
    %192 = vector.broadcast %cst_105 : f32 to vector<8x128xf32>
    %193 = arith.mulf %192, %191 : vector<8x128xf32>
    %194 = math.tanh %193 : vector<8x128xf32>
    %cst_106 = arith.constant 5.000000e-01 : f32
    %195 = vector.broadcast %cst_106 : f32 to vector<8x128xf32>
    %196 = arith.mulf %195, %194 : vector<8x128xf32>
    %cst_107 = arith.constant 5.000000e-01 : f32
    %197 = vector.broadcast %cst_107 : f32 to vector<8x128xf32>
    %198 = arith.addf %196, %197 : vector<8x128xf32>
    %199 = vector.extract_strided_slice %190 {offsets = [0, 128], sizes = [8, 128], strides = [1, 1]} : vector<8x512xf32> to vector<8x128xf32>
    %cst_108 = arith.constant 5.000000e-01 : f32
    %200 = vector.broadcast %cst_108 : f32 to vector<8x128xf32>
    %201 = arith.mulf %200, %199 : vector<8x128xf32>
    %202 = math.tanh %201 : vector<8x128xf32>
    %cst_109 = arith.constant 5.000000e-01 : f32
    %203 = vector.broadcast %cst_109 : f32 to vector<8x128xf32>
    %204 = arith.mulf %203, %202 : vector<8x128xf32>
    %cst_110 = arith.constant 5.000000e-01 : f32
    %205 = vector.broadcast %cst_110 : f32 to vector<8x128xf32>
    %206 = arith.addf %204, %205 : vector<8x128xf32>
    %207 = vector.extract_strided_slice %190 {offsets = [0, 256], sizes = [8, 128], strides = [1, 1]} : vector<8x512xf32> to vector<8x128xf32>
    %208 = math.tanh %207 : vector<8x128xf32>
    %209 = vector.extract_strided_slice %190 {offsets = [0, 384], sizes = [8, 128], strides = [1, 1]} : vector<8x512xf32> to vector<8x128xf32>
    %cst_111 = arith.constant 5.000000e-01 : f32
    %210 = vector.broadcast %cst_111 : f32 to vector<8x128xf32>
    %211 = arith.mulf %210, %209 : vector<8x128xf32>
    %212 = math.tanh %211 : vector<8x128xf32>
    %cst_112 = arith.constant 5.000000e-01 : f32
    %213 = vector.broadcast %cst_112 : f32 to vector<8x128xf32>
    %214 = arith.mulf %213, %212 : vector<8x128xf32>
    %cst_113 = arith.constant 5.000000e-01 : f32
    %215 = vector.broadcast %cst_113 : f32 to vector<8x128xf32>
    %216 = arith.addf %214, %215 : vector<8x128xf32>
    %217 = arith.mulf %206, %184 : vector<8x128xf32>
    %218 = arith.mulf %198, %208 : vector<8x128xf32>
    %219 = arith.addf %217, %218 : vector<8x128xf32>
    %220 = math.tanh %219 : vector<8x128xf32>
    %221 = arith.mulf %216, %220 : vector<8x128xf32>
    %222 = arith.index_cast %c4_i32 : i32 to index
    %c0_114 = arith.constant 0 : index
    %c0_115 = arith.constant 0 : index
    %223 = vector.load %arg3[%222, %c0_114, %c0_115] : memref<8x8x128xf32, #tpu.memory_space<vmem>>, vector<1x8x128xf32>
    %224 = vector.shape_cast %223 : vector<1x8x128xf32> to vector<8x128xf32>
    %225 = vector.shape_cast %221 : vector<8x128xf32> to vector<1x8x128xf32>
    tpu.vector_store %arg3[%222, %c0_114, %c0_115], %225 {strides = array<i32>} : memref<8x8x128xf32, #tpu.memory_space<vmem>>, vector<1x8x128xf32>,
    %c0_116 = arith.constant 0 : index
    %c0_117 = arith.constant 0 : index
    %226 = vector.load %arg4[%c0_116, %c0_117] : memref<8x128xf32, #tpu.memory_space<vmem>>, vector<8x128xf32>
    tpu.vector_store %arg4[%c0_116, %c0_117], %221 {strides = array<i32>} : memref<8x128xf32, #tpu.memory_space<vmem>>, vector<8x128xf32>,
    %c0_118 = arith.constant 0 : index
    %c0_119 = arith.constant 0 : index
    %227 = vector.load %arg5[%c0_118, %c0_119] : memref<8x128xf32, #tpu.memory_space<vmem>>, vector<8x128xf32>
    tpu.vector_store %arg5[%c0_118, %c0_119], %219 {strides = array<i32>} : memref<8x128xf32, #tpu.memory_space<vmem>>, vector<8x128xf32>,
    %c5_i32 = arith.constant 5 : i32
    %c0_120 = arith.constant 0 : index
    %c0_121 = arith.constant 0 : index
    %228 = vector.load %arg4[%c0_120, %c0_121] : memref<8x128xf32, #tpu.memory_space<vmem>>, vector<8x128xf32>
    %c0_122 = arith.constant 0 : index
    %c0_123 = arith.constant 0 : index
    %229 = vector.load %arg5[%c0_122, %c0_123] : memref<8x128xf32, #tpu.memory_space<vmem>>, vector<8x128xf32>
    %230 = arith.index_cast %c5_i32 : i32 to index
    %c0_124 = arith.constant 0 : index
    %c0_125 = arith.constant 0 : index
    %231 = vector.load %arg1[%230, %c0_124, %c0_125] : memref<8x8x512xf32, #tpu.memory_space<vmem>>, vector<1x8x512xf32>
    %232 = vector.shape_cast %231 : vector<1x8x512xf32> to vector<8x512xf32>
    %c0_126 = arith.constant 0 : index
    %c0_127 = arith.constant 0 : index
    %233 = vector.load %arg2[%c0_126, %c0_127] : memref<128x512xf32, #tpu.memory_space<vmem>>, vector<128x512xf32>
    %cst_128 = arith.constant dense<0.000000e+00> : vector<8x512xf32>
    %234 = tpu.matmul %228, %233, %cst_128 {dimension_numbers = #tpu.dot_dimension_numbers<[1], [0], [0], [1], [0, 0, 1, 1], [], []>} : vector<8x128xf32>, vector<128x512xf32>, vector<8x512xf32> -> vector<8x512xf32>
    %235 = arith.addf %232, %234 : vector<8x512xf32>
    %236 = vector.extract_strided_slice %235 {offsets = [0, 0], sizes = [8, 128], strides = [1, 1]} : vector<8x512xf32> to vector<8x128xf32>
    %cst_129 = arith.constant 5.000000e-01 : f32
    %237 = vector.broadcast %cst_129 : f32 to vector<8x128xf32>
    %238 = arith.mulf %237, %236 : vector<8x128xf32>
    %239 = math.tanh %238 : vector<8x128xf32>
    %cst_130 = arith.constant 5.000000e-01 : f32
    %240 = vector.broadcast %cst_130 : f32 to vector<8x128xf32>
    %241 = arith.mulf %240, %239 : vector<8x128xf32>
    %cst_131 = arith.constant 5.000000e-01 : f32
    %242 = vector.broadcast %cst_131 : f32 to vector<8x128xf32>
    %243 = arith.addf %241, %242 : vector<8x128xf32>
    %244 = vector.extract_strided_slice %235 {offsets = [0, 128], sizes = [8, 128], strides = [1, 1]} : vector<8x512xf32> to vector<8x128xf32>
    %cst_132 = arith.constant 5.000000e-01 : f32
    %245 = vector.broadcast %cst_132 : f32 to vector<8x128xf32>
    %246 = arith.mulf %245, %244 : vector<8x128xf32>
    %247 = math.tanh %246 : vector<8x128xf32>
    %cst_133 = arith.constant 5.000000e-01 : f32
    %248 = vector.broadcast %cst_133 : f32 to vector<8x128xf32>
    %249 = arith.mulf %248, %247 : vector<8x128xf32>
    %cst_134 = arith.constant 5.000000e-01 : f32
    %250 = vector.broadcast %cst_134 : f32 to vector<8x128xf32>
    %251 = arith.addf %249, %250 : vector<8x128xf32>
    %252 = vector.extract_strided_slice %235 {offsets = [0, 256], sizes = [8, 128], strides = [1, 1]} : vector<8x512xf32> to vector<8x128xf32>
    %253 = math.tanh %252 : vector<8x128xf32>
    %254 = vector.extract_strided_slice %235 {offsets = [0, 384], sizes = [8, 128], strides = [1, 1]} : vector<8x512xf32> to vector<8x128xf32>
    %cst_135 = arith.constant 5.000000e-01 : f32
    %255 = vector.broadcast %cst_135 : f32 to vector<8x128xf32>
    %256 = arith.mulf %255, %254 : vector<8x128xf32>
    %257 = math.tanh %256 : vector<8x128xf32>
    %cst_136 = arith.constant 5.000000e-01 : f32
    %258 = vector.broadcast %cst_136 : f32 to vector<8x128xf32>
    %259 = arith.mulf %258, %257 : vector<8x128xf32>
    %cst_137 = arith.constant 5.000000e-01 : f32
    %260 = vector.broadcast %cst_137 : f32 to vector<8x128xf32>
    %261 = arith.addf %259, %260 : vector<8x128xf32>
    %262 = arith.mulf %251, %229 : vector<8x128xf32>
    %263 = arith.mulf %243, %253 : vector<8x128xf32>
    %264 = arith.addf %262, %263 : vector<8x128xf32>
    %265 = math.tanh %264 : vector<8x128xf32>
    %266 = arith.mulf %261, %265 : vector<8x128xf32>
    %267 = arith.index_cast %c5_i32 : i32 to index
    %c0_138 = arith.constant 0 : index
    %c0_139 = arith.constant 0 : index
    %268 = vector.load %arg3[%267, %c0_138, %c0_139] : memref<8x8x128xf32, #tpu.memory_space<vmem>>, vector<1x8x128xf32>
    %269 = vector.shape_cast %268 : vector<1x8x128xf32> to vector<8x128xf32>
    %270 = vector.shape_cast %266 : vector<8x128xf32> to vector<1x8x128xf32>
    tpu.vector_store %arg3[%267, %c0_138, %c0_139], %270 {strides = array<i32>} : memref<8x8x128xf32, #tpu.memory_space<vmem>>, vector<1x8x128xf32>,
    %c0_140 = arith.constant 0 : index
    %c0_141 = arith.constant 0 : index
    %271 = vector.load %arg4[%c0_140, %c0_141] : memref<8x128xf32, #tpu.memory_space<vmem>>, vector<8x128xf32>
    tpu.vector_store %arg4[%c0_140, %c0_141], %266 {strides = array<i32>} : memref<8x128xf32, #tpu.memory_space<vmem>>, vector<8x128xf32>,
    %c0_142 = arith.constant 0 : index
    %c0_143 = arith.constant 0 : index
    %272 = vector.load %arg5[%c0_142, %c0_143] : memref<8x128xf32, #tpu.memory_space<vmem>>, vector<8x128xf32>
    tpu.vector_store %arg5[%c0_142, %c0_143], %264 {strides = array<i32>} : memref<8x128xf32, #tpu.memory_space<vmem>>, vector<8x128xf32>,
    %c6_i32 = arith.constant 6 : i32
    %c0_144 = arith.constant 0 : index
    %c0_145 = arith.constant 0 : index
    %273 = vector.load %arg4[%c0_144, %c0_145] : memref<8x128xf32, #tpu.memory_space<vmem>>, vector<8x128xf32>
    %c0_146 = arith.constant 0 : index
    %c0_147 = arith.constant 0 : index
    %274 = vector.load %arg5[%c0_146, %c0_147] : memref<8x128xf32, #tpu.memory_space<vmem>>, vector<8x128xf32>
    %275 = arith.index_cast %c6_i32 : i32 to index
    %c0_148 = arith.constant 0 : index
    %c0_149 = arith.constant 0 : index
    %276 = vector.load %arg1[%275, %c0_148, %c0_149] : memref<8x8x512xf32, #tpu.memory_space<vmem>>, vector<1x8x512xf32>
    %277 = vector.shape_cast %276 : vector<1x8x512xf32> to vector<8x512xf32>
    %c0_150 = arith.constant 0 : index
    %c0_151 = arith.constant 0 : index
    %278 = vector.load %arg2[%c0_150, %c0_151] : memref<128x512xf32, #tpu.memory_space<vmem>>, vector<128x512xf32>
    %cst_152 = arith.constant dense<0.000000e+00> : vector<8x512xf32>
    %279 = tpu.matmul %273, %278, %cst_152 {dimension_numbers = #tpu.dot_dimension_numbers<[1], [0], [0], [1], [0, 0, 1, 1], [], []>} : vector<8x128xf32>, vector<128x512xf32>, vector<8x512xf32> -> vector<8x512xf32>
    %280 = arith.addf %277, %279 : vector<8x512xf32>
    %281 = vector.extract_strided_slice %280 {offsets = [0, 0], sizes = [8, 128], strides = [1, 1]} : vector<8x512xf32> to vector<8x128xf32>
    %cst_153 = arith.constant 5.000000e-01 : f32
    %282 = vector.broadcast %cst_153 : f32 to vector<8x128xf32>
    %283 = arith.mulf %282, %281 : vector<8x128xf32>
    %284 = math.tanh %283 : vector<8x128xf32>
    %cst_154 = arith.constant 5.000000e-01 : f32
    %285 = vector.broadcast %cst_154 : f32 to vector<8x128xf32>
    %286 = arith.mulf %285, %284 : vector<8x128xf32>
    %cst_155 = arith.constant 5.000000e-01 : f32
    %287 = vector.broadcast %cst_155 : f32 to vector<8x128xf32>
    %288 = arith.addf %286, %287 : vector<8x128xf32>
    %289 = vector.extract_strided_slice %280 {offsets = [0, 128], sizes = [8, 128], strides = [1, 1]} : vector<8x512xf32> to vector<8x128xf32>
    %cst_156 = arith.constant 5.000000e-01 : f32
    %290 = vector.broadcast %cst_156 : f32 to vector<8x128xf32>
    %291 = arith.mulf %290, %289 : vector<8x128xf32>
    %292 = math.tanh %291 : vector<8x128xf32>
    %cst_157 = arith.constant 5.000000e-01 : f32
    %293 = vector.broadcast %cst_157 : f32 to vector<8x128xf32>
    %294 = arith.mulf %293, %292 : vector<8x128xf32>
    %cst_158 = arith.constant 5.000000e-01 : f32
    %295 = vector.broadcast %cst_158 : f32 to vector<8x128xf32>
    %296 = arith.addf %294, %295 : vector<8x128xf32>
    %297 = vector.extract_strided_slice %280 {offsets = [0, 256], sizes = [8, 128], strides = [1, 1]} : vector<8x512xf32> to vector<8x128xf32>
    %298 = math.tanh %297 : vector<8x128xf32>
    %299 = vector.extract_strided_slice %280 {offsets = [0, 384], sizes = [8, 128], strides = [1, 1]} : vector<8x512xf32> to vector<8x128xf32>
    %cst_159 = arith.constant 5.000000e-01 : f32
    %300 = vector.broadcast %cst_159 : f32 to vector<8x128xf32>
    %301 = arith.mulf %300, %299 : vector<8x128xf32>
    %302 = math.tanh %301 : vector<8x128xf32>
    %cst_160 = arith.constant 5.000000e-01 : f32
    %303 = vector.broadcast %cst_160 : f32 to vector<8x128xf32>
    %304 = arith.mulf %303, %302 : vector<8x128xf32>
    %cst_161 = arith.constant 5.000000e-01 : f32
    %305 = vector.broadcast %cst_161 : f32 to vector<8x128xf32>
    %306 = arith.addf %304, %305 : vector<8x128xf32>
    %307 = arith.mulf %296, %274 : vector<8x128xf32>
    %308 = arith.mulf %288, %298 : vector<8x128xf32>
    %309 = arith.addf %307, %308 : vector<8x128xf32>
    %310 = math.tanh %309 : vector<8x128xf32>
    %311 = arith.mulf %306, %310 : vector<8x128xf32>
    %312 = arith.index_cast %c6_i32 : i32 to index
    %c0_162 = arith.constant 0 : index
    %c0_163 = arith.constant 0 : index
    %313 = vector.load %arg3[%312, %c0_162, %c0_163] : memref<8x8x128xf32, #tpu.memory_space<vmem>>, vector<1x8x128xf32>
    %314 = vector.shape_cast %313 : vector<1x8x128xf32> to vector<8x128xf32>
    %315 = vector.shape_cast %311 : vector<8x128xf32> to vector<1x8x128xf32>
    tpu.vector_store %arg3[%312, %c0_162, %c0_163], %315 {strides = array<i32>} : memref<8x8x128xf32, #tpu.memory_space<vmem>>, vector<1x8x128xf32>,
    %c0_164 = arith.constant 0 : index
    %c0_165 = arith.constant 0 : index
    %316 = vector.load %arg4[%c0_164, %c0_165] : memref<8x128xf32, #tpu.memory_space<vmem>>, vector<8x128xf32>
    tpu.vector_store %arg4[%c0_164, %c0_165], %311 {strides = array<i32>} : memref<8x128xf32, #tpu.memory_space<vmem>>, vector<8x128xf32>,
    %c0_166 = arith.constant 0 : index
    %c0_167 = arith.constant 0 : index
    %317 = vector.load %arg5[%c0_166, %c0_167] : memref<8x128xf32, #tpu.memory_space<vmem>>, vector<8x128xf32>
    tpu.vector_store %arg5[%c0_166, %c0_167], %309 {strides = array<i32>} : memref<8x128xf32, #tpu.memory_space<vmem>>, vector<8x128xf32>,
    %c7_i32 = arith.constant 7 : i32
    %c0_168 = arith.constant 0 : index
    %c0_169 = arith.constant 0 : index
    %318 = vector.load %arg4[%c0_168, %c0_169] : memref<8x128xf32, #tpu.memory_space<vmem>>, vector<8x128xf32>
    %c0_170 = arith.constant 0 : index
    %c0_171 = arith.constant 0 : index
    %319 = vector.load %arg5[%c0_170, %c0_171] : memref<8x128xf32, #tpu.memory_space<vmem>>, vector<8x128xf32>
    %320 = arith.index_cast %c7_i32 : i32 to index
    %c0_172 = arith.constant 0 : index
    %c0_173 = arith.constant 0 : index
    %321 = vector.load %arg1[%320, %c0_172, %c0_173] : memref<8x8x512xf32, #tpu.memory_space<vmem>>, vector<1x8x512xf32>
    %322 = vector.shape_cast %321 : vector<1x8x512xf32> to vector<8x512xf32>
    %c0_174 = arith.constant 0 : index
    %c0_175 = arith.constant 0 : index
    %323 = vector.load %arg2[%c0_174, %c0_175] : memref<128x512xf32, #tpu.memory_space<vmem>>, vector<128x512xf32>
    %cst_176 = arith.constant dense<0.000000e+00> : vector<8x512xf32>
    %324 = tpu.matmul %318, %323, %cst_176 {dimension_numbers = #tpu.dot_dimension_numbers<[1], [0], [0], [1], [0, 0, 1, 1], [], []>} : vector<8x128xf32>, vector<128x512xf32>, vector<8x512xf32> -> vector<8x512xf32>
    %325 = arith.addf %322, %324 : vector<8x512xf32>
    %326 = vector.extract_strided_slice %325 {offsets = [0, 0], sizes = [8, 128], strides = [1, 1]} : vector<8x512xf32> to vector<8x128xf32>
    %cst_177 = arith.constant 5.000000e-01 : f32
    %327 = vector.broadcast %cst_177 : f32 to vector<8x128xf32>
    %328 = arith.mulf %327, %326 : vector<8x128xf32>
    %329 = math.tanh %328 : vector<8x128xf32>
    %cst_178 = arith.constant 5.000000e-01 : f32
    %330 = vector.broadcast %cst_178 : f32 to vector<8x128xf32>
    %331 = arith.mulf %330, %329 : vector<8x128xf32>
    %cst_179 = arith.constant 5.000000e-01 : f32
    %332 = vector.broadcast %cst_179 : f32 to vector<8x128xf32>
    %333 = arith.addf %331, %332 : vector<8x128xf32>
    %334 = vector.extract_strided_slice %325 {offsets = [0, 128], sizes = [8, 128], strides = [1, 1]} : vector<8x512xf32> to vector<8x128xf32>
    %cst_180 = arith.constant 5.000000e-01 : f32
    %335 = vector.broadcast %cst_180 : f32 to vector<8x128xf32>
    %336 = arith.mulf %335, %334 : vector<8x128xf32>
    %337 = math.tanh %336 : vector<8x128xf32>
    %cst_181 = arith.constant 5.000000e-01 : f32
    %338 = vector.broadcast %cst_181 : f32 to vector<8x128xf32>
    %339 = arith.mulf %338, %337 : vector<8x128xf32>
    %cst_182 = arith.constant 5.000000e-01 : f32
    %340 = vector.broadcast %cst_182 : f32 to vector<8x128xf32>
    %341 = arith.addf %339, %340 : vector<8x128xf32>
    %342 = vector.extract_strided_slice %325 {offsets = [0, 256], sizes = [8, 128], strides = [1, 1]} : vector<8x512xf32> to vector<8x128xf32>
    %343 = math.tanh %342 : vector<8x128xf32>
    %344 = vector.extract_strided_slice %325 {offsets = [0, 384], sizes = [8, 128], strides = [1, 1]} : vector<8x512xf32> to vector<8x128xf32>
    %cst_183 = arith.constant 5.000000e-01 : f32
    %345 = vector.broadcast %cst_183 : f32 to vector<8x128xf32>
    %346 = arith.mulf %345, %344 : vector<8x128xf32>
    %347 = math.tanh %346 : vector<8x128xf32>
    %cst_184 = arith.constant 5.000000e-01 : f32
    %348 = vector.broadcast %cst_184 : f32 to vector<8x128xf32>
    %349 = arith.mulf %348, %347 : vector<8x128xf32>
    %cst_185 = arith.constant 5.000000e-01 : f32
    %350 = vector.broadcast %cst_185 : f32 to vector<8x128xf32>
    %351 = arith.addf %349, %350 : vector<8x128xf32>
    %352 = arith.mulf %341, %319 : vector<8x128xf32>
    %353 = arith.mulf %333, %343 : vector<8x128xf32>
    %354 = arith.addf %352, %353 : vector<8x128xf32>
    %355 = math.tanh %354 : vector<8x128xf32>
    %356 = arith.mulf %351, %355 : vector<8x128xf32>
    %357 = arith.index_cast %c7_i32 : i32 to index
    %c0_186 = arith.constant 0 : index
    %c0_187 = arith.constant 0 : index
    %358 = vector.load %arg3[%357, %c0_186, %c0_187] : memref<8x8x128xf32, #tpu.memory_space<vmem>>, vector<1x8x128xf32>
    %359 = vector.shape_cast %358 : vector<1x8x128xf32> to vector<8x128xf32>
    %360 = vector.shape_cast %356 : vector<8x128xf32> to vector<1x8x128xf32>
    tpu.vector_store %arg3[%357, %c0_186, %c0_187], %360 {strides = array<i32>} : memref<8x8x128xf32, #tpu.memory_space<vmem>>, vector<1x8x128xf32>,
    %c0_188 = arith.constant 0 : index
    %c0_189 = arith.constant 0 : index
    %361 = vector.load %arg4[%c0_188, %c0_189] : memref<8x128xf32, #tpu.memory_space<vmem>>, vector<8x128xf32>
    tpu.vector_store %arg4[%c0_188, %c0_189], %356 {strides = array<i32>} : memref<8x128xf32, #tpu.memory_space<vmem>>, vector<8x128xf32>,
    %c0_190 = arith.constant 0 : index
    %c0_191 = arith.constant 0 : index
    %362 = vector.load %arg5[%c0_190, %c0_191] : memref<8x128xf32, #tpu.memory_space<vmem>>, vector<8x128xf32>
    tpu.vector_store %arg5[%c0_190, %c0_191], %354 {strides = array<i32>} : memref<8x128xf32, #tpu.memory_space<vmem>>, vector<8x128xf32>,
    %c8_i32 = arith.constant 8 : i32
    return
  }
  func.func @transform_0(%arg0: i32) -> (i32, i32, i32) {
    %c0_i32 = arith.constant 0 : i32
    %c0_i32_0 = arith.constant 0 : i32
    %c0_i32_1 = arith.constant 0 : i32
    return %arg0, %c0_i32, %c0_i32_0 : i32, i32, i32
  }
  func.func @transform_1(%arg0: i32) -> (i32, i32) {
    %c0_i32 = arith.constant 0 : i32
    %c0_i32_0 = arith.constant 0 : i32
    %c0_i32_1 = arith.constant 0 : i32
    return %c0_i32, %c0_i32_0 : i32, i32
  }
  func.func @transform_2(%arg0: i32) -> (i32, i32, i32) {
    %c0_i32 = arith.constant 0 : i32
    %c0_i32_0 = arith.constant 0 : i32
    %c0_i32_1 = arith.constant 0 : i32
    return %arg0, %c0_i32, %c0_i32_0 : i32, i32, i32
  }
}

module attributes {stable_mosaic.version = 11 : i64} {
  func.func @matmul_bias_kernel(%arg0: i32, %arg1: i32, %arg2: memref<64x128xf32, #tpu.memory_space<vmem>>, %arg3: memref<128x128xf32, #tpu.memory_space<vmem>>, %arg4: memref<1x128xf32, #tpu.memory_space<vmem>>, %arg5: memref<64x128xf32, #tpu.memory_space<vmem>>) attributes {dimension_semantics = [#tpu.dimension_semantics<parallel>, #tpu.dimension_semantics<parallel>], iteration_bounds = array<i64: 1, 1>, scalar_prefetch = 0 : i64, scratch_operands = 0 : i64, tpu.core_type = #tpu.core_type<tc>, window_params = [{transform_indices = @transform_0, window_bounds = array<i64: 64, 128>}, {transform_indices = @transform_1, window_bounds = array<i64: 128, 128>}, {transform_indices = @transform_2, window_bounds = array<i64: 1, 128>}, {transform_indices = @transform_3, window_bounds = array<i64: 64, 128>}]} {
    %c0 = arith.constant 0 : index
    %c0_0 = arith.constant 0 : index
    %0 = vector.load %arg2[%c0, %c0_0] : memref<64x128xf32, #tpu.memory_space<vmem>>, vector<64x128xf32>
    %c0_1 = arith.constant 0 : index
    %c0_2 = arith.constant 0 : index
    %1 = vector.load %arg3[%c0_1, %c0_2] : memref<128x128xf32, #tpu.memory_space<vmem>>, vector<128x128xf32>
    %cst = arith.constant dense<0.000000e+00> : vector<64x128xf32>
    %2 = tpu.matmul %0, %1, %cst {dimension_numbers = #tpu.dot_dimension_numbers<[1], [0], [0], [1], [0, 0, 1, 1], [], []>} : vector<64x128xf32>, vector<128x128xf32>, vector<64x128xf32> -> vector<64x128xf32>
    %c0_3 = arith.constant 0 : index
    %c0_4 = arith.constant 0 : index
    %3 = vector.load %arg4[%c0_3, %c0_4] : memref<1x128xf32, #tpu.memory_space<vmem>>, vector<1x128xf32>
    %4 = vector.broadcast %3 : vector<1x128xf32> to vector<64x128xf32>
    %5 = arith.addf %2, %4 : vector<64x128xf32>
    %c0_5 = arith.constant 0 : index
    %c0_6 = arith.constant 0 : index
    %6 = vector.load %arg5[%c0_5, %c0_6] : memref<64x128xf32, #tpu.memory_space<vmem>>, vector<64x128xf32>
    tpu.vector_store %arg5[%c0_5, %c0_6], %5 {strides = array<i32>} : memref<64x128xf32, #tpu.memory_space<vmem>>, vector<64x128xf32>,
    return
  }
  func.func @transform_0(%arg0: i32, %arg1: i32) -> (i32, i32) {
    %c0_i32 = arith.constant 0 : i32
    %c0_i32_0 = arith.constant 0 : i32
    return %arg1, %c0_i32 : i32, i32
  }
  func.func @transform_1(%arg0: i32, %arg1: i32) -> (i32, i32) {
    %c0_i32 = arith.constant 0 : i32
    %c0_i32_0 = arith.constant 0 : i32
    return %c0_i32, %arg0 : i32, i32
  }
  func.func @transform_2(%arg0: i32, %arg1: i32) -> (i32, i32) {
    %c0_i32 = arith.constant 0 : i32
    %c0_i32_0 = arith.constant 0 : i32
    return %c0_i32, %arg0 : i32, i32
  }
  func.func @transform_3(%arg0: i32, %arg1: i32) -> (i32, i32) {
    %c0_i32 = arith.constant 0 : i32
    return %arg1, %arg0 : i32, i32
  }
}

</mosaic_0001>

<llo_original>
// kernel: decoder_rnn_forward.3
$region0: #{decoder_rnn_forward.3}
  #allocation0 [shape = 'u32[]', space=smem, size = 0x4, offset = 0x4, fixed_abs, tag = 'smem constant byte address 0x4 - core index']
  #allocation1 [shape = 'u32[144,128]{1,0:T(1,128)}', space=vmem, size = 0x12000, scoped, tag = 'internal scratch']
  %s0 = inlined_call_operand.vmem [shape: f32[64,128], index: 0, kind: input, shape index: {}]
  %s1 = inlined_call_operand.vmem [shape: f32[128,128], index: 1, kind: input, shape index: {}]
  %s2 = inlined_call_operand.vmem [shape: f32[1,128], index: 2, kind: input, shape index: {}]
  %s3 = inlined_call_operand.vmem [shape: f32[64,128], index: 3, kind: output, shape index: {}]
  %s4 = sld [smem:[#allocation0]]
  $region22: #{decoder_rnn_forward.3} parent=0
    _
  %s6 = ssub.s32 1, %s4
  %s7 = scalar_select 0, %s6, %s4
  // Predicated region
  $region2: #{decoder_rnn_forward.3} parent=0 // pred_check
    _
  $region3: #{decoder_rnn_forward.3} parent=0 // pred_check_branch
    %9 = sbr.rel (0) target = $region5
  $region4: #{decoder_rnn_forward.3} parent=0 // pred_region
    _
  $region5: #{decoder_rnn_forward.3} parent=0 // pred_fallthru
    _
  // Predicated region
  $region6: #{decoder_rnn_forward.3} parent=0 // pred_check
    _
  $region7: #{decoder_rnn_forward.3} parent=0 // pred_check_branch
    %11 = sbr.rel (0) target = $region9
  $region8: #{decoder_rnn_forward.3} parent=0 // pred_region
    _
  $region9: #{decoder_rnn_forward.3} parent=0 // pred_fallthru
    _
  // Predicated region
  $region10: #{decoder_rnn_forward.3} parent=0 // pred_check
    _
  $region11: #{decoder_rnn_forward.3} parent=0 // pred_check_branch
    %13 = sbr.rel (0) target = $region13
  $region12: #{decoder_rnn_forward.3} parent=0 // pred_region
    _
  $region13: #{decoder_rnn_forward.3} parent=0 // pred_fallthru
    _
  %v14 = vld [vmem:[%s0] sm:$0xff]
  %v15 = vld [vmem:[%s0 + $0x8] sm:$0xff]
  %v16 = vld [vmem:[%s0 + $0x10] sm:$0xff]
  %v17 = vld [vmem:[%s0 + $0x18] sm:$0xff]
  %v18 = vld [vmem:[%s0 + $0x20] sm:$0xff]
  %v19 = vld [vmem:[%s0 + $0x28] sm:$0xff]
  %v20 = vld [vmem:[%s0 + $0x30] sm:$0xff]
  %v21 = vld [vmem:[%s0 + $0x38] sm:$0xff]
  %v22 = vld [vmem:[%s1] sm:$0xff]
  %v23 = vld [vmem:[%s1 + $0x8] sm:$0xff]
  %v24 = vld [vmem:[%s1 + $0x10] sm:$0xff]
  %v25 = vld [vmem:[%s1 + $0x18] sm:$0xff]
  %v26 = vld [vmem:[%s1 + $0x20] sm:$0xff]
  %v27 = vld [vmem:[%s1 + $0x28] sm:$0xff]
  %v28 = vld [vmem:[%s1 + $0x30] sm:$0xff]
  %v29 = vld [vmem:[%s1 + $0x38] sm:$0xff]
  %v30 = vld [vmem:[%s1 + $0x40] sm:$0xff]
  %v31 = vld [vmem:[%s1 + $0x48] sm:$0xff]
  %v32 = vld [vmem:[%s1 + $0x50] sm:$0xff]
  %v33 = vld [vmem:[%s1 + $0x58] sm:$0xff]
  %v34 = vld [vmem:[%s1 + $0x60] sm:$0xff]
  %v35 = vld [vmem:[%s1 + $0x68] sm:$0xff]
  %v36 = vld [vmem:[%s1 + $0x70] sm:$0xff]
  %v37 = vld [vmem:[%s1 + $0x78] sm:$0xff]
  %v38 = vld [vmem:[%s2] sm:$0x1]
  %v40 = vlaneseq
  %v41 = vshrl.u32 %v40, 7
  %v42 = vsub.s32 0, %v41
  %v43 = vrot.slane %v38, %v42
  %45 = vmatprep.subr.mxu0 0.0
  %46 = vmatpush1.msra.mxu0 %v37
  %47 = vmatprep.subr.mxu0 0.0
  %48 = vmatpush1.msra.mxu0 %v36
  %49 = vmatprep.subr.mxu0 0.0
  %50 = vmatpush1.msra.mxu0 %v35
  %51 = vmatprep.subr.mxu0 0.0
  %52 = vmatpush1.msra.mxu0 %v34
  %53 = vmatprep.subr.mxu0 0.0
  %54 = vmatpush1.msra.mxu0 %v33
  %55 = vmatprep.subr.mxu0 0.0
  %56 = vmatpush1.msra.mxu0 %v32
  %57 = vmatprep.subr.mxu0 0.0
  %58 = vmatpush1.msra.mxu0 %v31
  %59 = vmatprep.subr.mxu0 0.0
  %60 = vmatpush1.msra.mxu0 %v30
  %61 = vmatprep.subr.mxu0 0.0
  %62 = vmatpush1.msra.mxu0 %v29
  %63 = vmatprep.subr.mxu0 0.0
  %64 = vmatpush1.msra.mxu0 %v28
  %65 = vmatprep.subr.mxu0 0.0
  %66 = vmatpush1.msra.mxu0 %v27
  %67 = vmatprep.subr.mxu0 0.0
  %68 = vmatpush1.msra.mxu0 %v26
  %69 = vmatprep.subr.mxu0 0.0
  %70 = vmatpush1.msra.mxu0 %v25
  %71 = vmatprep.subr.mxu0 0.0
  %72 = vmatpush1.msra.mxu0 %v24
  %73 = vmatprep.subr.mxu0 0.0
  %74 = vmatpush1.msra.mxu0 %v23
  %75 = vmatprep.subr.mxu0 0.0
  %76 = vmatpush1.msra.mxu0 %v22
  %77 = vmatprep.subr.mxu0 0.0
  %78 = vmatpush2.msra.mxu0 0.0
  %79 = vmatprep.subr.mxu0 0.0
  %80 = vmatpush2.msra.mxu0 0.0
  %81 = vmatprep.subr.mxu0 0.0
  %82 = vmatpush2.msra.mxu0 0.0
  %83 = vmatprep.subr.mxu0 0.0
  %84 = vmatpush2.msra.mxu0 0.0
  %85 = vmatprep.subr.mxu0 0.0
  %86 = vmatpush2.msra.mxu0 0.0
  %87 = vmatprep.subr.mxu0 0.0
  %88 = vmatpush2.msra.mxu0 0.0
  %89 = vmatprep.subr.mxu0 0.0
  %90 = vmatpush2.msra.mxu0 0.0
  %91 = vmatprep.subr.mxu0 0.0
  %92 = vmatpush2.msra.mxu0 0.0
  %93 = vmatprep.subr.mxu0 0.0
  %94 = vmatpush2.msra.mxu0 0.0
  %95 = vmatprep.subr.mxu0 0.0
  %96 = vmatpush2.msra.mxu0 0.0
  %97 = vmatprep.subr.mxu0 0.0
  %98 = vmatpush2.msra.mxu0 0.0
  %99 = vmatprep.subr.mxu0 0.0
  %100 = vmatpush2.msra.mxu0 0.0
  %101 = vmatprep.subr.mxu0 0.0
  %102 = vmatpush2.msra.mxu0 0.0
  %103 = vmatprep.subr.mxu0 0.0
  %104 = vmatpush2.msra.mxu0 0.0
  %105 = vmatprep.subr.mxu0 0.0
  %106 = vmatpush2.msra.mxu0 0.0
  %107 = vmatprep.subr.mxu0 0.0
  %108 = vmatpush2.msra.mxu0 0.0
  %109 = vmatprep.mubr.f32.mxu0 0.0
  %110 = vmatmul.mubr.f32.gmra.mxu0 %v14
  %v111 = vpop.f32.mrf.mxu0
  %v112 = vadd.f32 %v43, %v111
  %v113 = vpop.f32.mrf.mxu0
  %114 = vmatprep.mubr.f32.mxu0 0.0
  %115 = vmatmul.mubr.f32.gmra.mxu0 %v15
  %v116 = vpop.f32.mrf.mxu0
  %v117 = vadd.f32 %v43, %v116
  %v118 = vpop.f32.mrf.mxu0
  %119 = vmatprep.mubr.f32.mxu0 0.0
  %120 = vmatmul.mubr.f32.gmra.mxu0 %v16
  %v121 = vpop.f32.mrf.mxu0
  %v122 = vadd.f32 %v43, %v121
  %v123 = vpop.f32.mrf.mxu0
  %124 = vmatprep.mubr.f32.mxu0 0.0
  %125 = vmatmul.mubr.f32.gmra.mxu0 %v17
  %v126 = vpop.f32.mrf.mxu0
  %v127 = vadd.f32 %v43, %v126
  %v128 = vpop.f32.mrf.mxu0
  %129 = vmatprep.mubr.f32.mxu0 0.0
  %130 = vmatmul.mubr.f32.gmra.mxu0 %v18
  %v131 = vpop.f32.mrf.mxu0
  %v132 = vadd.f32 %v43, %v131
  %v133 = vpop.f32.mrf.mxu0
  %134 = vmatprep.mubr.f32.mxu0 0.0
  %135 = vmatmul.mubr.f32.gmra.mxu0 %v19
  %v136 = vpop.f32.mrf.mxu0
  %v137 = vadd.f32 %v43, %v136
  %v138 = vpop.f32.mrf.mxu0
  %139 = vmatprep.mubr.f32.mxu0 0.0
  %140 = vmatmul.mubr.f32.gmra.mxu0 %v20
  %v141 = vpop.f32.mrf.mxu0
  %v142 = vadd.f32 %v43, %v141
  %v143 = vpop.f32.mrf.mxu0
  %144 = vmatprep.mubr.f32.mxu0 0.0
  %145 = vmatmul.mubr.f32.gmra.mxu0 %v21
  %v146 = vpop.f32.mrf.mxu0
  %v147 = vadd.f32 %v43, %v146
  %v148 = vpop.f32.mrf.mxu0
  %149 = vdwg.mxu0
  %150 = vst [vmem:[%s3] sm:$0xff] %v112
  %151 = vst [vmem:[%s3 + $0x8] sm:$0xff] %v117
  %152 = vst [vmem:[%s3 + $0x10] sm:$0xff] %v122
  %153 = vst [vmem:[%s3 + $0x18] sm:$0xff] %v127
  %154 = vst [vmem:[%s3 + $0x20] sm:$0xff] %v132
  %155 = vst [vmem:[%s3 + $0x28] sm:$0xff] %v137
  %156 = vst [vmem:[%s3 + $0x30] sm:$0xff] %v142
  %157 = vst [vmem:[%s3 + $0x38] sm:$0xff] %v147
  // Predicated region
  $region14: #{decoder_rnn_forward.3} parent=0 // pred_check
    _
  $region15: #{decoder_rnn_forward.3} parent=0 // pred_check_branch
    %159 = sbr.rel (0) target = $region17
  $region16: #{decoder_rnn_forward.3} parent=0 // pred_region
    _
  $region17: #{decoder_rnn_forward.3} parent=0 // pred_fallthru
    _
  // Predicated region
  $region18: #{decoder_rnn_forward.3} parent=0 // pred_check
    _
  $region19: #{decoder_rnn_forward.3} parent=0 // pred_check_branch
    %161 = sbr.rel (0) target = $region21
  $region20: #{decoder_rnn_forward.3} parent=0 // pred_region
    _
  $region21: #{decoder_rnn_forward.3} parent=0 // pred_fallthru
    _

// kernel: decoder_rnn_forward.2
$region0: #{decoder_rnn_forward.2}
  #allocation0 [shape = 'u32[]', space=smem, size = 0x4, offset = 0x4, fixed_abs, tag = 'smem constant byte address 0x4 - core index']
  #allocation1 [shape = 'u32[144,128]{1,0:T(1,128)}', space=vmem, size = 0x12000, scoped, tag = 'internal scratch']
  #allocation2 [shape = 'f32[8,128]{1,0:T(8,128)}', space=vmem, size = 0x1000, scoped, tag = 'scratch operand']
  #allocation3 [shape = 'f32[8,128]{1,0:T(8,128)}', space=vmem, size = 0x1000, scoped, tag = 'scratch operand']
  %s0 = inlined_call_operand.vmem [shape: f32[8,8,512], index: 0, kind: input, shape index: {}]
  %s1 = inlined_call_operand.vmem [shape: f32[128,512], index: 1, kind: input, shape index: {}]
  %s2 = inlined_call_operand.vmem [shape: f32[8,8,128], index: 2, kind: output, shape index: {}]
  %s3 = sld [smem:[#allocation0]]
  $region22: #{decoder_rnn_forward.2} parent=0
    _
  %s5 = ssub.s32 1, %s3
  %s6 = scalar_select 0, %s5, %s3
  // Predicated region
  $region2: #{decoder_rnn_forward.2} parent=0 // pred_check
    _
  $region3: #{decoder_rnn_forward.2} parent=0 // pred_check_branch
    %8 = sbr.rel (0) target = $region5
  $region4: #{decoder_rnn_forward.2} parent=0 // pred_region
    _
  $region5: #{decoder_rnn_forward.2} parent=0 // pred_fallthru
    _
  // Predicated region
  $region6: #{decoder_rnn_forward.2} parent=0 // pred_check
    _
  $region7: #{decoder_rnn_forward.2} parent=0 // pred_check_branch
    %10 = sbr.rel (0) target = $region9
  $region8: #{decoder_rnn_forward.2} parent=0 // pred_region
    _
  $region9: #{decoder_rnn_forward.2} parent=0 // pred_fallthru
    _
  %p11 = scmp.eq.s32.totalorder 0, 0
  // Predicated region
  $region10: #{decoder_rnn_forward.2} parent=0 // pred_check
    %p12 = pneg %p11
  $region11: #{decoder_rnn_forward.2} parent=0 // pred_check_branch
    %14 = sbr.rel (%p12) target = $region13
  $region12: #{decoder_rnn_forward.2} parent=0 // pred_region
    %15 = vst [vmem:[#allocation2] sm:$0xff] 0.0
    %16 = vst [vmem:[#allocation3] sm:$0xff] 0.0
  $region13: #{decoder_rnn_forward.2} parent=0 // pred_fallthru
    _
  %v17 = vld [vmem:[#allocation2] sm:$0xff]
  %v18 = vld [vmem:[#allocation3] sm:$0xff]
  %v19 = vld [vmem:[%s0] sm:$0xff]
  %v20 = vld [vmem:[%s0 + $0x8] sm:$0xff]
  %v21 = vld [vmem:[%s0 + $0x10] sm:$0xff]
  %v22 = vld [vmem:[%s0 + $0x18] sm:$0xff]
  %v23 = vld [vmem:[%s1] sm:$0xff]
  %v24 = vld [vmem:[%s1 + $0x8] sm:$0xff]
  %v25 = vld [vmem:[%s1 + $0x10] sm:$0xff]
  %v26 = vld [vmem:[%s1 + $0x18] sm:$0xff]
  %v27 = vld [vmem:[%s1 + $0x20] sm:$0xff]
  %v28 = vld [vmem:[%s1 + $0x28] sm:$0xff]
  %v29 = vld [vmem:[%s1 + $0x30] sm:$0xff]
  %v30 = vld [vmem:[%s1 + $0x38] sm:$0xff]
  %v31 = vld [vmem:[%s1 + $0x40] sm:$0xff]
  %v32 = vld [vmem:[%s1 + $0x48] sm:$0xff]
  %v33 = vld [vmem:[%s1 + $0x50] sm:$0xff]
  %v34 = vld [vmem:[%s1 + $0x58] sm:$0xff]
  %v35 = vld [vmem:[%s1 + $0x60] sm:$0xff]
  %v36 = vld [vmem:[%s1 + $0x68] sm:$0xff]
  %v37 = vld [vmem:[%s1 + $0x70] sm:$0xff]
  %v38 = vld [vmem:[%s1 + $0x78] sm:$0xff]
  %v39 = vld [vmem:[%s1 + $0x80] sm:$0xff]
  %v40 = vld [vmem:[%s1 + $0x88] sm:$0xff]
  %v41 = vld [vmem:[%s1 + $0x90] sm:$0xff]
  %v42 = vld [vmem:[%s1 + $0x98] sm:$0xff]
  %v43 = vld [vmem:[%s1 + $0xa0] sm:$0xff]
  %v44 = vld [vmem:[%s1 + $0xa8] sm:$0xff]
  %v45 = vld [vmem:[%s1 + $0xb0] sm:$0xff]
  %v46 = vld [vmem:[%s1 + $0xb8] sm:$0xff]
  %v47 = vld [vmem:[%s1 + $0xc0] sm:$0xff]
  %v48 = vld [vmem:[%s1 + $0xc8] sm:$0xff]
  %v49 = vld [vmem:[%s1 + $0xd0] sm:$0xff]
  %v50 = vld [vmem:[%s1 + $0xd8] sm:$0xff]
  %v51 = vld [vmem:[%s1 + $0xe0] sm:$0xff]
  %v52 = vld [vmem:[%s1 + $0xe8] sm:$0xff]
  %v53 = vld [vmem:[%s1 + $0xf0] sm:$0xff]
  %v54 = vld [vmem:[%s1 + $0xf8] sm:$0xff]
  %v55 = vld [vmem:[%s1 + $0x100] sm:$0xff]
  %v56 = vld [vmem:[%s1 + $0x108] sm:$0xff]
  %v57 = vld [vmem:[%s1 + $0x110] sm:$0xff]
  %v58 = vld [vmem:[%s1 + $0x118] sm:$0xff]
  %v59 = vld [vmem:[%s1 + $0x120] sm:$0xff]
  %v60 = vld [vmem:[%s1 + $0x128] sm:$0xff]
  %v61 = vld [vmem:[%s1 + $0x130] sm:$0xff]
  %v62 = vld [vmem:[%s1 + $0x138] sm:$0xff]
  %v63 = vld [vmem:[%s1 + $0x140] sm:$0xff]
  %v64 = vld [vmem:[%s1 + $0x148] sm:$0xff]
  %v65 = vld [vmem:[%s1 + $0x150] sm:$0xff]
  %v66 = vld [vmem:[%s1 + $0x158] sm:$0xff]
  %v67 = vld [vmem:[%s1 + $0x160] sm:$0xff]
  %v68 = vld [vmem:[%s1 + $0x168] sm:$0xff]
  %v69 = vld [vmem:[%s1 + $0x170] sm:$0xff]
  %v70 = vld [vmem:[%s1 + $0x178] sm:$0xff]
  %v71 = vld [vmem:[%s1 + $0x180] sm:$0xff]
  %v72 = vld [vmem:[%s1 + $0x188] sm:$0xff]
  %v73 = vld [vmem:[%s1 + $0x190] sm:$0xff]
  %v74 = vld [vmem:[%s1 + $0x198] sm:$0xff]
  %v75 = vld [vmem:[%s1 + $0x1a0] sm:$0xff]
  %v76 = vld [vmem:[%s1 + $0x1a8] sm:$0xff]
  %v77 = vld [vmem:[%s1 + $0x1b0] sm:$0xff]
  %v78 = vld [vmem:[%s1 + $0x1b8] sm:$0xff]
  %v79 = vld [vmem:[%s1 + $0x1c0] sm:$0xff]
  %v80 = vld [vmem:[%s1 + $0x1c8] sm:$0xff]
  %v81 = vld [vmem:[%s1 + $0x1d0] sm:$0xff]
  %v82 = vld [vmem:[%s1 + $0x1d8] sm:$0xff]
  %v83 = vld [vmem:[%s1 + $0x1e0] sm:$0xff]
  %v84 = vld [vmem:[%s1 + $0x1e8] sm:$0xff]
  %v85 = vld [vmem:[%s1 + $0x1f0] sm:$0xff]
  %v86 = vld [vmem:[%s1 + $0x1f8] sm:$0xff]
  %87 = vmatprep.subr.mxu0 %v84
  %88 = vmatpush1.msra.mxu0 %v83
  %89 = vmatprep.subr.mxu0 %v80
  %90 = vmatpush1.msra.mxu0 %v79
  %91 = vmatprep.subr.mxu0 %v76
  %92 = vmatpush1.msra.mxu0 %v75
  %93 = vmatprep.subr.mxu0 %v72
  %94 = vmatpush1.msra.mxu0 %v71
  %95 = vmatprep.subr.mxu0 %v68
  %96 = vmatpush1.msra.mxu0 %v67
  %97 = vmatprep.subr.mxu0 %v64
  %98 = vmatpush1.msra.mxu0 %v63
  %99 = vmatprep.subr.mxu0 %v60
  %100 = vmatpush1.msra.mxu0 %v59
  %101 = vmatprep.subr.mxu0 %v56
  %102 = vmatpush1.msra.mxu0 %v55
  %103 = vmatprep.subr.mxu0 %v52
  %104 = vmatpush1.msra.mxu0 %v51
  %105 = vmatprep.subr.mxu0 %v48
  %106 = vmatpush1.msra.mxu0 %v47
  %107 = vmatprep.subr.mxu0 %v44
  %108 = vmatpush1.msra.mxu0 %v43
  %109 = vmatprep.subr.mxu0 %v40
  %110 = vmatpush1.msra.mxu0 %v39
  %111 = vmatprep.subr.mxu0 %v36
  %112 = vmatpush1.msra.mxu0 %v35
  %113 = vmatprep.subr.mxu0 %v32
  %114 = vmatpush1.msra.mxu0 %v31
  %115 = vmatprep.subr.mxu0 %v28
  %116 = vmatpush1.msra.mxu0 %v27
  %117 = vmatprep.subr.mxu0 %v24
  %118 = vmatpush1.msra.mxu0 %v23
  %119 = vmatprep.subr.mxu0 0.0
  %120 = vmatpush2.msra.mxu0 0.0
  %121 = vmatprep.subr.mxu0 0.0
  %122 = vmatpush2.msra.mxu0 0.0
  %123 = vmatprep.subr.mxu0 0.0
  %124 = vmatpush2.msra.mxu0 0.0
  %125 = vmatprep.subr.mxu0 0.0
  %126 = vmatpush2.msra.mxu0 0.0
  %127 = vmatprep.subr.mxu0 0.0
  %128 = vmatpush2.msra.mxu0 0.0
  %129 = vmatprep.subr.mxu0 0.0
  %130 = vmatpush2.msra.mxu0 0.0
  %131 = vmatprep.subr.mxu0 0.0
  %132 = vmatpush2.msra.mxu0 0.0
  %133 = vmatprep.subr.mxu0 0.0
  %134 = vmatpush2.msra.mxu0 0.0
  %135 = vmatprep.subr.mxu0 0.0
  %136 = vmatpush2.msra.mxu0 0.0
  %137 = vmatprep.subr.mxu0 0.0
  %138 = vmatpush2.msra.mxu0 0.0
  %139 = vmatprep.subr.mxu0 0.0
  %140 = vmatpush2.msra.mxu0 0.0
  %141 = vmatprep.subr.mxu0 0.0
  %142 = vmatpush2.msra.mxu0 0.0
  %143 = vmatprep.subr.mxu0 0.0
  %144 = vmatpush2.msra.mxu0 0.0
  %145 = vmatprep.subr.mxu0 0.0
  %146 = vmatpush2.msra.mxu0 0.0
  %147 = vmatprep.subr.mxu0 0.0
  %148 = vmatpush2.msra.mxu0 0.0
  %149 = vmatprep.subr.mxu0 0.0
  %150 = vmatpush2.msra.mxu0 0.0
  %151 = vmatprep.mubr.f32.mxu0 0.0
  %152 = vmatmul.mubr.f32.gmra.mxu0 %v17
  %v153 = vpop.f32.mrf.mxu0
  %v154 = vadd.f32 0.0, %v153
  %v155 = vpop.f32.mrf.mxu0
  %v156 = vadd.f32 0.0, %v155
  %157 = vdwg.mxu0
  %158 = vmatprep.subr.mxu0 %v86
  %159 = vmatpush1.msra.mxu0 %v85
  %160 = vmatprep.subr.mxu0 %v82
  %161 = vmatpush1.msra.mxu0 %v81
  %162 = vmatprep.subr.mxu0 %v78
  %163 = vmatpush1.msra.mxu0 %v77
  %164 = vmatprep.subr.mxu0 %v74
  %165 = vmatpush1.msra.mxu0 %v73
  %166 = vmatprep.subr.mxu0 %v70
  %167 = vmatpush1.msra.mxu0 %v69
  %168 = vmatprep.subr.mxu0 %v66
  %169 = vmatpush1.msra.mxu0 %v65
  %170 = vmatprep.subr.mxu0 %v62
  %171 = vmatpush1.msra.mxu0 %v61
  %172 = vmatprep.subr.mxu0 %v58
  %173 = vmatpush1.msra.mxu0 %v57
  %174 = vmatprep.subr.mxu0 %v54
  %175 = vmatpush1.msra.mxu0 %v53
  %176 = vmatprep.subr.mxu0 %v50
  %177 = vmatpush1.msra.mxu0 %v49
  %178 = vmatprep.subr.mxu0 %v46
  %179 = vmatpush1.msra.mxu0 %v45
  %180 = vmatprep.subr.mxu0 %v42
  %181 = vmatpush1.msra.mxu0 %v41
  %182 = vmatprep.subr.mxu0 %v38
  %183 = vmatpush1.msra.mxu0 %v37
  %184 = vmatprep.subr.mxu0 %v34
  %185 = vmatpush1.msra.mxu0 %v33
  %186 = vmatprep.subr.mxu0 %v30
  %187 = vmatpush1.msra.mxu0 %v29
  %188 = vmatprep.subr.mxu0 %v26
  %189 = vmatpush1.msra.mxu0 %v25
  %190 = vmatprep.subr.mxu0 0.0
  %191 = vmatpush2.msra.mxu0 0.0
  %192 = vmatprep.subr.mxu0 0.0
  %193 = vmatpush2.msra.mxu0 0.0
  %194 = vmatprep.subr.mxu0 0.0
  %195 = vmatpush2.msra.mxu0 0.0
  %196 = vmatprep.subr.mxu0 0.0
  %197 = vmatpush2.msra.mxu0 0.0
  %198 = vmatprep.subr.mxu0 0.0
  %199 = vmatpush2.msra.mxu0 0.0
  %200 = vmatprep.subr.mxu0 0.0
  %201 = vmatpush2.msra.mxu0 0.0
  %202 = vmatprep.subr.mxu0 0.0
  %203 = vmatpush2.msra.mxu0 0.0
  %204 = vmatprep.subr.mxu0 0.0
  %205 = vmatpush2.msra.mxu0 0.0
  %206 = vmatprep.subr.mxu0 0.0
  %207 = vmatpush2.msra.mxu0 0.0
  %208 = vmatprep.subr.mxu0 0.0
  %209 = vmatpush2.msra.mxu0 0.0
  %210 = vmatprep.subr.mxu0 0.0
  %211 = vmatpush2.msra.mxu0 0.0
  %212 = vmatprep.subr.mxu0 0.0
  %213 = vmatpush2.msra.mxu0 0.0
  %214 = vmatprep.subr.mxu0 0.0
  %215 = vmatpush2.msra.mxu0 0.0
  %216 = vmatprep.subr.mxu0 0.0
  %217 = vmatpush2.msra.mxu0 0.0
  %218 = vmatprep.subr.mxu0 0.0
  %219 = vmatpush2.msra.mxu0 0.0
  %220 = vmatprep.subr.mxu0 0.0
  %221 = vmatpush2.msra.mxu0 0.0
  %222 = vmatprep.mubr.f32.mxu0 0.0
  %223 = vmatmul.mubr.f32.gmra.mxu0 %v17
  %v224 = vpop.f32.mrf.mxu0
  %v225 = vadd.f32 0.0, %v224
  %v226 = vpop.f32.mrf.mxu0
  %v227 = vadd.f32 0.0, %v226
  %228 = vdwg.mxu0
  %v229 = vadd.f32 %v19, %v154
  %v230 = vadd.f32 %v20, %v156
  %v231 = vadd.f32 %v21, %v225
  %v232 = vadd.f32 %v22, %v227
  %v233 = vmul.f32 %v229, 0.5
  %v234 = vtanh.pop %v233
  %v235 = vmul.f32 %v234, 0.5
  %v236 = vadd.f32 %v235, 0.5
  %v237 = vmul.f32 %v230, 0.5
  %v238 = vtanh.pop %v237
  %v239 = vmul.f32 %v238, 0.5
  %v240 = vadd.f32 %v239, 0.5
  %v241 = vtanh.pop %v231
  %v242 = vmul.f32 %v232, 0.5
  %v243 = vtanh.pop %v242
  %v244 = vmul.f32 %v243, 0.5
  %v245 = vadd.f32 %v244, 0.5
  %v246 = vmul.f32 %v240, %v18
  %v247 = vmul.f32 %v236, %v241
  %v248 = vadd.f32 %v246, %v247
  %v249 = vtanh.pop %v248
  %v250 = vmul.f32 %v245, %v249
  %251 = vst [vmem:[%s2] sm:$0xff] %v250
  %252 = vst [vmem:[#allocation2] sm:$0xff] %v250
  %253 = vst [vmem:[#allocation3] sm:$0xff] %v248
  %v254 = vld [vmem:[#allocation2] sm:$0xff]
  %v255 = vld [vmem:[#allocation3] sm:$0xff]
  %s256 = scalar_lea.vmem %s0, 32
  %v257 = vld [vmem:[%s256] sm:$0xff]
  %v258 = vld [vmem:[%s256 + $0x8] sm:$0xff]
  %v259 = vld [vmem:[%s256 + $0x10] sm:$0xff]
  %v260 = vld [vmem:[%s256 + $0x18] sm:$0xff]
  %v261 = vld [vmem:[%s1] sm:$0xff]
  %v262 = vld [vmem:[%s1 + $0x8] sm:$0xff]
  %v263 = vld [vmem:[%s1 + $0x10] sm:$0xff]
  %v264 = vld [vmem:[%s1 + $0x18] sm:$0xff]
  %v265 = vld [vmem:[%s1 + $0x20] sm:$0xff]
  %v266 = vld [vmem:[%s1 + $0x28] sm:$0xff]
  %v267 = vld [vmem:[%s1 + $0x30] sm:$0xff]
  %v268 = vld [vmem:[%s1 + $0x38] sm:$0xff]
  %v269 = vld [vmem:[%s1 + $0x40] sm:$0xff]
  %v270 = vld [vmem:[%s1 + $0x48] sm:$0xff]
  %v271 = vld [vmem:[%s1 + $0x50] sm:$0xff]
  %v272 = vld [vmem:[%s1 + $0x58] sm:$0xff]
  %v273 = vld [vmem:[%s1 + $0x60] sm:$0xff]
  %v274 = vld [vmem:[%s1 + $0x68] sm:$0xff]
  %v275 = vld [vmem:[%s1 + $0x70] sm:$0xff]
  %v276 = vld [vmem:[%s1 + $0x78] sm:$0xff]
  %v277 = vld [vmem:[%s1 + $0x80] sm:$0xff]
  %v278 = vld [vmem:[%s1 + $0x88] sm:$0xff]
  %v279 = vld [vmem:[%s1 + $0x90] sm:$0xff]
  %v280 = vld [vmem:[%s1 + $0x98] sm:$0xff]
  %v281 = vld [vmem:[%s1 + $0xa0] sm:$0xff]
  %v282 = vld [vmem:[%s1 + $0xa8] sm:$0xff]
  %v283 = vld [vmem:[%s1 + $0xb0] sm:$0xff]
  %v284 = vld [vmem:[%s1 + $0xb8] sm:$0xff]
  %v285 = vld [vmem:[%s1 + $0xc0] sm:$0xff]
  %v286 = vld [vmem:[%s1 + $0xc8] sm:$0xff]
  %v287 = vld [vmem:[%s1 + $0xd0] sm:$0xff]
  %v288 = vld [vmem:[%s1 + $0xd8] sm:$0xff]
  %v289 = vld [vmem:[%s1 + $0xe0] sm:$0xff]
  %v290 = vld [vmem:[%s1 + $0xe8] sm:$0xff]
  %v291 = vld [vmem:[%s1 + $0xf0] sm:$0xff]
  %v292 = vld [vmem:[%s1 + $0xf8] sm:$0xff]
  %v293 = vld [vmem:[%s1 + $0x100] sm:$0xff]
  %v294 = vld [vmem:[%s1 + $0x108] sm:$0xff]
  %v295 = vld [vmem:[%s1 + $0x110] sm:$0xff]
  %v296 = vld [vmem:[%s1 + $0x118] sm:$0xff]
  %v297 = vld [vmem:[%s1 + $0x120] sm:$0xff]
  %v298 = vld [vmem:[%s1 + $0x128] sm:$0xff]
  %v299 = vld [vmem:[%s1 + $0x130] sm:$0xff]
  %v300 = vld [vmem:[%s1 + $0x138] sm:$0xff]
  %v301 = vld [vmem:[%s1 + $0x140] sm:$0xff]
  %v302 = vld [vmem:[%s1 + $0x148] sm:$0xff]
  %v303 = vld [vmem:[%s1 + $0x150] sm:$0xff]
  %v304 = vld [vmem:[%s1 + $0x158] sm:$0xff]
  %v305 = vld [vmem:[%s1 + $0x160] sm:$0xff]
  %v306 = vld [vmem:[%s1 + $0x168] sm:$0xff]
  %v307 = vld [vmem:[%s1 + $0x170] sm:$0xff]
  %v308 = vld [vmem:[%s1 + $0x178] sm:$0xff]
  %v309 = vld [vmem:[%s1 + $0x180] sm:$0xff]
  %v310 = vld [vmem:[%s1 + $0x188] sm:$0xff]
  %v311 = vld [vmem:[%s1 + $0x190] sm:$0xff]
  %v312 = vld [vmem:[%s1 + $0x198] sm:$0xff]
  %v313 = vld [vmem:[%s1 + $0x1a0] sm:$0xff]
  %v314 = vld [vmem:[%s1 + $0x1a8] sm:$0xff]
  %v315 = vld [vmem:[%s1 + $0x1b0] sm:$0xff]
  %v316 = vld [vmem:[%s1 + $0x1b8] sm:$0xff]
  %v317 = vld [vmem:[%s1 + $0x1c0] sm:$0xff]
  %v318 = vld [vmem:[%s1 + $0x1c8] sm:$0xff]
  %v319 = vld [vmem:[%s1 + $0x1d0] sm:$0xff]
  %v320 = vld [vmem:[%s1 + $0x1d8] sm:$0xff]
  %v321 = vld [vmem:[%s1 + $0x1e0] sm:$0xff]
  %v322 = vld [vmem:[%s1 + $0x1e8] sm:$0xff]
  %v323 = vld [vmem:[%s1 + $0x1f0] sm:$0xff]
  %v324 = vld [vmem:[%s1 + $0x1f8] sm:$0xff]
  %325 = vmatprep.subr.mxu0 %v322
  %326 = vmatpush1.msra.mxu0 %v321
  %327 = vmatprep.subr.mxu0 %v318
  %328 = vmatpush1.msra.mxu0 %v317
  %329 = vmatprep.subr.mxu0 %v314
  %330 = vmatpush1.msra.mxu0 %v313
  %331 = vmatprep.subr.mxu0 %v310
  %332 = vmatpush1.msra.mxu0 %v309
  %333 = vmatprep.subr.mxu0 %v306
  %334 = vmatpush1.msra.mxu0 %v305
  %335 = vmatprep.subr.mxu0 %v302
  %336 = vmatpush1.msra.mxu0 %v301
  %337 = vmatprep.subr.mxu0 %v298
  %338 = vmatpush1.msra.mxu0 %v297
  %339 = vmatprep.subr.mxu0 %v294
  %340 = vmatpush1.msra.mxu0 %v293
  %341 = vmatprep.subr.mxu0 %v290
  %342 = vmatpush1.msra.mxu0 %v289
  %343 = vmatprep.subr.mxu0 %v286
  %344 = vmatpush1.msra.mxu0 %v285
  %345 = vmatprep.subr.mxu0 %v282
  %346 = vmatpush1.msra.mxu0 %v281
  %347 = vmatprep.subr.mxu0 %v278
  %348 = vmatpush1.msra.mxu0 %v277
  %349 = vmatprep.subr.mxu0 %v274
  %350 = vmatpush1.msra.mxu0 %v273
  %351 = vmatprep.subr.mxu0 %v270
  %352 = vmatpush1.msra.mxu0 %v269
  %353 = vmatprep.subr.mxu0 %v266
  %354 = vmatpush1.msra.mxu0 %v265
  %355 = vmatprep.subr.mxu0 %v262
  %356 = vmatpush1.msra.mxu0 %v261
  %357 = vmatprep.subr.mxu0 0.0
  %358 = vmatpush2.msra.mxu0 0.0
  %359 = vmatprep.subr.mxu0 0.0
  %360 = vmatpush2.msra.mxu0 0.0
  %361 = vmatprep.subr.mxu0 0.0
  %362 = vmatpush2.msra.mxu0 0.0
  %363 = vmatprep.subr.mxu0 0.0
  %364 = vmatpush2.msra.mxu0 0.0
  %365 = vmatprep.subr.mxu0 0.0
  %366 = vmatpush2.msra.mxu0 0.0
  %367 = vmatprep.subr.mxu0 0.0
  %368 = vmatpush2.msra.mxu0 0.0
  %369 = vmatprep.subr.mxu0 0.0
  %370 = vmatpush2.msra.mxu0 0.0
  %371 = vmatprep.subr.mxu0 0.0
  %372 = vmatpush2.msra.mxu0 0.0
  %373 = vmatprep.subr.mxu0 0.0
  %374 = vmatpush2.msra.mxu0 0.0
  %375 = vmatprep.subr.mxu0 0.0
  %376 = vmatpush2.msra.mxu0 0.0
  %377 = vmatprep.subr.mxu0 0.0
  %378 = vmatpush2.msra.mxu0 0.0
  %379 = vmatprep.subr.mxu0 0.0
  %380 = vmatpush2.msra.mxu0 0.0
  %381 = vmatprep.subr.mxu0 0.0
  %382 = vmatpush2.msra.mxu0 0.0
  %383 = vmatprep.subr.mxu0 0.0
  %384 = vmatpush2.msra.mxu0 0.0
  %385 = vmatprep.subr.mxu0 0.0
  %386 = vmatpush2.msra.mxu0 0.0
  %387 = vmatprep.subr.mxu0 0.0
  %388 = vmatpush2.msra.mxu0 0.0
  %389 = vmatprep.mubr.f32.mxu0 0.0
  %390 = vmatmul.mubr.f32.gmra.mxu0 %v254
  %v391 = vpop.f32.mrf.mxu0
  %v392 = vadd.f32 0.0, %v391
  %v393 = vpop.f32.mrf.mxu0
  %v394 = vadd.f32 0.0, %v393
  %395 = vdwg.mxu0
  %396 = vmatprep.subr.mxu0 %v324
  %397 = vmatpush1.msra.mxu0 %v323
  %398 = vmatprep.subr.mxu0 %v320
  %399 = vmatpush1.msra.mxu0 %v319
  %400 = vmatprep.subr.mxu0 %v316
  %401 = vmatpush1.msra.mxu0 %v315
  %402 = vmatprep.subr.mxu0 %v312
  %403 = vmatpush1.msra.mxu0 %v311
  %404 = vmatprep.subr.mxu0 %v308
  %405 = vmatpush1.msra.mxu0 %v307
  %406 = vmatprep.subr.mxu0 %v304
  %407 = vmatpush1.msra.mxu0 %v303
  %408 = vmatprep.subr.mxu0 %v300
  %409 = vmatpush1.msra.mxu0 %v299
  %410 = vmatprep.subr.mxu0 %v296
  %411 = vmatpush1.msra.mxu0 %v295
  %412 = vmatprep.subr.mxu0 %v292
  %413 = vmatpush1.msra.mxu0 %v291
  %414 = vmatprep.subr.mxu0 %v288
  %415 = vmatpush1.msra.mxu0 %v287
  %416 = vmatprep.subr.mxu0 %v284
  %417 = vmatpush1.msra.mxu0 %v283
  %418 = vmatprep.subr.mxu0 %v280
  %419 = vmatpush1.msra.mxu0 %v279
  %420 = vmatprep.subr.mxu0 %v276
  %421 = vmatpush1.msra.mxu0 %v275
  %422 = vmatprep.subr.mxu0 %v272
  %423 = vmatpush1.msra.mxu0 %v271
  %424 = vmatprep.subr.mxu0 %v268
  %425 = vmatpush1.msra.mxu0 %v267
  %426 = vmatprep.subr.mxu0 %v264
  %427 = vmatpush1.msra.mxu0 %v263
  %428 = vmatprep.subr.mxu0 0.0
  %429 = vmatpush2.msra.mxu0 0.0
  %430 = vmatprep.subr.mxu0 0.0
  %431 = vmatpush2.msra.mxu0 0.0
  %432 = vmatprep.subr.mxu0 0.0
  %433 = vmatpush2.msra.mxu0 0.0
  %434 = vmatprep.subr.mxu0 0.0
  %435 = vmatpush2.msra.mxu0 0.0
  %436 = vmatprep.subr.mxu0 0.0
  %437 = vmatpush2.msra.mxu0 0.0
  %438 = vmatprep.subr.mxu0 0.0
  %439 = vmatpush2.msra.mxu0 0.0
  %440 = vmatprep.subr.mxu0 0.0
  %441 = vmatpush2.msra.mxu0 0.0
  %442 = vmatprep.subr.mxu0 0.0
  %443 = vmatpush2.msra.mxu0 0.0
  %444 = vmatprep.subr.mxu0 0.0
  %445 = vmatpush2.msra.mxu0 0.0
  %446 = vmatprep.subr.mxu0 0.0
  %447 = vmatpush2.msra.mxu0 0.0
  %448 = vmatprep.subr.mxu0 0.0
  %449 = vmatpush2.msra.mxu0 0.0
  %450 = vmatprep.subr.mxu0 0.0
  %451 = vmatpush2.msra.mxu0 0.0
  %452 = vmatprep.subr.mxu0 0.0
  %453 = vmatpush2.msra.mxu0 0.0
  %454 = vmatprep.subr.mxu0 0.0
  %455 = vmatpush2.msra.mxu0 0.0
  %456 = vmatprep.subr.mxu0 0.0
  %457 = vmatpush2.msra.mxu0 0.0
  %458 = vmatprep.subr.mxu0 0.0
  %459 = vmatpush2.msra.mxu0 0.0
  %460 = vmatprep.mubr.f32.mxu0 0.0
  %461 = vmatmul.mubr.f32.gmra.mxu0 %v254
  %v462 = vpop.f32.mrf.mxu0
  %v463 = vadd.f32 0.0, %v462
  %v464 = vpop.f32.mrf.mxu0
  %v465 = vadd.f32 0.0, %v464
  %466 = vdwg.mxu0
  %v467 = vadd.f32 %v257, %v392
  %v468 = vadd.f32 %v258, %v394
  %v469 = vadd.f32 %v259, %v463
  %v470 = vadd.f32 %v260, %v465
  %v471 = vmul.f32 %v467, 0.5
  %v472 = vtanh.pop %v471
  %v473 = vmul.f32 %v472, 0.5
  %v474 = vadd.f32 %v473, 0.5
  %v475 = vmul.f32 %v468, 0.5
  %v476 = vtanh.pop %v475
  %v477 = vmul.f32 %v476, 0.5
  %v478 = vadd.f32 %v477, 0.5
  %v479 = vtanh.pop %v469
  %v480 = vmul.f32 %v470, 0.5
  %v481 = vtanh.pop %v480
  %v482 = vmul.f32 %v481, 0.5
  %v483 = vadd.f32 %v482, 0.5
  %v484 = vmul.f32 %v478, %v255
  %v485 = vmul.f32 %v474, %v479
  %v486 = vadd.f32 %v484, %v485
  %v487 = vtanh.pop %v486
  %v488 = vmul.f32 %v483, %v487
  %s489 = scalar_lea.vmem %s2, 8
  %490 = vst [vmem:[%s489] sm:$0xff] %v488
  %491 = vst [vmem:[#allocation2] sm:$0xff] %v488
  %492 = vst [vmem:[#allocation3] sm:$0xff] %v486
  %v493 = vld [vmem:[#allocation2] sm:$0xff]
  %v494 = vld [vmem:[#allocation3] sm:$0xff]
  %s495 = scalar_lea.vmem %s0, 64
  %v496 = vld [vmem:[%s495] sm:$0xff]
  %v497 = vld [vmem:[%s495 + $0x8] sm:$0xff]
  %v498 = vld [vmem:[%s495 + $0x10] sm:$0xff]
  %v499 = vld [vmem:[%s495 + $0x18] sm:$0xff]
  %v500 = vld [vmem:[%s1] sm:$0xff]
  %v501 = vld [vmem:[%s1 + $0x8] sm:$0xff]
  %v502 = vld [vmem:[%s1 + $0x10] sm:$0xff]
  %v503 = vld [vmem:[%s1 + $0x18] sm:$0xff]
  %v504 = vld [vmem:[%s1 + $0x20] sm:$0xff]
  %v505 = vld [vmem:[%s1 + $0x28] sm:$0xff]
  %v506 = vld [vmem:[%s1 + $0x30] sm:$0xff]
  %v507 = vld [vmem:[%s1 + $0x38] sm:$0xff]
  %v508 = vld [vmem:[%s1 + $0x40] sm:$0xff]
  %v509 = vld [vmem:[%s1 + $0x48] sm:$0xff]
  %v510 = vld [vmem:[%s1 + $0x50] sm:$0xff]
  %v511 = vld [vmem:[%s1 + $0x58] sm:$0xff]
  %v512 = vld [vmem:[%s1 + $0x60] sm:$0xff]
  %v513 = vld [vmem:[%s1 + $0x68] sm:$0xff]
  %v514 = vld [vmem:[%s1 + $0x70] sm:$0xff]
  %v515 = vld [vmem:[%s1 + $0x78] sm:$0xff]
  %v516 = vld [vmem:[%s1 + $0x80] sm:$0xff]
  %v517 = vld [vmem:[%s1 + $0x88] sm:$0xff]
  %v518 = vld [vmem:[%s1 + $0x90] sm:$0xff]
  %v519 = vld [vmem:[%s1 + $0x98] sm:$0xff]
  %v520 = vld [vmem:[%s1 + $0xa0] sm:$0xff]
  %v521 = vld [vmem:[%s1 + $0xa8] sm:$0xff]
  %v522 = vld [vmem:[%s1 + $0xb0] sm:$0xff]
  %v523 = vld [vmem:[%s1 + $0xb8] sm:$0xff]
  %v524 = vld [vmem:[%s1 + $0xc0] sm:$0xff]
  %v525 = vld [vmem:[%s1 + $0xc8] sm:$0xff]
  %v526 = vld [vmem:[%s1 + $0xd0] sm:$0xff]
  %v527 = vld [vmem:[%s1 + $0xd8] sm:$0xff]
  %v528 = vld [vmem:[%s1 + $0xe0] sm:$0xff]
  %v529 = vld [vmem:[%s1 + $0xe8] sm:$0xff]
  %v530 = vld [vmem:[%s1 + $0xf0] sm:$0xff]
  %v531 = vld [vmem:[%s1 + $0xf8] sm:$0xff]
  %v532 = vld [vmem:[%s1 + $0x100] sm:$0xff]
  %v533 = vld [vmem:[%s1 + $0x108] sm:$0xff]
  %v534 = vld [vmem:[%s1 + $0x110] sm:$0xff]
  %v535 = vld [vmem:[%s1 + $0x118] sm:$0xff]
  %v536 = vld [vmem:[%s1 + $0x120] sm:$0xff]
  %v537 = vld [vmem:[%s1 + $0x128] sm:$0xff]
  %v538 = vld [vmem:[%s1 + $0x130] sm:$0xff]
  %v539 = vld [vmem:[%s1 + $0x138] sm:$0xff]
  %v540 = vld [vmem:[%s1 + $0x140] sm:$0xff]
  %v541 = vld [vmem:[%s1 + $0x148] sm:$0xff]
  %v542 = vld [vmem:[%s1 + $0x150] sm:$0xff]
  %v543 = vld [vmem:[%s1 + $0x158] sm:$0xff]
  %v544 = vld [vmem:[%s1 + $0x160] sm:$0xff]
  %v545 = vld [vmem:[%s1 + $0x168] sm:$0xff]
  %v546 = vld [vmem:[%s1 + $0x170] sm:$0xff]
  %v547 = vld [vmem:[%s1 + $0x178] sm:$0xff]
  %v548 = vld [vmem:[%s1 + $0x180] sm:$0xff]
  %v549 = vld [vmem:[%s1 + $0x188] sm:$0xff]
  %v550 = vld [vmem:[%s1 + $0x190] sm:$0xff]
  %v551 = vld [vmem:[%s1 + $0x198] sm:$0xff]
  %v552 = vld [vmem:[%s1 + $0x1a0] sm:$0xff]
  %v553 = vld [vmem:[%s1 + $0x1a8] sm:$0xff]
  %v554 = vld [vmem:[%s1 + $0x1b0] sm:$0xff]
  %v555 = vld [vmem:[%s1 + $0x1b8] sm:$0xff]
  %v556 = vld [vmem:[%s1 + $0x1c0] sm:$0xff]
  %v557 = vld [vmem:[%s1 + $0x1c8] sm:$0xff]
  %v558 = vld [vmem:[%s1 + $0x1d0] sm:$0xff]
  %v559 = vld [vmem:[%s1 + $0x1d8] sm:$0xff]
  %v560 = vld [vmem:[%s1 + $0x1e0] sm:$0xff]
  %v561 = vld [vmem:[%s1 + $0x1e8] sm:$0xff]
  %v562 = vld [vmem:[%s1 + $0x1f0] sm:$0xff]
  %v563 = vld [vmem:[%s1 + $0x1f8] sm:$0xff]
  %564 = vmatprep.subr.mxu0 %v561
  %565 = vmatpush1.msra.mxu0 %v560
  %566 = vmatprep.subr.mxu0 %v557
  %567 = vmatpush1.msra.mxu0 %v556
  %568 = vmatprep.subr.mxu0 %v553
  %569 = vmatpush1.msra.mxu0 %v552
  %570 = vmatprep.subr.mxu0 %v549
  %571 = vmatpush1.msra.mxu0 %v548
  %572 = vmatprep.subr.mxu0 %v545
  %573 = vmatpush1.msra.mxu0 %v544
  %574 = vmatprep.subr.mxu0 %v541
  %575 = vmatpush1.msra.mxu0 %v540
  %576 = vmatprep.subr.mxu0 %v537
  %577 = vmatpush1.msra.mxu0 %v536
  %578 = vmatprep.subr.mxu0 %v533
  %579 = vmatpush1.msra.mxu0 %v532
  %580 = vmatprep.subr.mxu0 %v529
  %581 = vmatpush1.msra.mxu0 %v528
  %582 = vmatprep.subr.mxu0 %v525
  %583 = vmatpush1.msra.mxu0 %v524
  %584 = vmatprep.subr.mxu0 %v521
  %585 = vmatpush1.msra.mxu0 %v520
  %586 = vmatprep.subr.mxu0 %v517
  %587 = vmatpush1.msra.mxu0 %v516
  %588 = vmatprep.subr.mxu0 %v513
  %589 = vmatpush1.msra.mxu0 %v512
  %590 = vmatprep.subr.mxu0 %v509
  %591 = vmatpush1.msra.mxu0 %v508
  %592 = vmatprep.subr.mxu0 %v505
  %593 = vmatpush1.msra.mxu0 %v504
  %594 = vmatprep.subr.mxu0 %v501
  %595 = vmatpush1.msra.mxu0 %v500
  %596 = vmatprep.subr.mxu0 0.0
  %597 = vmatpush2.msra.mxu0 0.0
  %598 = vmatprep.subr.mxu0 0.0
  %599 = vmatpush2.msra.mxu0 0.0
  %600 = vmatprep.subr.mxu0 0.0
  %601 = vmatpush2.msra.mxu0 0.0
  %602 = vmatprep.subr.mxu0 0.0
  %603 = vmatpush2.msra.mxu0 0.0
  %604 = vmatprep.subr.mxu0 0.0
  %605 = vmatpush2.msra.mxu0 0.0
  %606 = vmatprep.subr.mxu0 0.0
  %607 = vmatpush2.msra.mxu0 0.0
  %608 = vmatprep.subr.mxu0 0.0
  %609 = vmatpush2.msra.mxu0 0.0
  %610 = vmatprep.subr.mxu0 0.0
  %611 = vmatpush2.msra.mxu0 0.0
  %612 = vmatprep.subr.mxu0 0.0
  %613 = vmatpush2.msra.mxu0 0.0
  %614 = vmatprep.subr.mxu0 0.0
  %615 = vmatpush2.msra.mxu0 0.0
  %616 = vmatprep.subr.mxu0 0.0
  %617 = vmatpush2.msra.mxu0 0.0
  %618 = vmatprep.subr.mxu0 0.0
  %619 = vmatpush2.msra.mxu0 0.0
  %620 = vmatprep.subr.mxu0 0.0
  %621 = vmatpush2.msra.mxu0 0.0
  %622 = vmatprep.subr.mxu0 0.0
  %623 = vmatpush2.msra.mxu0 0.0
  %624 = vmatprep.subr.mxu0 0.0
  %625 = vmatpush2.msra.mxu0 0.0
  %626 = vmatprep.subr.mxu0 0.0
  %627 = vmatpush2.msra.mxu0 0.0
  %628 = vmatprep.mubr.f32.mxu0 0.0
  %629 = vmatmul.mubr.f32.gmra.mxu0 %v493
  %v630 = vpop.f32.mrf.mxu0
  %v631 = vadd.f32 0.0, %v630
  %v632 = vpop.f32.mrf.mxu0
  %v633 = vadd.f32 0.0, %v632
  %634 = vdwg.mxu0
  %635 = vmatprep.subr.mxu0 %v563
  %636 = vmatpush1.msra.mxu0 %v562
  %637 = vmatprep.subr.mxu0 %v559
  %638 = vmatpush1.msra.mxu0 %v558
  %639 = vmatprep.subr.mxu0 %v555
  %640 = vmatpush1.msra.mxu0 %v554
  %641 = vmatprep.subr.mxu0 %v551
  %642 = vmatpush1.msra.mxu0 %v550
  %643 = vmatprep.subr.mxu0 %v547
  %644 = vmatpush1.msra.mxu0 %v546
  %645 = vmatprep.subr.mxu0 %v543
  %646 = vmatpush1.msra.mxu0 %v542
  %647 = vmatprep.subr.mxu0 %v539
  %648 = vmatpush1.msra.mxu0 %v538
  %649 = vmatprep.subr.mxu0 %v535
  %650 = vmatpush1.msra.mxu0 %v534
  %651 = vmatprep.subr.mxu0 %v531
  %652 = vmatpush1.msra.mxu0 %v530
  %653 = vmatprep.subr.mxu0 %v527
  %654 = vmatpush1.msra.mxu0 %v526
  %655 = vmatprep.subr.mxu0 %v523
  %656 = vmatpush1.msra.mxu0 %v522
  %657 = vmatprep.subr.mxu0 %v519
  %658 = vmatpush1.msra.mxu0 %v518
  %659 = vmatprep.subr.mxu0 %v515
  %660 = vmatpush1.msra.mxu0 %v514
  %661 = vmatprep.subr.mxu0 %v511
  %662 = vmatpush1.msra.mxu0 %v510
  %663 = vmatprep.subr.mxu0 %v507
  %664 = vmatpush1.msra.mxu0 %v506
  %665 = vmatprep.subr.mxu0 %v503
  %666 = vmatpush1.msra.mxu0 %v502
  %667 = vmatprep.subr.mxu0 0.0
  %668 = vmatpush2.msra.mxu0 0.0
  %669 = vmatprep.subr.mxu0 0.0
  %670 = vmatpush2.msra.mxu0 0.0
  %671 = vmatprep.subr.mxu0 0.0
  %672 = vmatpush2.msra.mxu0 0.0
  %673 = vmatprep.subr.mxu0 0.0
  %674 = vmatpush2.msra.mxu0 0.0
  %675 = vmatprep.subr.mxu0 0.0
  %676 = vmatpush2.msra.mxu0 0.0
  %677 = vmatprep.subr.mxu0 0.0
  %678 = vmatpush2.msra.mxu0 0.0
  %679 = vmatprep.subr.mxu0 0.0
  %680 = vmatpush2.msra.mxu0 0.0
  %681 = vmatprep.subr.mxu0 0.0
  %682 = vmatpush2.msra.mxu0 0.0
  %683 = vmatprep.subr.mxu0 0.0
  %684 = vmatpush2.msra.mxu0 0.0
  %685 = vmatprep.subr.mxu0 0.0
  %686 = vmatpush2.msra.mxu0 0.0
  %687 = vmatprep.subr.mxu0 0.0
  %688 = vmatpush2.msra.mxu0 0.0
  %689 = vmatprep.subr.mxu0 0.0
  %690 = vmatpush2.msra.mxu0 0.0
  %691 = vmatprep.subr.mxu0 0.0
  %692 = vmatpush2.msra.mxu0 0.0
  %693 = vmatprep.subr.mxu0 0.0
  %694 = vmatpush2.msra.mxu0 0.0
  %695 = vmatprep.subr.mxu0 0.0
  %696 = vmatpush2.msra.mxu0 0.0
  %697 = vmatprep.subr.mxu0 0.0
  %698 = vmatpush2.msra.mxu0 0.0
  %699 = vmatprep.mubr.f32.mxu0 0.0
  %700 = vmatmul.mubr.f32.gmra.mxu0 %v493
  %v701 = vpop.f32.mrf.mxu0
  %v702 = vadd.f32 0.0, %v701
  %v703 = vpop.f32.mrf.mxu0
  %v704 = vadd.f32 0.0, %v703
  %705 = vdwg.mxu0
  %v706 = vadd.f32 %v496, %v631
  %v707 = vadd.f32 %v497, %v633
  %v708 = vadd.f32 %v498, %v702
  %v709 = vadd.f32 %v499, %v704
  %v710 = vmul.f32 %v706, 0.5
  %v711 = vtanh.pop %v710
  %v712 = vmul.f32 %v711, 0.5
  %v713 = vadd.f32 %v712, 0.5
  %v714 = vmul.f32 %v707, 0.5
  %v715 = vtanh.pop %v714
  %v716 = vmul.f32 %v715, 0.5
  %v717 = vadd.f32 %v716, 0.5
  %v718 = vtanh.pop %v708
  %v719 = vmul.f32 %v709, 0.5
  %v720 = vtanh.pop %v719
  %v721 = vmul.f32 %v720, 0.5
  %v722 = vadd.f32 %v721, 0.5
  %v723 = vmul.f32 %v717, %v494
  %v724 = vmul.f32 %v713, %v718
  %v725 = vadd.f32 %v723, %v724
  %v726 = vtanh.pop %v725
  %v727 = vmul.f32 %v722, %v726
  %s728 = scalar_lea.vmem %s2, 16
  %729 = vst [vmem:[%s728] sm:$0xff] %v727
  %730 = vst [vmem:[#allocation2] sm:$0xff] %v727
  %731 = vst [vmem:[#allocation3] sm:$0xff] %v725
  %v732 = vld [vmem:[#allocation2] sm:$0xff]
  %v733 = vld [vmem:[#allocation3] sm:$0xff]
  %s734 = scalar_lea.vmem %s0, 96
  %v735 = vld [vmem:[%s734] sm:$0xff]
  %v736 = vld [vmem:[%s734 + $0x8] sm:$0xff]
  %v737 = vld [vmem:[%s734 + $0x10] sm:$0xff]
  %v738 = vld [vmem:[%s734 + $0x18] sm:$0xff]
  %v739 = vld [vmem:[%s1] sm:$0xff]
  %v740 = vld [vmem:[%s1 + $0x8] sm:$0xff]
  %v741 = vld [vmem:[%s1 + $0x10] sm:$0xff]
  %v742 = vld [vmem:[%s1 + $0x18] sm:$0xff]
  %v743 = vld [vmem:[%s1 + $0x20] sm:$0xff]
  %v744 = vld [vmem:[%s1 + $0x28] sm:$0xff]
  %v745 = vld [vmem:[%s1 + $0x30] sm:$0xff]
  %v746 = vld [vmem:[%s1 + $0x38] sm:$0xff]
  %v747 = vld [vmem:[%s1 + $0x40] sm:$0xff]
  %v748 = vld [vmem:[%s1 + $0x48] sm:$0xff]
  %v749 = vld [vmem:[%s1 + $0x50] sm:$0xff]
  %v750 = vld [vmem:[%s1 + $0x58] sm:$0xff]
  %v751 = vld [vmem:[%s1 + $0x60] sm:$0xff]
  %v752 = vld [vmem:[%s1 + $0x68] sm:$0xff]
  %v753 = vld [vmem:[%s1 + $0x70] sm:$0xff]
  %v754 = vld [vmem:[%s1 + $0x78] sm:$0xff]
  %v755 = vld [vmem:[%s1 + $0x80] sm:$0xff]
  %v756 = vld [vmem:[%s1 + $0x88] sm:$0xff]
  %v757 = vld [vmem:[%s1 + $0x90] sm:$0xff]
  %v758 = vld [vmem:[%s1 + $0x98] sm:$0xff]
  %v759 = vld [vmem:[%s1 + $0xa0] sm:$0xff]
  %v760 = vld [vmem:[%s1 + $0xa8] sm:$0xff]
  %v761 = vld [vmem:[%s1 + $0xb0] sm:$0xff]
  %v762 = vld [vmem:[%s1 + $0xb8] sm:$0xff]
  %v763 = vld [vmem:[%s1 + $0xc0] sm:$0xff]
  %v764 = vld [vmem:[%s1 + $0xc8] sm:$0xff]
  %v765 = vld [vmem:[%s1 + $0xd0] sm:$0xff]
  %v766 = vld [vmem:[%s1 + $0xd8] sm:$0xff]
  %v767 = vld [vmem:[%s1 + $0xe0] sm:$0xff]
  %v768 = vld [vmem:[%s1 + $0xe8] sm:$0xff]
  %v769 = vld [vmem:[%s1 + $0xf0] sm:$0xff]
  %v770 = vld [vmem:[%s1 + $0xf8] sm:$0xff]
  %v771 = vld [vmem:[%s1 + $0x100] sm:$0xff]
  %v772 = vld [vmem:[%s1 + $0x108] sm:$0xff]
  %v773 = vld [vmem:[%s1 + $0x110] sm:$0xff]
  %v774 = vld [vmem:[%s1 + $0x118] sm:$0xff]
  %v775 = vld [vmem:[%s1 + $0x120] sm:$0xff]
  %v776 = vld [vmem:[%s1 + $0x128] sm:$0xff]
  %v777 = vld [vmem:[%s1 + $0x130] sm:$0xff]
  %v778 = vld [vmem:[%s1 + $0x138] sm:$0xff]
  %v779 = vld [vmem:[%s1 + $0x140] sm:$0xff]
  %v780 = vld [vmem:[%s1 + $0x148] sm:$0xff]
  %v781 = vld [vmem:[%s1 + $0x150] sm:$0xff]
  %v782 = vld [vmem:[%s1 + $0x158] sm:$0xff]
  %v783 = vld [vmem:[%s1 + $0x160] sm:$0xff]
  %v784 = vld [vmem:[%s1 + $0x168] sm:$0xff]
  %v785 = vld [vmem:[%s1 + $0x170] sm:$0xff]
  %v786 = vld [vmem:[%s1 + $0x178] sm:$0xff]
  %v787 = vld [vmem:[%s1 + $0x180] sm:$0xff]
  %v788 = vld [vmem:[%s1 + $0x188] sm:$0xff]
  %v789 = vld [vmem:[%s1 + $0x190] sm:$0xff]
  %v790 = vld [vmem:[%s1 + $0x198] sm:$0xff]
  %v791 = vld [vmem:[%s1 + $0x1a0] sm:$0xff]
  %v792 = vld [vmem:[%s1 + $0x1a8] sm:$0xff]
  %v793 = vld [vmem:[%s1 + $0x1b0] sm:$0xff]
  %v794 = vld [vmem:[%s1 + $0x1b8] sm:$0xff]
  %v795 = vld [vmem:[%s1 + $0x1c0] sm:$0xff]
  %v796 = vld [vmem:[%s1 + $0x1c8] sm:$0xff]
  %v797 = vld [vmem:[%s1 + $0x1d0] sm:$0xff]
  %v798 = vld [vmem:[%s1 + $0x1d8] sm:$0xff]
  %v799 = vld [vmem:[%s1 + $0x1e0] sm:$0xff]
  %v800 = vld [vmem:[%s1 + $0x1e8] sm:$0xff]
  %v801 = vld [vmem:[%s1 + $0x1f0] sm:$0xff]
  %v802 = vld [vmem:[%s1 + $0x1f8] sm:$0xff]
  %803 = vmatprep.subr.mxu0 %v800
  %804 = vmatpush1.msra.mxu0 %v799
  %805 = vmatprep.subr.mxu0 %v796
  %806 = vmatpush1.msra.mxu0 %v795
  %807 = vmatprep.subr.mxu0 %v792
  %808 = vmatpush1.msra.mxu0 %v791
  %809 = vmatprep.subr.mxu0 %v788
  %810 = vmatpush1.msra.mxu0 %v787
  %811 = vmatprep.subr.mxu0 %v784
  %812 = vmatpush1.msra.mxu0 %v783
  %813 = vmatprep.subr.mxu0 %v780
  %814 = vmatpush1.msra.mxu0 %v779
  %815 = vmatprep.subr.mxu0 %v776
  %816 = vmatpush1.msra.mxu0 %v775
  %817 = vmatprep.subr.mxu0 %v772
  %818 = vmatpush1.msra.mxu0 %v771
  %819 = vmatprep.subr.mxu0 %v768
  %820 = vmatpush1.msra.mxu0 %v767
  %821 = vmatprep.subr.mxu0 %v764
  %822 = vmatpush1.msra.mxu0 %v763
  %823 = vmatprep.subr.mxu0 %v760
  %824 = vmatpush1.msra.mxu0 %v759
  %825 = vmatprep.subr.mxu0 %v756
  %826 = vmatpush1.msra.mxu0 %v755
  %827 = vmatprep.subr.mxu0 %v752
  %828 = vmatpush1.msra.mxu0 %v751
  %829 = vmatprep.subr.mxu0 %v748
  %830 = vmatpush1.msra.mxu0 %v747
  %831 = vmatprep.subr.mxu0 %v744
  %832 = vmatpush1.msra.mxu0 %v743
  %833 = vmatprep.subr.mxu0 %v740
  %834 = vmatpush1.msra.mxu0 %v739
  %835 = vmatprep.subr.mxu0 0.0
  %836 = vmatpush2.msra.mxu0 0.0
  %837 = vmatprep.subr.mxu0 0.0
  %838 = vmatpush2.msra.mxu0 0.0
  %839 = vmatprep.subr.mxu0 0.0
  %840 = vmatpush2.msra.mxu0 0.0
  %841 = vmatprep.subr.mxu0 0.0
  %842 = vmatpush2.msra.mxu0 0.0
  %843 = vmatprep.subr.mxu0 0.0
  %844 = vmatpush2.msra.mxu0 0.0
  %845 = vmatprep.subr.mxu0 0.0
  %846 = vmatpush2.msra.mxu0 0.0
  %847 = vmatprep.subr.mxu0 0.0
  %848 = vmatpush2.msra.mxu0 0.0
  %849 = vmatprep.subr.mxu0 0.0
  %850 = vmatpush2.msra.mxu0 0.0
  %851 = vmatprep.subr.mxu0 0.0
  %852 = vmatpush2.msra.mxu0 0.0
  %853 = vmatprep.subr.mxu0 0.0
  %854 = vmatpush2.msra.mxu0 0.0
  %855 = vmatprep.subr.mxu0 0.0
  %856 = vmatpush2.msra.mxu0 0.0
  %857 = vmatprep.subr.mxu0 0.0
  %858 = vmatpush2.msra.mxu0 0.0
  %859 = vmatprep.subr.mxu0 0.0
  %860 = vmatpush2.msra.mxu0 0.0
  %861 = vmatprep.subr.mxu0 0.0
  %862 = vmatpush2.msra.mxu0 0.0
  %863 = vmatprep.subr.mxu0 0.0
  %864 = vmatpush2.msra.mxu0 0.0
  %865 = vmatprep.subr.mxu0 0.0
  %866 = vmatpush2.msra.mxu0 0.0
  %867 = vmatprep.mubr.f32.mxu0 0.0
  %868 = vmatmul.mubr.f32.gmra.mxu0 %v732
  %v869 = vpop.f32.mrf.mxu0
  %v870 = vadd.f32 0.0, %v869
  %v871 = vpop.f32.mrf.mxu0
  %v872 = vadd.f32 0.0, %v871
  %873 = vdwg.mxu0
  %874 = vmatprep.subr.mxu0 %v802
  %875 = vmatpush1.msra.mxu0 %v801
  %876 = vmatprep.subr.mxu0 %v798
  %877 = vmatpush1.msra.mxu0 %v797
  %878 = vmatprep.subr.mxu0 %v794
  %879 = vmatpush1.msra.mxu0 %v793
  %880 = vmatprep.subr.mxu0 %v790
  %881 = vmatpush1.msra.mxu0 %v789
  %882 = vmatprep.subr.mxu0 %v786
  %883 = vmatpush1.msra.mxu0 %v785
  %884 = vmatprep.subr.mxu0 %v782
  %885 = vmatpush1.msra.mxu0 %v781
  %886 = vmatprep.subr.mxu0 %v778
  %887 = vmatpush1.msra.mxu0 %v777
  %888 = vmatprep.subr.mxu0 %v774
  %889 = vmatpush1.msra.mxu0 %v773
  %890 = vmatprep.subr.mxu0 %v770
  %891 = vmatpush1.msra.mxu0 %v769
  %892 = vmatprep.subr.mxu0 %v766
  %893 = vmatpush1.msra.mxu0 %v765
  %894 = vmatprep.subr.mxu0 %v762
  %895 = vmatpush1.msra.mxu0 %v761
  %896 = vmatprep.subr.mxu0 %v758
  %897 = vmatpush1.msra.mxu0 %v757
  %898 = vmatprep.subr.mxu0 %v754
  %899 = vmatpush1.msra.mxu0 %v753
  %900 = vmatprep.subr.mxu0 %v750
  %901 = vmatpush1.msra.mxu0 %v749
  %902 = vmatprep.subr.mxu0 %v746
  %903 = vmatpush1.msra.mxu0 %v745
  %904 = vmatprep.subr.mxu0 %v742
  %905 = vmatpush1.msra.mxu0 %v741
  %906 = vmatprep.subr.mxu0 0.0
  %907 = vmatpush2.msra.mxu0 0.0
  %908 = vmatprep.subr.mxu0 0.0
  %909 = vmatpush2.msra.mxu0 0.0
  %910 = vmatprep.subr.mxu0 0.0
  %911 = vmatpush2.msra.mxu0 0.0
  %912 = vmatprep.subr.mxu0 0.0
  %913 = vmatpush2.msra.mxu0 0.0
  %914 = vmatprep.subr.mxu0 0.0
  %915 = vmatpush2.msra.mxu0 0.0
  %916 = vmatprep.subr.mxu0 0.0
  %917 = vmatpush2.msra.mxu0 0.0
  %918 = vmatprep.subr.mxu0 0.0
  %919 = vmatpush2.msra.mxu0 0.0
  %920 = vmatprep.subr.mxu0 0.0
  %921 = vmatpush2.msra.mxu0 0.0
  %922 = vmatprep.subr.mxu0 0.0
  %923 = vmatpush2.msra.mxu0 0.0
  %924 = vmatprep.subr.mxu0 0.0
  %925 = vmatpush2.msra.mxu0 0.0
  %926 = vmatprep.subr.mxu0 0.0
  %927 = vmatpush2.msra.mxu0 0.0
  %928 = vmatprep.subr.mxu0 0.0
  %929 = vmatpush2.msra.mxu0 0.0
  %930 = vmatprep.subr.mxu0 0.0
  %931 = vmatpush2.msra.mxu0 0.0
  %932 = vmatprep.subr.mxu0 0.0
  %933 = vmatpush2.msra.mxu0 0.0
  %934 = vmatprep.subr.mxu0 0.0
  %935 = vmatpush2.msra.mxu0 0.0
  %936 = vmatprep.subr.mxu0 0.0
  %937 = vmatpush2.msra.mxu0 0.0
  %938 = vmatprep.mubr.f32.mxu0 0.0
  %939 = vmatmul.mubr.f32.gmra.mxu0 %v732
  %v940 = vpop.f32.mrf.mxu0
  %v941 = vadd.f32 0.0, %v940
  %v942 = vpop.f32.mrf.mxu0
  %v943 = vadd.f32 0.0, %v942
  %944 = vdwg.mxu0
  %v945 = vadd.f32 %v735, %v870
  %v946 = vadd.f32 %v736, %v872
  %v947 = vadd.f32 %v737, %v941
  %v948 = vadd.f32 %v738, %v943
  %v949 = vmul.f32 %v945, 0.5
  %v950 = vtanh.pop %v949
  %v951 = vmul.f32 %v950, 0.5
  %v952 = vadd.f32 %v951, 0.5
  %v953 = vmul.f32 %v946, 0.5
  %v954 = vtanh.pop %v953
  %v955 = vmul.f32 %v954, 0.5
  %v956 = vadd.f32 %v955, 0.5
  %v957 = vtanh.pop %v947
  %v958 = vmul.f32 %v948, 0.5
  %v959 = vtanh.pop %v958
  %v960 = vmul.f32 %v959, 0.5
  %v961 = vadd.f32 %v960, 0.5
  %v962 = vmul.f32 %v956, %v733
  %v963 = vmul.f32 %v952, %v957
  %v964 = vadd.f32 %v962, %v963
  %v965 = vtanh.pop %v964
  %v966 = vmul.f32 %v961, %v965
  %s967 = scalar_lea.vmem %s2, 24
  %968 = vst [vmem:[%s967] sm:$0xff] %v966
  %969 = vst [vmem:[#allocation2] sm:$0xff] %v966
  %970 = vst [vmem:[#allocation3] sm:$0xff] %v964
  %v971 = vld [vmem:[#allocation2] sm:$0xff]
  %v972 = vld [vmem:[#allocation3] sm:$0xff]
  %s973 = scalar_lea.vmem %s0, 128
  %v974 = vld [vmem:[%s973] sm:$0xff]
  %v975 = vld [vmem:[%s973 + $0x8] sm:$0xff]
  %v976 = vld [vmem:[%s973 + $0x10] sm:$0xff]
  %v977 = vld [vmem:[%s973 + $0x18] sm:$0xff]
  %v978 = vld [vmem:[%s1] sm:$0xff]
  %v979 = vld [vmem:[%s1 + $0x8] sm:$0xff]
  %v980 = vld [vmem:[%s1 + $0x10] sm:$0xff]
  %v981 = vld [vmem:[%s1 + $0x18] sm:$0xff]
  %v982 = vld [vmem:[%s1 + $0x20] sm:$0xff]
  %v983 = vld [vmem:[%s1 + $0x28] sm:$0xff]
  %v984 = vld [vmem:[%s1 + $0x30] sm:$0xff]
  %v985 = vld [vmem:[%s1 + $0x38] sm:$0xff]
  %v986 = vld [vmem:[%s1 + $0x40] sm:$0xff]
  %v987 = vld [vmem:[%s1 + $0x48] sm:$0xff]
  %v988 = vld [vmem:[%s1 + $0x50] sm:$0xff]
  %v989 = vld [vmem:[%s1 + $0x58] sm:$0xff]
  %v990 = vld [vmem:[%s1 + $0x60] sm:$0xff]
  %v991 = vld [vmem:[%s1 + $0x68] sm:$0xff]
  %v992 = vld [vmem:[%s1 + $0x70] sm:$0xff]
  %v993 = vld [vmem:[%s1 + $0x78] sm:$0xff]
  %v994 = vld [vmem:[%s1 + $0x80] sm:$0xff]
  %v995 = vld [vmem:[%s1 + $0x88] sm:$0xff]
  %v996 = vld [vmem:[%s1 + $0x90] sm:$0xff]
  %v997 = vld [vmem:[%s1 + $0x98] sm:$0xff]
  %v998 = vld [vmem:[%s1 + $0xa0] sm:$0xff]
  %v999 = vld [vmem:[%s1 + $0xa8] sm:$0xff]
  %v1000 = vld [vmem:[%s1 + $0xb0] sm:$0xff]
  %v1001 = vld [vmem:[%s1 + $0xb8] sm:$0xff]
  %v1002 = vld [vmem:[%s1 + $0xc0] sm:$0xff]
  %v1003 = vld [vmem:[%s1 + $0xc8] sm:$0xff]
  %v1004 = vld [vmem:[%s1 + $0xd0] sm:$0xff]
  %v1005 = vld [vmem:[%s1 + $0xd8] sm:$0xff]
  %v1006 = vld [vmem:[%s1 + $0xe0] sm:$0xff]
  %v1007 = vld [vmem:[%s1 + $0xe8] sm:$0xff]
  %v1008 = vld [vmem:[%s1 + $0xf0] sm:$0xff]
  %v1009 = vld [vmem:[%s1 + $0xf8] sm:$0xff]
  %v1010 = vld [vmem:[%s1 + $0x100] sm:$0xff]
  %v1011 = vld [vmem:[%s1 + $0x108] sm:$0xff]
  %v1012 = vld [vmem:[%s1 + $0x110] sm:$0xff]
  %v1013 = vld [vmem:[%s1 + $0x118] sm:$0xff]
  %v1014 = vld [vmem:[%s1 + $0x120] sm:$0xff]
  %v1015 = vld [vmem:[%s1 + $0x128] sm:$0xff]
  %v1016 = vld [vmem:[%s1 + $0x130] sm:$0xff]
  %v1017 = vld [vmem:[%s1 + $0x138] sm:$0xff]
  %v1018 = vld [vmem:[%s1 + $0x140] sm:$0xff]
  %v1019 = vld [vmem:[%s1 + $0x148] sm:$0xff]
  %v1020 = vld [vmem:[%s1 + $0x150] sm:$0xff]
  %v1021 = vld [vmem:[%s1 + $0x158] sm:$0xff]
  %v1022 = vld [vmem:[%s1 + $0x160] sm:$0xff]
  %v1023 = vld [vmem:[%s1 + $0x168] sm:$0xff]
  %v1024 = vld [vmem:[%s1 + $0x170] sm:$0xff]
  %v1025 = vld [vmem:[%s1 + $0x178] sm:$0xff]
  %v1026 = vld [vmem:[%s1 + $0x180] sm:$0xff]
  %v1027 = vld [vmem:[%s1 + $0x188] sm:$0xff]
  %v1028 = vld [vmem:[%s1 + $0x190] sm:$0xff]
  %v1029 = vld [vmem:[%s1 + $0x198] sm:$0xff]
  %v1030 = vld [vmem:[%s1 + $0x1a0] sm:$0xff]
  %v1031 = vld [vmem:[%s1 + $0x1a8] sm:$0xff]
  %v1032 = vld [vmem:[%s1 + $0x1b0] sm:$0xff]
  %v1033 = vld [vmem:[%s1 + $0x1b8] sm:$0xff]
  %v1034 = vld [vmem:[%s1 + $0x1c0] sm:$0xff]
  %v1035 = vld [vmem:[%s1 + $0x1c8] sm:$0xff]
  %v1036 = vld [vmem:[%s1 + $0x1d0] sm:$0xff]
  %v1037 = vld [vmem:[%s1 + $0x1d8] sm:$0xff]
  %v1038 = vld [vmem:[%s1 + $0x1e0] sm:$0xff]
  %v1039 = vld [vmem:[%s1 + $0x1e8] sm:$0xff]
  %v1040 = vld [vmem:[%s1 + $0x1f0] sm:$0xff]
  %v1041 = vld [vmem:[%s1 + $0x1f8] sm:$0xff]
  %1042 = vmatprep.subr.mxu0 %v1039
  %1043 = vmatpush1.msra.mxu0 %v1038
  %1044 = vmatprep.subr.mxu0 %v1035
  %1045 = vmatpush1.msra.mxu0 %v1034
  %1046 = vmatprep.subr.mxu0 %v1031
  %1047 = vmatpush1.msra.mxu0 %v1030
  %1048 = vmatprep.subr.mxu0 %v1027
  %1049 = vmatpush1.msra.mxu0 %v1026
  %1050 = vmatprep.subr.mxu0 %v1023
  %1051 = vmatpush1.msra.mxu0 %v1022
  %1052 = vmatprep.subr.mxu0 %v1019
  %1053 = vmatpush1.msra.mxu0 %v1018
  %1054 = vmatprep.subr.mxu0 %v1015
  %1055 = vmatpush1.msra.mxu0 %v1014
  %1056 = vmatprep.subr.mxu0 %v1011
  %1057 = vmatpush1.msra.mxu0 %v1010
  %1058 = vmatprep.subr.mxu0 %v1007
  %1059 = vmatpush1.msra.mxu0 %v1006
  %1060 = vmatprep.subr.mxu0 %v1003
  %1061 = vmatpush1.msra.mxu0 %v1002
  %1062 = vmatprep.subr.mxu0 %v999
  %1063 = vmatpush1.msra.mxu0 %v998
  %1064 = vmatprep.subr.mxu0 %v995
  %1065 = vmatpush1.msra.mxu0 %v994
  %1066 = vmatprep.subr.mxu0 %v991
  %1067 = vmatpush1.msra.mxu0 %v990
  %1068 = vmatprep.subr.mxu0 %v987
  %1069 = vmatpush1.msra.mxu0 %v986
  %1070 = vmatprep.subr.mxu0 %v983
  %1071 = vmatpush1.msra.mxu0 %v982
  %1072 = vmatprep.subr.mxu0 %v979
  %1073 = vmatpush1.msra.mxu0 %v978
  %1074 = vmatprep.subr.mxu0 0.0
  %1075 = vmatpush2.msra.mxu0 0.0
  %1076 = vmatprep.subr.mxu0 0.0
  %1077 = vmatpush2.msra.mxu0 0.0
  %1078 = vmatprep.subr.mxu0 0.0
  %1079 = vmatpush2.msra.mxu0 0.0
  %1080 = vmatprep.subr.mxu0 0.0
  %1081 = vmatpush2.msra.mxu0 0.0
  %1082 = vmatprep.subr.mxu0 0.0
  %1083 = vmatpush2.msra.mxu0 0.0
  %1084 = vmatprep.subr.mxu0 0.0
  %1085 = vmatpush2.msra.mxu0 0.0
  %1086 = vmatprep.subr.mxu0 0.0
  %1087 = vmatpush2.msra.mxu0 0.0
  %1088 = vmatprep.subr.mxu0 0.0
  %1089 = vmatpush2.msra.mxu0 0.0
  %1090 = vmatprep.subr.mxu0 0.0
  %1091 = vmatpush2.msra.mxu0 0.0
  %1092 = vmatprep.subr.mxu0 0.0
  %1093 = vmatpush2.msra.mxu0 0.0
  %1094 = vmatprep.subr.mxu0 0.0
  %1095 = vmatpush2.msra.mxu0 0.0
  %1096 = vmatprep.subr.mxu0 0.0
  %1097 = vmatpush2.msra.mxu0 0.0
  %1098 = vmatprep.subr.mxu0 0.0
  %1099 = vmatpush2.msra.mxu0 0.0
  %1100 = vmatprep.subr.mxu0 0.0
  %1101 = vmatpush2.msra.mxu0 0.0
  %1102 = vmatprep.subr.mxu0 0.0
  %1103 = vmatpush2.msra.mxu0 0.0
  %1104 = vmatprep.subr.mxu0 0.0
  %1105 = vmatpush2.msra.mxu0 0.0
  %1106 = vmatprep.mubr.f32.mxu0 0.0
  %1107 = vmatmul.mubr.f32.gmra.mxu0 %v971
  %v1108 = vpop.f32.mrf.mxu0
  %v1109 = vadd.f32 0.0, %v1108
  %v1110 = vpop.f32.mrf.mxu0
  %v1111 = vadd.f32 0.0, %v1110
  %1112 = vdwg.mxu0
  %1113 = vmatprep.subr.mxu0 %v1041
  %1114 = vmatpush1.msra.mxu0 %v1040
  %1115 = vmatprep.subr.mxu0 %v1037
  %1116 = vmatpush1.msra.mxu0 %v1036
  %1117 = vmatprep.subr.mxu0 %v1033
  %1118 = vmatpush1.msra.mxu0 %v1032
  %1119 = vmatprep.subr.mxu0 %v1029
  %1120 = vmatpush1.msra.mxu0 %v1028
  %1121 = vmatprep.subr.mxu0 %v1025
  %1122 = vmatpush1.msra.mxu0 %v1024
  %1123 = vmatprep.subr.mxu0 %v1021
  %1124 = vmatpush1.msra.mxu0 %v1020
  %1125 = vmatprep.subr.mxu0 %v1017
  %1126 = vmatpush1.msra.mxu0 %v1016
  %1127 = vmatprep.subr.mxu0 %v1013
  %1128 = vmatpush1.msra.mxu0 %v1012
  %1129 = vmatprep.subr.mxu0 %v1009
  %1130 = vmatpush1.msra.mxu0 %v1008
  %1131 = vmatprep.subr.mxu0 %v1005
  %1132 = vmatpush1.msra.mxu0 %v1004
  %1133 = vmatprep.subr.mxu0 %v1001
  %1134 = vmatpush1.msra.mxu0 %v1000
  %1135 = vmatprep.subr.mxu0 %v997
  %1136 = vmatpush1.msra.mxu0 %v996
  %1137 = vmatprep.subr.mxu0 %v993
  %1138 = vmatpush1.msra.mxu0 %v992
  %1139 = vmatprep.subr.mxu0 %v989
  %1140 = vmatpush1.msra.mxu0 %v988
  %1141 = vmatprep.subr.mxu0 %v985
  %1142 = vmatpush1.msra.mxu0 %v984
  %1143 = vmatprep.subr.mxu0 %v981
  %1144 = vmatpush1.msra.mxu0 %v980
  %1145 = vmatprep.subr.mxu0 0.0
  %1146 = vmatpush2.msra.mxu0 0.0
  %1147 = vmatprep.subr.mxu0 0.0
  %1148 = vmatpush2.msra.mxu0 0.0
  %1149 = vmatprep.subr.mxu0 0.0
  %1150 = vmatpush2.msra.mxu0 0.0
  %1151 = vmatprep.subr.mxu0 0.0
  %1152 = vmatpush2.msra.mxu0 0.0
  %1153 = vmatprep.subr.mxu0 0.0
  %1154 = vmatpush2.msra.mxu0 0.0
  %1155 = vmatprep.subr.mxu0 0.0
  %1156 = vmatpush2.msra.mxu0 0.0
  %1157 = vmatprep.subr.mxu0 0.0
  %1158 = vmatpush2.msra.mxu0 0.0
  %1159 = vmatprep.subr.mxu0 0.0
  %1160 = vmatpush2.msra.mxu0 0.0
  %1161 = vmatprep.subr.mxu0 0.0
  %1162 = vmatpush2.msra.mxu0 0.0
  %1163 = vmatprep.subr.mxu0 0.0
  %1164 = vmatpush2.msra.mxu0 0.0
  %1165 = vmatprep.subr.mxu0 0.0
  %1166 = vmatpush2.msra.mxu0 0.0
  %1167 = vmatprep.subr.mxu0 0.0
  %1168 = vmatpush2.msra.mxu0 0.0
  %1169 = vmatprep.subr.mxu0 0.0
  %1170 = vmatpush2.msra.mxu0 0.0
  %1171 = vmatprep.subr.mxu0 0.0
  %1172 = vmatpush2.msra.mxu0 0.0
  %1173 = vmatprep.subr.mxu0 0.0
  %1174 = vmatpush2.msra.mxu0 0.0
  %1175 = vmatprep.subr.mxu0 0.0
  %1176 = vmatpush2.msra.mxu0 0.0
  %1177 = vmatprep.mubr.f32.mxu0 0.0
  %1178 = vmatmul.mubr.f32.gmra.mxu0 %v971
  %v1179 = vpop.f32.mrf.mxu0
  %v1180 = vadd.f32 0.0, %v1179
  %v1181 = vpop.f32.mrf.mxu0
  %v1182 = vadd.f32 0.0, %v1181
  %1183 = vdwg.mxu0
  %v1184 = vadd.f32 %v974, %v1109
  %v1185 = vadd.f32 %v975, %v1111
  %v1186 = vadd.f32 %v976, %v1180
  %v1187 = vadd.f32 %v977, %v1182
  %v1188 = vmul.f32 %v1184, 0.5
  %v1189 = vtanh.pop %v1188
  %v1190 = vmul.f32 %v1189, 0.5
  %v1191 = vadd.f32 %v1190, 0.5
  %v1192 = vmul.f32 %v1185, 0.5
  %v1193 = vtanh.pop %v1192
  %v1194 = vmul.f32 %v1193, 0.5
  %v1195 = vadd.f32 %v1194, 0.5
  %v1196 = vtanh.pop %v1186
  %v1197 = vmul.f32 %v1187, 0.5
  %v1198 = vtanh.pop %v1197
  %v1199 = vmul.f32 %v1198, 0.5
  %v1200 = vadd.f32 %v1199, 0.5
  %v1201 = vmul.f32 %v1195, %v972
  %v1202 = vmul.f32 %v1191, %v1196
  %v1203 = vadd.f32 %v1201, %v1202
  %v1204 = vtanh.pop %v1203
  %v1205 = vmul.f32 %v1200, %v1204
  %s1206 = scalar_lea.vmem %s2, 32
  %1207 = vst [vmem:[%s1206] sm:$0xff] %v1205
  %1208 = vst [vmem:[#allocation2] sm:$0xff] %v1205
  %1209 = vst [vmem:[#allocation3] sm:$0xff] %v1203
  %v1210 = vld [vmem:[#allocation2] sm:$0xff]
  %v1211 = vld [vmem:[#allocation3] sm:$0xff]
  %s1212 = scalar_lea.vmem %s0, 160
  %v1213 = vld [vmem:[%s1212] sm:$0xff]
  %v1214 = vld [vmem:[%s1212 + $0x8] sm:$0xff]
  %v1215 = vld [vmem:[%s1212 + $0x10] sm:$0xff]
  %v1216 = vld [vmem:[%s1212 + $0x18] sm:$0xff]
  %v1217 = vld [vmem:[%s1] sm:$0xff]
  %v1218 = vld [vmem:[%s1 + $0x8] sm:$0xff]
  %v1219 = vld [vmem:[%s1 + $0x10] sm:$0xff]
  %v1220 = vld [vmem:[%s1 + $0x18] sm:$0xff]
  %v1221 = vld [vmem:[%s1 + $0x20] sm:$0xff]
  %v1222 = vld [vmem:[%s1 + $0x28] sm:$0xff]
  %v1223 = vld [vmem:[%s1 + $0x30] sm:$0xff]
  %v1224 = vld [vmem:[%s1 + $0x38] sm:$0xff]
  %v1225 = vld [vmem:[%s1 + $0x40] sm:$0xff]
  %v1226 = vld [vmem:[%s1 + $0x48] sm:$0xff]
  %v1227 = vld [vmem:[%s1 + $0x50] sm:$0xff]
  %v1228 = vld [vmem:[%s1 + $0x58] sm:$0xff]
  %v1229 = vld [vmem:[%s1 + $0x60] sm:$0xff]
  %v1230 = vld [vmem:[%s1 + $0x68] sm:$0xff]
  %v1231 = vld [vmem:[%s1 + $0x70] sm:$0xff]
  %v1232 = vld [vmem:[%s1 + $0x78] sm:$0xff]
  %v1233 = vld [vmem:[%s1 + $0x80] sm:$0xff]
  %v1234 = vld [vmem:[%s1 + $0x88] sm:$0xff]
  %v1235 = vld [vmem:[%s1 + $0x90] sm:$0xff]
  %v1236 = vld [vmem:[%s1 + $0x98] sm:$0xff]
  %v1237 = vld [vmem:[%s1 + $0xa0] sm:$0xff]
  %v1238 = vld [vmem:[%s1 + $0xa8] sm:$0xff]
  %v1239 = vld [vmem:[%s1 + $0xb0] sm:$0xff]
  %v1240 = vld [vmem:[%s1 + $0xb8] sm:$0xff]
  %v1241 = vld [vmem:[%s1 + $0xc0] sm:$0xff]
  %v1242 = vld [vmem:[%s1 + $0xc8] sm:$0xff]
  %v1243 = vld [vmem:[%s1 + $0xd0] sm:$0xff]
  %v1244 = vld [vmem:[%s1 + $0xd8] sm:$0xff]
  %v1245 = vld [vmem:[%s1 + $0xe0] sm:$0xff]
  %v1246 = vld [vmem:[%s1 + $0xe8] sm:$0xff]
  %v1247 = vld [vmem:[%s1 + $0xf0] sm:$0xff]
  %v1248 = vld [vmem:[%s1 + $0xf8] sm:$0xff]
  %v1249 = vld [vmem:[%s1 + $0x100] sm:$0xff]
  %v1250 = vld [vmem:[%s1 + $0x108] sm:$0xff]
  %v1251 = vld [vmem:[%s1 + $0x110] sm:$0xff]
  %v1252 = vld [vmem:[%s1 + $0x118] sm:$0xff]
  %v1253 = vld [vmem:[%s1 + $0x120] sm:$0xff]
  %v1254 = vld [vmem:[%s1 + $0x128] sm:$0xff]
  %v1255 = vld [vmem:[%s1 + $0x130] sm:$0xff]
  %v1256 = vld [vmem:[%s1 + $0x138] sm:$0xff]
  %v1257 = vld [vmem:[%s1 + $0x140] sm:$0xff]
  %v1258 = vld [vmem:[%s1 + $0x148] sm:$0xff]
  %v1259 = vld [vmem:[%s1 + $0x150] sm:$0xff]
  %v1260 = vld [vmem:[%s1 + $0x158] sm:$0xff]
  %v1261 = vld [vmem:[%s1 + $0x160] sm:$0xff]
  %v1262 = vld [vmem:[%s1 + $0x168] sm:$0xff]
  %v1263 = vld [vmem:[%s1 + $0x170] sm:$0xff]
  %v1264 = vld [vmem:[%s1 + $0x178] sm:$0xff]
  %v1265 = vld [vmem:[%s1 + $0x180] sm:$0xff]
  %v1266 = vld [vmem:[%s1 + $0x188] sm:$0xff]
  %v1267 = vld [vmem:[%s1 + $0x190] sm:$0xff]
  %v1268 = vld [vmem:[%s1 + $0x198] sm:$0xff]
  %v1269 = vld [vmem:[%s1 + $0x1a0] sm:$0xff]
  %v1270 = vld [vmem:[%s1 + $0x1a8] sm:$0xff]
  %v1271 = vld [vmem:[%s1 + $0x1b0] sm:$0xff]
  %v1272 = vld [vmem:[%s1 + $0x1b8] sm:$0xff]
  %v1273 = vld [vmem:[%s1 + $0x1c0] sm:$0xff]
  %v1274 = vld [vmem:[%s1 + $0x1c8] sm:$0xff]
  %v1275 = vld [vmem:[%s1 + $0x1d0] sm:$0xff]
  %v1276 = vld [vmem:[%s1 + $0x1d8] sm:$0xff]
  %v1277 = vld [vmem:[%s1 + $0x1e0] sm:$0xff]
  %v1278 = vld [vmem:[%s1 + $0x1e8] sm:$0xff]
  %v1279 = vld [vmem:[%s1 + $0x1f0] sm:$0xff]
  %v1280 = vld [vmem:[%s1 + $0x1f8] sm:$0xff]
  %1281 = vmatprep.subr.mxu0 %v1278
  %1282 = vmatpush1.msra.mxu0 %v1277
  %1283 = vmatprep.subr.mxu0 %v1274
  %1284 = vmatpush1.msra.mxu0 %v1273
  %1285 = vmatprep.subr.mxu0 %v1270
  %1286 = vmatpush1.msra.mxu0 %v1269
  %1287 = vmatprep.subr.mxu0 %v1266
  %1288 = vmatpush1.msra.mxu0 %v1265
  %1289 = vmatprep.subr.mxu0 %v1262
  %1290 = vmatpush1.msra.mxu0 %v1261
  %1291 = vmatprep.subr.mxu0 %v1258
  %1292 = vmatpush1.msra.mxu0 %v1257
  %1293 = vmatprep.subr.mxu0 %v1254
  %1294 = vmatpush1.msra.mxu0 %v1253
  %1295 = vmatprep.subr.mxu0 %v1250
  %1296 = vmatpush1.msra.mxu0 %v1249
  %1297 = vmatprep.subr.mxu0 %v1246
  %1298 = vmatpush1.msra.mxu0 %v1245
  %1299 = vmatprep.subr.mxu0 %v1242
  %1300 = vmatpush1.msra.mxu0 %v1241
  %1301 = vmatprep.subr.mxu0 %v1238
  %1302 = vmatpush1.msra.mxu0 %v1237
  %1303 = vmatprep.subr.mxu0 %v1234
  %1304 = vmatpush1.msra.mxu0 %v1233
  %1305 = vmatprep.subr.mxu0 %v1230
  %1306 = vmatpush1.msra.mxu0 %v1229
  %1307 = vmatprep.subr.mxu0 %v1226
  %1308 = vmatpush1.msra.mxu0 %v1225
  %1309 = vmatprep.subr.mxu0 %v1222
  %1310 = vmatpush1.msra.mxu0 %v1221
  %1311 = vmatprep.subr.mxu0 %v1218
  %1312 = vmatpush1.msra.mxu0 %v1217
  %1313 = vmatprep.subr.mxu0 0.0
  %1314 = vmatpush2.msra.mxu0 0.0
  %1315 = vmatprep.subr.mxu0 0.0
  %1316 = vmatpush2.msra.mxu0 0.0
  %1317 = vmatprep.subr.mxu0 0.0
  %1318 = vmatpush2.msra.mxu0 0.0
  %1319 = vmatprep.subr.mxu0 0.0
  %1320 = vmatpush2.msra.mxu0 0.0
  %1321 = vmatprep.subr.mxu0 0.0
  %1322 = vmatpush2.msra.mxu0 0.0
  %1323 = vmatprep.subr.mxu0 0.0
  %1324 = vmatpush2.msra.mxu0 0.0
  %1325 = vmatprep.subr.mxu0 0.0
  %1326 = vmatpush2.msra.mxu0 0.0
  %1327 = vmatprep.subr.mxu0 0.0
  %1328 = vmatpush2.msra.mxu0 0.0
  %1329 = vmatprep.subr.mxu0 0.0
  %1330 = vmatpush2.msra.mxu0 0.0
  %1331 = vmatprep.subr.mxu0 0.0
  %1332 = vmatpush2.msra.mxu0 0.0
  %1333 = vmatprep.subr.mxu0 0.0
  %1334 = vmatpush2.msra.mxu0 0.0
  %1335 = vmatprep.subr.mxu0 0.0
  %1336 = vmatpush2.msra.mxu0 0.0
  %1337 = vmatprep.subr.mxu0 0.0
  %1338 = vmatpush2.msra.mxu0 0.0
  %1339 = vmatprep.subr.mxu0 0.0
  %1340 = vmatpush2.msra.mxu0 0.0
  %1341 = vmatprep.subr.mxu0 0.0
  %1342 = vmatpush2.msra.mxu0 0.0
  %1343 = vmatprep.subr.mxu0 0.0
  %1344 = vmatpush2.msra.mxu0 0.0
  %1345 = vmatprep.mubr.f32.mxu0 0.0
  %1346 = vmatmul.mubr.f32.gmra.mxu0 %v1210
  %v1347 = vpop.f32.mrf.mxu0
  %v1348 = vadd.f32 0.0, %v1347
  %v1349 = vpop.f32.mrf.mxu0
  %v1350 = vadd.f32 0.0, %v1349
  %1351 = vdwg.mxu0
  %1352 = vmatprep.subr.mxu0 %v1280
  %1353 = vmatpush1.msra.mxu0 %v1279
  %1354 = vmatprep.subr.mxu0 %v1276
  %1355 = vmatpush1.msra.mxu0 %v1275
  %1356 = vmatprep.subr.mxu0 %v1272
  %1357 = vmatpush1.msra.mxu0 %v1271
  %1358 = vmatprep.subr.mxu0 %v1268
  %1359 = vmatpush1.msra.mxu0 %v1267
  %1360 = vmatprep.subr.mxu0 %v1264
  %1361 = vmatpush1.msra.mxu0 %v1263
  %1362 = vmatprep.subr.mxu0 %v1260
  %1363 = vmatpush1.msra.mxu0 %v1259
  %1364 = vmatprep.subr.mxu0 %v1256
  %1365 = vmatpush1.msra.mxu0 %v1255
  %1366 = vmatprep.subr.mxu0 %v1252
  %1367 = vmatpush1.msra.mxu0 %v1251
  %1368 = vmatprep.subr.mxu0 %v1248
  %1369 = vmatpush1.msra.mxu0 %v1247
  %1370 = vmatprep.subr.mxu0 %v1244
  %1371 = vmatpush1.msra.mxu0 %v1243
  %1372 = vmatprep.subr.mxu0 %v1240
  %1373 = vmatpush1.msra.mxu0 %v1239
  %1374 = vmatprep.subr.mxu0 %v1236
  %1375 = vmatpush1.msra.mxu0 %v1235
  %1376 = vmatprep.subr.mxu0 %v1232
  %1377 = vmatpush1.msra.mxu0 %v1231
  %1378 = vmatprep.subr.mxu0 %v1228
  %1379 = vmatpush1.msra.mxu0 %v1227
  %1380 = vmatprep.subr.mxu0 %v1224
  %1381 = vmatpush1.msra.mxu0 %v1223
  %1382 = vmatprep.subr.mxu0 %v1220
  %1383 = vmatpush1.msra.mxu0 %v1219
  %1384 = vmatprep.subr.mxu0 0.0
  %1385 = vmatpush2.msra.mxu0 0.0
  %1386 = vmatprep.subr.mxu0 0.0
  %1387 = vmatpush2.msra.mxu0 0.0
  %1388 = vmatprep.subr.mxu0 0.0
  %1389 = vmatpush2.msra.mxu0 0.0
  %1390 = vmatprep.subr.mxu0 0.0
  %1391 = vmatpush2.msra.mxu0 0.0
  %1392 = vmatprep.subr.mxu0 0.0
  %1393 = vmatpush2.msra.mxu0 0.0
  %1394 = vmatprep.subr.mxu0 0.0
  %1395 = vmatpush2.msra.mxu0 0.0
  %1396 = vmatprep.subr.mxu0 0.0
  %1397 = vmatpush2.msra.mxu0 0.0
  %1398 = vmatprep.subr.mxu0 0.0
  %1399 = vmatpush2.msra.mxu0 0.0
  %1400 = vmatprep.subr.mxu0 0.0
  %1401 = vmatpush2.msra.mxu0 0.0
  %1402 = vmatprep.subr.mxu0 0.0
  %1403 = vmatpush2.msra.mxu0 0.0
  %1404 = vmatprep.subr.mxu0 0.0
  %1405 = vmatpush2.msra.mxu0 0.0
  %1406 = vmatprep.subr.mxu0 0.0
  %1407 = vmatpush2.msra.mxu0 0.0
  %1408 = vmatprep.subr.mxu0 0.0
  %1409 = vmatpush2.msra.mxu0 0.0
  %1410 = vmatprep.subr.mxu0 0.0
  %1411 = vmatpush2.msra.mxu0 0.0
  %1412 = vmatprep.subr.mxu0 0.0
  %1413 = vmatpush2.msra.mxu0 0.0
  %1414 = vmatprep.subr.mxu0 0.0
  %1415 = vmatpush2.msra.mxu0 0.0
  %1416 = vmatprep.mubr.f32.mxu0 0.0
  %1417 = vmatmul.mubr.f32.gmra.mxu0 %v1210
  %v1418 = vpop.f32.mrf.mxu0
  %v1419 = vadd.f32 0.0, %v1418
  %v1420 = vpop.f32.mrf.mxu0
  %v1421 = vadd.f32 0.0, %v1420
  %1422 = vdwg.mxu0
  %v1423 = vadd.f32 %v1213, %v1348
  %v1424 = vadd.f32 %v1214, %v1350
  %v1425 = vadd.f32 %v1215, %v1419
  %v1426 = vadd.f32 %v1216, %v1421
  %v1427 = vmul.f32 %v1423, 0.5
  %v1428 = vtanh.pop %v1427
  %v1429 = vmul.f32 %v1428, 0.5
  %v1430 = vadd.f32 %v1429, 0.5
  %v1431 = vmul.f32 %v1424, 0.5
  %v1432 = vtanh.pop %v1431
  %v1433 = vmul.f32 %v1432, 0.5
  %v1434 = vadd.f32 %v1433, 0.5
  %v1435 = vtanh.pop %v1425
  %v1436 = vmul.f32 %v1426, 0.5
  %v1437 = vtanh.pop %v1436
  %v1438 = vmul.f32 %v1437, 0.5
  %v1439 = vadd.f32 %v1438, 0.5
  %v1440 = vmul.f32 %v1434, %v1211
  %v1441 = vmul.f32 %v1430, %v1435
  %v1442 = vadd.f32 %v1440, %v1441
  %v1443 = vtanh.pop %v1442
  %v1444 = vmul.f32 %v1439, %v1443
  %s1445 = scalar_lea.vmem %s2, 40
  %1446 = vst [vmem:[%s1445] sm:$0xff] %v1444
  %1447 = vst [vmem:[#allocation2] sm:$0xff] %v1444
  %1448 = vst [vmem:[#allocation3] sm:$0xff] %v1442
  %v1449 = vld [vmem:[#allocation2] sm:$0xff]
  %v1450 = vld [vmem:[#allocation3] sm:$0xff]
  %s1451 = scalar_lea.vmem %s0, 192
  %v1452 = vld [vmem:[%s1451] sm:$0xff]
  %v1453 = vld [vmem:[%s1451 + $0x8] sm:$0xff]
  %v1454 = vld [vmem:[%s1451 + $0x10] sm:$0xff]
  %v1455 = vld [vmem:[%s1451 + $0x18] sm:$0xff]
  %v1456 = vld [vmem:[%s1] sm:$0xff]
  %v1457 = vld [vmem:[%s1 + $0x8] sm:$0xff]
  %v1458 = vld [vmem:[%s1 + $0x10] sm:$0xff]
  %v1459 = vld [vmem:[%s1 + $0x18] sm:$0xff]
  %v1460 = vld [vmem:[%s1 + $0x20] sm:$0xff]
  %v1461 = vld [vmem:[%s1 + $0x28] sm:$0xff]
  %v1462 = vld [vmem:[%s1 + $0x30] sm:$0xff]
  %v1463 = vld [vmem:[%s1 + $0x38] sm:$0xff]
  %v1464 = vld [vmem:[%s1 + $0x40] sm:$0xff]
  %v1465 = vld [vmem:[%s1 + $0x48] sm:$0xff]
  %v1466 = vld [vmem:[%s1 + $0x50] sm:$0xff]
  %v1467 = vld [vmem:[%s1 + $0x58] sm:$0xff]
  %v1468 = vld [vmem:[%s1 + $0x60] sm:$0xff]
  %v1469 = vld [vmem:[%s1 + $0x68] sm:$0xff]
  %v1470 = vld [vmem:[%s1 + $0x70] sm:$0xff]
  %v1471 = vld [vmem:[%s1 + $0x78] sm:$0xff]
  %v1472 = vld [vmem:[%s1 + $0x80] sm:$0xff]
  %v1473 = vld [vmem:[%s1 + $0x88] sm:$0xff]
  %v1474 = vld [vmem:[%s1 + $0x90] sm:$0xff]
  %v1475 = vld [vmem:[%s1 + $0x98] sm:$0xff]
  %v1476 = vld [vmem:[%s1 + $0xa0] sm:$0xff]
  %v1477 = vld [vmem:[%s1 + $0xa8] sm:$0xff]
  %v1478 = vld [vmem:[%s1 + $0xb0] sm:$0xff]
  %v1479 = vld [vmem:[%s1 + $0xb8] sm:$0xff]
  %v1480 = vld [vmem:[%s1 + $0xc0] sm:$0xff]
  %v1481 = vld [vmem:[%s1 + $0xc8] sm:$0xff]
  %v1482 = vld [vmem:[%s1 + $0xd0] sm:$0xff]
  %v1483 = vld [vmem:[%s1 + $0xd8] sm:$0xff]
  %v1484 = vld [vmem:[%s1 + $0xe0] sm:$0xff]
  %v1485 = vld [vmem:[%s1 + $0xe8] sm:$0xff]
  %v1486 = vld [vmem:[%s1 + $0xf0] sm:$0xff]
  %v1487 = vld [vmem:[%s1 + $0xf8] sm:$0xff]
  %v1488 = vld [vmem:[%s1 + $0x100] sm:$0xff]
  %v1489 = vld [vmem:[%s1 + $0x108] sm:$0xff]
  %v1490 = vld [vmem:[%s1 + $0x110] sm:$0xff]
  %v1491 = vld [vmem:[%s1 + $0x118] sm:$0xff]
  %v1492 = vld [vmem:[%s1 + $0x120] sm:$0xff]
  %v1493 = vld [vmem:[%s1 + $0x128] sm:$0xff]
  %v1494 = vld [vmem:[%s1 + $0x130] sm:$0xff]
  %v1495 = vld [vmem:[%s1 + $0x138] sm:$0xff]
  %v1496 = vld [vmem:[%s1 + $0x140] sm:$0xff]
  %v1497 = vld [vmem:[%s1 + $0x148] sm:$0xff]
  %v1498 = vld [vmem:[%s1 + $0x150] sm:$0xff]
  %v1499 = vld [vmem:[%s1 + $0x158] sm:$0xff]
  %v1500 = vld [vmem:[%s1 + $0x160] sm:$0xff]
  %v1501 = vld [vmem:[%s1 + $0x168] sm:$0xff]
  %v1502 = vld [vmem:[%s1 + $0x170] sm:$0xff]
  %v1503 = vld [vmem:[%s1 + $0x178] sm:$0xff]
  %v1504 = vld [vmem:[%s1 + $0x180] sm:$0xff]
  %v1505 = vld [vmem:[%s1 + $0x188] sm:$0xff]
  %v1506 = vld [vmem:[%s1 + $0x190] sm:$0xff]
  %v1507 = vld [vmem:[%s1 + $0x198] sm:$0xff]
  %v1508 = vld [vmem:[%s1 + $0x1a0] sm:$0xff]
  %v1509 = vld [vmem:[%s1 + $0x1a8] sm:$0xff]
  %v1510 = vld [vmem:[%s1 + $0x1b0] sm:$0xff]
  %v1511 = vld [vmem:[%s1 + $0x1b8] sm:$0xff]
  %v1512 = vld [vmem:[%s1 + $0x1c0] sm:$0xff]
  %v1513 = vld [vmem:[%s1 + $0x1c8] sm:$0xff]
  %v1514 = vld [vmem:[%s1 + $0x1d0] sm:$0xff]
  %v1515 = vld [vmem:[%s1 + $0x1d8] sm:$0xff]
  %v1516 = vld [vmem:[%s1 + $0x1e0] sm:$0xff]
  %v1517 = vld [vmem:[%s1 + $0x1e8] sm:$0xff]
  %v1518 = vld [vmem:[%s1 + $0x1f0] sm:$0xff]
  %v1519 = vld [vmem:[%s1 + $0x1f8] sm:$0xff]
  %1520 = vmatprep.subr.mxu0 %v1517
  %1521 = vmatpush1.msra.mxu0 %v1516
  %1522 = vmatprep.subr.mxu0 %v1513
  %1523 = vmatpush1.msra.mxu0 %v1512
  %1524 = vmatprep.subr.mxu0 %v1509
  %1525 = vmatpush1.msra.mxu0 %v1508
  %1526 = vmatprep.subr.mxu0 %v1505
  %1527 = vmatpush1.msra.mxu0 %v1504
  %1528 = vmatprep.subr.mxu0 %v1501
  %1529 = vmatpush1.msra.mxu0 %v1500
  %1530 = vmatprep.subr.mxu0 %v1497
  %1531 = vmatpush1.msra.mxu0 %v1496
  %1532 = vmatprep.subr.mxu0 %v1493
  %1533 = vmatpush1.msra.mxu0 %v1492
  %1534 = vmatprep.subr.mxu0 %v1489
  %1535 = vmatpush1.msra.mxu0 %v1488
  %1536 = vmatprep.subr.mxu0 %v1485
  %1537 = vmatpush1.msra.mxu0 %v1484
  %1538 = vmatprep.subr.mxu0 %v1481
  %1539 = vmatpush1.msra.mxu0 %v1480
  %1540 = vmatprep.subr.mxu0 %v1477
  %1541 = vmatpush1.msra.mxu0 %v1476
  %1542 = vmatprep.subr.mxu0 %v1473
  %1543 = vmatpush1.msra.mxu0 %v1472
  %1544 = vmatprep.subr.mxu0 %v1469
  %1545 = vmatpush1.msra.mxu0 %v1468
  %1546 = vmatprep.subr.mxu0 %v1465
  %1547 = vmatpush1.msra.mxu0 %v1464
  %1548 = vmatprep.subr.mxu0 %v1461
  %1549 = vmatpush1.msra.mxu0 %v1460
  %1550 = vmatprep.subr.mxu0 %v1457
  %1551 = vmatpush1.msra.mxu0 %v1456
  %1552 = vmatprep.subr.mxu0 0.0
  %1553 = vmatpush2.msra.mxu0 0.0
  %1554 = vmatprep.subr.mxu0 0.0
  %1555 = vmatpush2.msra.mxu0 0.0
  %1556 = vmatprep.subr.mxu0 0.0
  %1557 = vmatpush2.msra.mxu0 0.0
  %1558 = vmatprep.subr.mxu0 0.0
  %1559 = vmatpush2.msra.mxu0 0.0
  %1560 = vmatprep.subr.mxu0 0.0
  %1561 = vmatpush2.msra.mxu0 0.0
  %1562 = vmatprep.subr.mxu0 0.0
  %1563 = vmatpush2.msra.mxu0 0.0
  %1564 = vmatprep.subr.mxu0 0.0
  %1565 = vmatpush2.msra.mxu0 0.0
  %1566 = vmatprep.subr.mxu0 0.0
  %1567 = vmatpush2.msra.mxu0 0.0
  %1568 = vmatprep.subr.mxu0 0.0
  %1569 = vmatpush2.msra.mxu0 0.0
  %1570 = vmatprep.subr.mxu0 0.0
  %1571 = vmatpush2.msra.mxu0 0.0
  %1572 = vmatprep.subr.mxu0 0.0
  %1573 = vmatpush2.msra.mxu0 0.0
  %1574 = vmatprep.subr.mxu0 0.0
  %1575 = vmatpush2.msra.mxu0 0.0
  %1576 = vmatprep.subr.mxu0 0.0
  %1577 = vmatpush2.msra.mxu0 0.0
  %1578 = vmatprep.subr.mxu0 0.0
  %1579 = vmatpush2.msra.mxu0 0.0
  %1580 = vmatprep.subr.mxu0 0.0
  %1581 = vmatpush2.msra.mxu0 0.0
  %1582 = vmatprep.subr.mxu0 0.0
  %1583 = vmatpush2.msra.mxu0 0.0
  %1584 = vmatprep.mubr.f32.mxu0 0.0
  %1585 = vmatmul.mubr.f32.gmra.mxu0 %v1449
  %v1586 = vpop.f32.mrf.mxu0
  %v1587 = vadd.f32 0.0, %v1586
  %v1588 = vpop.f32.mrf.mxu0
  %v1589 = vadd.f32 0.0, %v1588
  %1590 = vdwg.mxu0
  %1591 = vmatprep.subr.mxu0 %v1519
  %1592 = vmatpush1.msra.mxu0 %v1518
  %1593 = vmatprep.subr.mxu0 %v1515
  %1594 = vmatpush1.msra.mxu0 %v1514
  %1595 = vmatprep.subr.mxu0 %v1511
  %1596 = vmatpush1.msra.mxu0 %v1510
  %1597 = vmatprep.subr.mxu0 %v1507
  %1598 = vmatpush1.msra.mxu0 %v1506
  %1599 = vmatprep.subr.mxu0 %v1503
  %1600 = vmatpush1.msra.mxu0 %v1502
  %1601 = vmatprep.subr.mxu0 %v1499
  %1602 = vmatpush1.msra.mxu0 %v1498
  %1603 = vmatprep.subr.mxu0 %v1495
  %1604 = vmatpush1.msra.mxu0 %v1494
  %1605 = vmatprep.subr.mxu0 %v1491
  %1606 = vmatpush1.msra.mxu0 %v1490
  %1607 = vmatprep.subr.mxu0 %v1487
  %1608 = vmatpush1.msra.mxu0 %v1486
  %1609 = vmatprep.subr.mxu0 %v1483
  %1610 = vmatpush1.msra.mxu0 %v1482
  %1611 = vmatprep.subr.mxu0 %v1479
  %1612 = vmatpush1.msra.mxu0 %v1478
  %1613 = vmatprep.subr.mxu0 %v1475
  %1614 = vmatpush1.msra.mxu0 %v1474
  %1615 = vmatprep.subr.mxu0 %v1471
  %1616 = vmatpush1.msra.mxu0 %v1470
  %1617 = vmatprep.subr.mxu0 %v1467
  %1618 = vmatpush1.msra.mxu0 %v1466
  %1619 = vmatprep.subr.mxu0 %v1463
  %1620 = vmatpush1.msra.mxu0 %v1462
  %1621 = vmatprep.subr.mxu0 %v1459
  %1622 = vmatpush1.msra.mxu0 %v1458
  %1623 = vmatprep.subr.mxu0 0.0
  %1624 = vmatpush2.msra.mxu0 0.0
  %1625 = vmatprep.subr.mxu0 0.0
  %1626 = vmatpush2.msra.mxu0 0.0
  %1627 = vmatprep.subr.mxu0 0.0
  %1628 = vmatpush2.msra.mxu0 0.0
  %1629 = vmatprep.subr.mxu0 0.0
  %1630 = vmatpush2.msra.mxu0 0.0
  %1631 = vmatprep.subr.mxu0 0.0
  %1632 = vmatpush2.msra.mxu0 0.0
  %1633 = vmatprep.subr.mxu0 0.0
  %1634 = vmatpush2.msra.mxu0 0.0
  %1635 = vmatprep.subr.mxu0 0.0
  %1636 = vmatpush2.msra.mxu0 0.0
  %1637 = vmatprep.subr.mxu0 0.0
  %1638 = vmatpush2.msra.mxu0 0.0
  %1639 = vmatprep.subr.mxu0 0.0
  %1640 = vmatpush2.msra.mxu0 0.0
  %1641 = vmatprep.subr.mxu0 0.0
  %1642 = vmatpush2.msra.mxu0 0.0
  %1643 = vmatprep.subr.mxu0 0.0
  %1644 = vmatpush2.msra.mxu0 0.0
  %1645 = vmatprep.subr.mxu0 0.0
  %1646 = vmatpush2.msra.mxu0 0.0
  %1647 = vmatprep.subr.mxu0 0.0
  %1648 = vmatpush2.msra.mxu0 0.0
  %1649 = vmatprep.subr.mxu0 0.0
  %1650 = vmatpush2.msra.mxu0 0.0
  %1651 = vmatprep.subr.mxu0 0.0
  %1652 = vmatpush2.msra.mxu0 0.0
  %1653 = vmatprep.subr.mxu0 0.0
  %1654 = vmatpush2.msra.mxu0 0.0
  %1655 = vmatprep.mubr.f32.mxu0 0.0
  %1656 = vmatmul.mubr.f32.gmra.mxu0 %v1449
  %v1657 = vpop.f32.mrf.mxu0
  %v1658 = vadd.f32 0.0, %v1657
  %v1659 = vpop.f32.mrf.mxu0
  %v1660 = vadd.f32 0.0, %v1659
  %1661 = vdwg.mxu0
  %v1662 = vadd.f32 %v1452, %v1587
  %v1663 = vadd.f32 %v1453, %v1589
  %v1664 = vadd.f32 %v1454, %v1658
  %v1665 = vadd.f32 %v1455, %v1660
  %v1666 = vmul.f32 %v1662, 0.5
  %v1667 = vtanh.pop %v1666
  %v1668 = vmul.f32 %v1667, 0.5
  %v1669 = vadd.f32 %v1668, 0.5
  %v1670 = vmul.f32 %v1663, 0.5
  %v1671 = vtanh.pop %v1670
  %v1672 = vmul.f32 %v1671, 0.5
  %v1673 = vadd.f32 %v1672, 0.5
  %v1674 = vtanh.pop %v1664
  %v1675 = vmul.f32 %v1665, 0.5
  %v1676 = vtanh.pop %v1675
  %v1677 = vmul.f32 %v1676, 0.5
  %v1678 = vadd.f32 %v1677, 0.5
  %v1679 = vmul.f32 %v1673, %v1450
  %v1680 = vmul.f32 %v1669, %v1674
  %v1681 = vadd.f32 %v1679, %v1680
  %v1682 = vtanh.pop %v1681
  %v1683 = vmul.f32 %v1678, %v1682
  %s1684 = scalar_lea.vmem %s2, 48
  %1685 = vst [vmem:[%s1684] sm:$0xff] %v1683
  %1686 = vst [vmem:[#allocation2] sm:$0xff] %v1683
  %1687 = vst [vmem:[#allocation3] sm:$0xff] %v1681
  %v1688 = vld [vmem:[#allocation2] sm:$0xff]
  %v1689 = vld [vmem:[#allocation3] sm:$0xff]
  %s1690 = scalar_lea.vmem %s0, 224
  %v1691 = vld [vmem:[%s1690] sm:$0xff]
  %v1692 = vld [vmem:[%s1690 + $0x8] sm:$0xff]
  %v1693 = vld [vmem:[%s1690 + $0x10] sm:$0xff]
  %v1694 = vld [vmem:[%s1690 + $0x18] sm:$0xff]
  %v1695 = vld [vmem:[%s1] sm:$0xff]
  %v1696 = vld [vmem:[%s1 + $0x8] sm:$0xff]
  %v1697 = vld [vmem:[%s1 + $0x10] sm:$0xff]
  %v1698 = vld [vmem:[%s1 + $0x18] sm:$0xff]
  %v1699 = vld [vmem:[%s1 + $0x20] sm:$0xff]
  %v1700 = vld [vmem:[%s1 + $0x28] sm:$0xff]
  %v1701 = vld [vmem:[%s1 + $0x30] sm:$0xff]
  %v1702 = vld [vmem:[%s1 + $0x38] sm:$0xff]
  %v1703 = vld [vmem:[%s1 + $0x40] sm:$0xff]
  %v1704 = vld [vmem:[%s1 + $0x48] sm:$0xff]
  %v1705 = vld [vmem:[%s1 + $0x50] sm:$0xff]
  %v1706 = vld [vmem:[%s1 + $0x58] sm:$0xff]
  %v1707 = vld [vmem:[%s1 + $0x60] sm:$0xff]
  %v1708 = vld [vmem:[%s1 + $0x68] sm:$0xff]
  %v1709 = vld [vmem:[%s1 + $0x70] sm:$0xff]
  %v1710 = vld [vmem:[%s1 + $0x78] sm:$0xff]
  %v1711 = vld [vmem:[%s1 + $0x80] sm:$0xff]
  %v1712 = vld [vmem:[%s1 + $0x88] sm:$0xff]
  %v1713 = vld [vmem:[%s1 + $0x90] sm:$0xff]
  %v1714 = vld [vmem:[%s1 + $0x98] sm:$0xff]
  %v1715 = vld [vmem:[%s1 + $0xa0] sm:$0xff]
  %v1716 = vld [vmem:[%s1 + $0xa8] sm:$0xff]
  %v1717 = vld [vmem:[%s1 + $0xb0] sm:$0xff]
  %v1718 = vld [vmem:[%s1 + $0xb8] sm:$0xff]
  %v1719 = vld [vmem:[%s1 + $0xc0] sm:$0xff]
  %v1720 = vld [vmem:[%s1 + $0xc8] sm:$0xff]
  %v1721 = vld [vmem:[%s1 + $0xd0] sm:$0xff]
  %v1722 = vld [vmem:[%s1 + $0xd8] sm:$0xff]
  %v1723 = vld [vmem:[%s1 + $0xe0] sm:$0xff]
  %v1724 = vld [vmem:[%s1 + $0xe8] sm:$0xff]
  %v1725 = vld [vmem:[%s1 + $0xf0] sm:$0xff]
  %v1726 = vld [vmem:[%s1 + $0xf8] sm:$0xff]
  %v1727 = vld [vmem:[%s1 + $0x100] sm:$0xff]
  %v1728 = vld [vmem:[%s1 + $0x108] sm:$0xff]
  %v1729 = vld [vmem:[%s1 + $0x110] sm:$0xff]
  %v1730 = vld [vmem:[%s1 + $0x118] sm:$0xff]
  %v1731 = vld [vmem:[%s1 + $0x120] sm:$0xff]
  %v1732 = vld [vmem:[%s1 + $0x128] sm:$0xff]
  %v1733 = vld [vmem:[%s1 + $0x130] sm:$0xff]
  %v1734 = vld [vmem:[%s1 + $0x138] sm:$0xff]
  %v1735 = vld [vmem:[%s1 + $0x140] sm:$0xff]
  %v1736 = vld [vmem:[%s1 + $0x148] sm:$0xff]
  %v1737 = vld [vmem:[%s1 + $0x150] sm:$0xff]
  %v1738 = vld [vmem:[%s1 + $0x158] sm:$0xff]
  %v1739 = vld [vmem:[%s1 + $0x160] sm:$0xff]
  %v1740 = vld [vmem:[%s1 + $0x168] sm:$0xff]
  %v1741 = vld [vmem:[%s1 + $0x170] sm:$0xff]
  %v1742 = vld [vmem:[%s1 + $0x178] sm:$0xff]
  %v1743 = vld [vmem:[%s1 + $0x180] sm:$0xff]
  %v1744 = vld [vmem:[%s1 + $0x188] sm:$0xff]
  %v1745 = vld [vmem:[%s1 + $0x190] sm:$0xff]
  %v1746 = vld [vmem:[%s1 + $0x198] sm:$0xff]
  %v1747 = vld [vmem:[%s1 + $0x1a0] sm:$0xff]
  %v1748 = vld [vmem:[%s1 + $0x1a8] sm:$0xff]
  %v1749 = vld [vmem:[%s1 + $0x1b0] sm:$0xff]
  %v1750 = vld [vmem:[%s1 + $0x1b8] sm:$0xff]
  %v1751 = vld [vmem:[%s1 + $0x1c0] sm:$0xff]
  %v1752 = vld [vmem:[%s1 + $0x1c8] sm:$0xff]
  %v1753 = vld [vmem:[%s1 + $0x1d0] sm:$0xff]
  %v1754 = vld [vmem:[%s1 + $0x1d8] sm:$0xff]
  %v1755 = vld [vmem:[%s1 + $0x1e0] sm:$0xff]
  %v1756 = vld [vmem:[%s1 + $0x1e8] sm:$0xff]
  %v1757 = vld [vmem:[%s1 + $0x1f0] sm:$0xff]
  %v1758 = vld [vmem:[%s1 + $0x1f8] sm:$0xff]
  %1759 = vmatprep.subr.mxu0 %v1756
  %1760 = vmatpush1.msra.mxu0 %v1755
  %1761 = vmatprep.subr.mxu0 %v1752
  %1762 = vmatpush1.msra.mxu0 %v1751
  %1763 = vmatprep.subr.mxu0 %v1748
  %1764 = vmatpush1.msra.mxu0 %v1747
  %1765 = vmatprep.subr.mxu0 %v1744
  %1766 = vmatpush1.msra.mxu0 %v1743
  %1767 = vmatprep.subr.mxu0 %v1740
  %1768 = vmatpush1.msra.mxu0 %v1739
  %1769 = vmatprep.subr.mxu0 %v1736
  %1770 = vmatpush1.msra.mxu0 %v1735
  %1771 = vmatprep.subr.mxu0 %v1732
  %1772 = vmatpush1.msra.mxu0 %v1731
  %1773 = vmatprep.subr.mxu0 %v1728
  %1774 = vmatpush1.msra.mxu0 %v1727
  %1775 = vmatprep.subr.mxu0 %v1724
  %1776 = vmatpush1.msra.mxu0 %v1723
  %1777 = vmatprep.subr.mxu0 %v1720
  %1778 = vmatpush1.msra.mxu0 %v1719
  %1779 = vmatprep.subr.mxu0 %v1716
  %1780 = vmatpush1.msra.mxu0 %v1715
  %1781 = vmatprep.subr.mxu0 %v1712
  %1782 = vmatpush1.msra.mxu0 %v1711
  %1783 = vmatprep.subr.mxu0 %v1708
  %1784 = vmatpush1.msra.mxu0 %v1707
  %1785 = vmatprep.subr.mxu0 %v1704
  %1786 = vmatpush1.msra.mxu0 %v1703
  %1787 = vmatprep.subr.mxu0 %v1700
  %1788 = vmatpush1.msra.mxu0 %v1699
  %1789 = vmatprep.subr.mxu0 %v1696
  %1790 = vmatpush1.msra.mxu0 %v1695
  %1791 = vmatprep.subr.mxu0 0.0
  %1792 = vmatpush2.msra.mxu0 0.0
  %1793 = vmatprep.subr.mxu0 0.0
  %1794 = vmatpush2.msra.mxu0 0.0
  %1795 = vmatprep.subr.mxu0 0.0
  %1796 = vmatpush2.msra.mxu0 0.0
  %1797 = vmatprep.subr.mxu0 0.0
  %1798 = vmatpush2.msra.mxu0 0.0
  %1799 = vmatprep.subr.mxu0 0.0
  %1800 = vmatpush2.msra.mxu0 0.0
  %1801 = vmatprep.subr.mxu0 0.0
  %1802 = vmatpush2.msra.mxu0 0.0
  %1803 = vmatprep.subr.mxu0 0.0
  %1804 = vmatpush2.msra.mxu0 0.0
  %1805 = vmatprep.subr.mxu0 0.0
  %1806 = vmatpush2.msra.mxu0 0.0
  %1807 = vmatprep.subr.mxu0 0.0
  %1808 = vmatpush2.msra.mxu0 0.0
  %1809 = vmatprep.subr.mxu0 0.0
  %1810 = vmatpush2.msra.mxu0 0.0
  %1811 = vmatprep.subr.mxu0 0.0
  %1812 = vmatpush2.msra.mxu0 0.0
  %1813 = vmatprep.subr.mxu0 0.0
  %1814 = vmatpush2.msra.mxu0 0.0
  %1815 = vmatprep.subr.mxu0 0.0
  %1816 = vmatpush2.msra.mxu0 0.0
  %1817 = vmatprep.subr.mxu0 0.0
  %1818 = vmatpush2.msra.mxu0 0.0
  %1819 = vmatprep.subr.mxu0 0.0
  %1820 = vmatpush2.msra.mxu0 0.0
  %1821 = vmatprep.subr.mxu0 0.0
  %1822 = vmatpush2.msra.mxu0 0.0
  %1823 = vmatprep.mubr.f32.mxu0 0.0
  %1824 = vmatmul.mubr.f32.gmra.mxu0 %v1688
  %v1825 = vpop.f32.mrf.mxu0
  %v1826 = vadd.f32 0.0, %v1825
  %v1827 = vpop.f32.mrf.mxu0
  %v1828 = vadd.f32 0.0, %v1827
  %1829 = vdwg.mxu0
  %1830 = vmatprep.subr.mxu0 %v1758
  %1831 = vmatpush1.msra.mxu0 %v1757
  %1832 = vmatprep.subr.mxu0 %v1754
  %1833 = vmatpush1.msra.mxu0 %v1753
  %1834 = vmatprep.subr.mxu0 %v1750
  %1835 = vmatpush1.msra.mxu0 %v1749
  %1836 = vmatprep.subr.mxu0 %v1746
  %1837 = vmatpush1.msra.mxu0 %v1745
  %1838 = vmatprep.subr.mxu0 %v1742
  %1839 = vmatpush1.msra.mxu0 %v1741
  %1840 = vmatprep.subr.mxu0 %v1738
  %1841 = vmatpush1.msra.mxu0 %v1737
  %1842 = vmatprep.subr.mxu0 %v1734
  %1843 = vmatpush1.msra.mxu0 %v1733
  %1844 = vmatprep.subr.mxu0 %v1730
  %1845 = vmatpush1.msra.mxu0 %v1729
  %1846 = vmatprep.subr.mxu0 %v1726
  %1847 = vmatpush1.msra.mxu0 %v1725
  %1848 = vmatprep.subr.mxu0 %v1722
  %1849 = vmatpush1.msra.mxu0 %v1721
  %1850 = vmatprep.subr.mxu0 %v1718
  %1851 = vmatpush1.msra.mxu0 %v1717
  %1852 = vmatprep.subr.mxu0 %v1714
  %1853 = vmatpush1.msra.mxu0 %v1713
  %1854 = vmatprep.subr.mxu0 %v1710
  %1855 = vmatpush1.msra.mxu0 %v1709
  %1856 = vmatprep.subr.mxu0 %v1706
  %1857 = vmatpush1.msra.mxu0 %v1705
  %1858 = vmatprep.subr.mxu0 %v1702
  %1859 = vmatpush1.msra.mxu0 %v1701
  %1860 = vmatprep.subr.mxu0 %v1698
  %1861 = vmatpush1.msra.mxu0 %v1697
  %1862 = vmatprep.subr.mxu0 0.0
  %1863 = vmatpush2.msra.mxu0 0.0
  %1864 = vmatprep.subr.mxu0 0.0
  %1865 = vmatpush2.msra.mxu0 0.0
  %1866 = vmatprep.subr.mxu0 0.0
  %1867 = vmatpush2.msra.mxu0 0.0
  %1868 = vmatprep.subr.mxu0 0.0
  %1869 = vmatpush2.msra.mxu0 0.0
  %1870 = vmatprep.subr.mxu0 0.0
  %1871 = vmatpush2.msra.mxu0 0.0
  %1872 = vmatprep.subr.mxu0 0.0
  %1873 = vmatpush2.msra.mxu0 0.0
  %1874 = vmatprep.subr.mxu0 0.0
  %1875 = vmatpush2.msra.mxu0 0.0
  %1876 = vmatprep.subr.mxu0 0.0
  %1877 = vmatpush2.msra.mxu0 0.0
  %1878 = vmatprep.subr.mxu0 0.0
  %1879 = vmatpush2.msra.mxu0 0.0
  %1880 = vmatprep.subr.mxu0 0.0
  %1881 = vmatpush2.msra.mxu0 0.0
  %1882 = vmatprep.subr.mxu0 0.0
  %1883 = vmatpush2.msra.mxu0 0.0
  %1884 = vmatprep.subr.mxu0 0.0
  %1885 = vmatpush2.msra.mxu0 0.0
  %1886 = vmatprep.subr.mxu0 0.0
  %1887 = vmatpush2.msra.mxu0 0.0
  %1888 = vmatprep.subr.mxu0 0.0
  %1889 = vmatpush2.msra.mxu0 0.0
  %1890 = vmatprep.subr.mxu0 0.0
  %1891 = vmatpush2.msra.mxu0 0.0
  %1892 = vmatprep.subr.mxu0 0.0
  %1893 = vmatpush2.msra.mxu0 0.0
  %1894 = vmatprep.mubr.f32.mxu0 0.0
  %1895 = vmatmul.mubr.f32.gmra.mxu0 %v1688
  %v1896 = vpop.f32.mrf.mxu0
  %v1897 = vadd.f32 0.0, %v1896
  %v1898 = vpop.f32.mrf.mxu0
  %v1899 = vadd.f32 0.0, %v1898
  %1900 = vdwg.mxu0
  %v1901 = vadd.f32 %v1691, %v1826
  %v1902 = vadd.f32 %v1692, %v1828
  %v1903 = vadd.f32 %v1693, %v1897
  %v1904 = vadd.f32 %v1694, %v1899
  %v1905 = vmul.f32 %v1901, 0.5
  %v1906 = vtanh.pop %v1905
  %v1907 = vmul.f32 %v1906, 0.5
  %v1908 = vadd.f32 %v1907, 0.5
  %v1909 = vmul.f32 %v1902, 0.5
  %v1910 = vtanh.pop %v1909
  %v1911 = vmul.f32 %v1910, 0.5
  %v1912 = vadd.f32 %v1911, 0.5
  %v1913 = vtanh.pop %v1903
  %v1914 = vmul.f32 %v1904, 0.5
  %v1915 = vtanh.pop %v1914
  %v1916 = vmul.f32 %v1915, 0.5
  %v1917 = vadd.f32 %v1916, 0.5
  %v1918 = vmul.f32 %v1912, %v1689
  %v1919 = vmul.f32 %v1908, %v1913
  %v1920 = vadd.f32 %v1918, %v1919
  %v1921 = vtanh.pop %v1920
  %v1922 = vmul.f32 %v1917, %v1921
  %s1923 = scalar_lea.vmem %s2, 56
  %1924 = vst [vmem:[%s1923] sm:$0xff] %v1922
  %1925 = vst [vmem:[#allocation2] sm:$0xff] %v1922
  %1926 = vst [vmem:[#allocation3] sm:$0xff] %v1920
  // Predicated region
  $region14: #{decoder_rnn_forward.2} parent=0 // pred_check
    _
  $region15: #{decoder_rnn_forward.2} parent=0 // pred_check_branch
    %1928 = sbr.rel (0) target = $region17
  $region16: #{decoder_rnn_forward.2} parent=0 // pred_region
    _
  $region17: #{decoder_rnn_forward.2} parent=0 // pred_fallthru
    _
  // Predicated region
  $region18: #{decoder_rnn_forward.2} parent=0 // pred_check
    _
  $region19: #{decoder_rnn_forward.2} parent=0 // pred_check_branch
    %1930 = sbr.rel (0) target = $region21
  $region20: #{decoder_rnn_forward.2} parent=0 // pred_region
    _
  $region21: #{decoder_rnn_forward.2} parent=0 // pred_fallthru
    _

</llo_original>
